<compile_context>
chip_gen: v5e
topology: v5e:2x2
jax: 0.10.0
libtpu: 0.0.40
codegen_flags: <defaults>
</compile_context>

<pallas_src>
from functools import partial

import numpy as np
import jax
import jax.numpy as jnp
from jax.experimental import pallas as pl
from jax.experimental.pallas import tpu as pltpu

# ----------------------------- config (small, TaskConfig stand-in) -----------------------------
SAMPLE_RATE = 16000
N_FFT = 400
WIN_LENGTH = 400
HOP_LENGTH = 160
N_FREQS = N_FFT // 2 + 1          # 201 one-sided rfft bins

N_MELS = 32                        # config.n_mels
CNN_OUT = 4                        # config.cnn_out_channels
KF, KT = 5, 8                      # config.kernel_size  (freq, time)
SF, ST = 2, 4                      # config.stride       (freq, time)
F_OUT = (N_MELS - KF) // SF + 1    # conv output frequency bins = 14
GRU_IN = CNN_OUT * F_OUT           # 56
HIDDEN = 32                        # config.hidden (GRU hidden size)
NUM_LAYERS = 2                     # config.gru_num_layers (unidirectional)
NUM_CLASSES = 2

AUDIO_LEN = 4800                   # 0.3 s @ 16 kHz  -> 31 mel frames -> 6 conv time steps

DFT_K = 512                        # N_FFT (400) zero-padded to a lane-dense K
DFT_N = 512                        # 2*N_FREQS (402) zero-padded to a lane-dense N

VMEM_SPEC = pl.BlockSpec(memory_space=pltpu.MemorySpace.VMEM)


# ------------------------------------------- wrapper -------------------------------------------
@partial(jax.jit, static_argnames=("max_window_length",))
def streaming_crnn_forward(audio, W, max_window_length=32):
    """One streaming step from fresh state (empty mel/gru buffers, zero GRU hidden).

    W is the packed/folded weight dict from pack_weights().
    TODO(synk): cross-call growing streaming buffers (torch.cat of ragged length + the
    max_window_length trimming) are host-side bookkeeping, not expressible as static-shape
    Pallas state; on a fresh-state call they do not change the output.
    """
    T_audio = audio.shape[0]
    n_frames = 1 + T_audio // HOP_LENGTH
    t_out = (n_frames - KT) // ST + 1
    drop_frames = (n_frames - KT) // ST * ST + KT
    keep_start = drop_frames + 1
    rem_frames = n_frames - keep_start                    # mel frames kept for next call
    n_win_rows = (t_out - 1) * ST + KT                    # mel frames consumed by the conv

    # ---- STFT framing done in the wrapper from hop-row slices (lane-dense kernel operand) ----
    n_full = N_FFT // HOP_LENGTH                          # 2 full hop-rows per frame
    rem = N_FFT - n_full * HOP_LENGTH                     # + 80 samples
    n_rows = n_frames + n_full - (0 if rem else 1)

    pad = N_FFT // 2
    padded = jnp.pad(audio, (pad, pad), mode="reflect")   # torch.stft(center=True) padding
    padded = jnp.pad(padded, (0, n_rows * HOP_LENGTH - padded.shape[0]))
    audio2d = padded.reshape(n_rows, HOP_LENGTH)
    pieces = [audio2d[j:j + n_frames, :] for j in range(n_full)]
    if rem:
        pieces.append(audio2d[n_full:n_full + n_frames, 0:rem])
    frames = jnp.concatenate(pieces, axis=1)              # (n_frames, N_FFT)
    frames = jnp.pad(frames, ((0, 0), (0, DFT_K - N_FFT))).astype(jnp.bfloat16)

    H = HIDDEN

    def kernel(frames_ref, wdft_ref, fb2_ref, w0c_ref, wrec_ref, bgru_ref,
               headw_ref, headb_ref,
               probs_ref, hout_ref, seq_ref, meltail_ref, mel_sc):
        # ---- windowed rDFT (bf16 x bf16 -> f32, lane-dense 512x512), power, mel, log-clamp ----
        spec = jnp.dot(frames_ref[...], wdft_ref[...],
                       preferred_element_type=jnp.float32)                # (n_frames, 512)
        mel = jnp.dot(spec * spec, fb2_ref[...],
                      preferred_element_type=jnp.float32)                 # (n_frames, N_MELS)
        logmel = jnp.log(jnp.clip(mel, 1e-9, 1e9))                        # time-major
        meltail_ref[...] = logmel[keep_start:n_frames, :]                 # streaming mel tail
        mel_sc[...] = logmel[0:n_win_rows, :]

        # ---- Conv2d (+Flatten+transpose) folded into the GRU layer-0 input projection ----
        gi0 = jnp.zeros((t_out, 3 * H), jnp.float32)
        for kt in range(KT):                                              # unrolled, static
            m_kt = mel_sc[pl.ds(kt, t_out, stride=ST), :]                 # rows kt, kt+ST, ...
            w_kt = w0c_ref[kt * N_MELS:(kt + 1) * N_MELS, :]              # (N_MELS, 3H)
            gi0 = gi0 + jnp.dot(m_kt, w_kt, preferred_element_type=jnp.float32)
        gi0 = gi0 + bgru_ref[0:1, :]                                      # folded conv+gru bias

        # ---- 2-layer unidirectional GRU (PyTorch gate order [r|z|n]) in wavefront order ----
        whh0 = wrec_ref[0:H, :]
        wih1 = wrec_ref[H:2 * H, :]
        whh1 = wrec_ref[2 * H:3 * H, :]
        bhh0 = bgru_ref[1:2, :]
        bih1 = bgru_ref[2:3, :]
        bhh1 = bgru_ref[3:4, :]

        def gru_cell(gi, gh, h_prev):
            rz = jax.nn.sigmoid(gi[:, 0:2 * H] + gh[:, 0:2 * H])          # fused r|z sigmoid
            r = rz[:, 0:H]
            z = rz[:, H:2 * H]
            n = jnp.tanh(gi[:, 2 * H:3 * H] + r * gh[:, 2 * H:3 * H])
            return (1.0 - z) * n + z * h_prev

        h0 = jnp.zeros((1, H), jnp.float32)                               # fresh streaming hidden
        h1 = jnp.zeros((1, H), jnp.float32)
        seq0 = [None] * t_out
        seq1 = [None] * t_out
        for t in range(t_out + 1):                                        # unrolled, static
            # layer-0 step t and layer-1 step t-1 are independent -> scheduler interleaves them
            if t < t_out:
                gh0 = jnp.dot(h0, whh0, preferred_element_type=jnp.float32) + bhh0
                h0 = gru_cell(gi0[t:t + 1, :], gh0, h0)
                seq0[t] = h0
            if t > 0:
                x1 = seq0[t - 1]
                gi1 = jnp.dot(x1, wih1, preferred_element_type=jnp.float32) + bih1
                gh1 = jnp.dot(h1, whh1, preferred_element_type=jnp.float32) + bhh1
                h1 = gru_cell(gi1, gh1, h1)
                seq1[t - 1] = h1

        seq1_all = jnp.concatenate(seq1, axis=0)                          # (t_out, H)
        seq_ref[...] = seq1_all                                           # single block store
        hout_ref[...] = jnp.concatenate([h0, h1], axis=0)                 # single block store

        # ---- attention (Linear -> tanh -> Linear -> softmax over time) + classifier ----
        aw1 = headw_ref[:, 0:H]
        aw2 = headw_ref[:, H:H + 1]
        cw = headw_ref[:, H + 1:H + 1 + NUM_CLASSES]
        ab1 = headb_ref[:, 0:H]
        ab2 = headb_ref[:, H:H + 1]
        cb = headb_ref[:, H + 1:H + 1 + NUM_CLASSES]

        u = jnp.tanh(jnp.dot(seq1_all, aw1, preferred_element_type=jnp.float32) + ab1)
        e = jnp.dot(u, aw2, preferred_element_type=jnp.float32) + ab2     # (t_out, 1)
        e = e - jnp.max(e, axis=0, keepdims=True)
        a = jnp.exp(e)
        alpha = a * pl.reciprocal(jnp.sum(a, axis=0, keepdims=True), approx=True)
        ctx = jnp.sum(seq1_all * alpha, axis=0, keepdims=True)            # (1, H)

        logits = jnp.dot(ctx, cw, preferred_element_type=jnp.float32) + cb
        logits = logits - jnp.max(logits, axis=-1, keepdims=True)
        p = jnp.exp(logits)
        probs_ref[...] = p * pl.reciprocal(jnp.sum(p, axis=-1, keepdims=True), approx=True)

    probs, h_out, gru_seq, mel_tail = pl.pallas_call(
        kernel,
        out_shape=(
            jax.ShapeDtypeStruct((1, NUM_CLASSES), jnp.float32),
            jax.ShapeDtypeStruct((NUM_LAYERS, HIDDEN), jnp.float32),
            jax.ShapeDtypeStruct((t_out, HIDDEN), jnp.float32),
            jax.ShapeDtypeStruct((rem_frames, N_MELS), jnp.float32),
        ),
        in_specs=[VMEM_SPEC] * 8,
        out_specs=(VMEM_SPEC, VMEM_SPEC, VMEM_SPEC, VMEM_SPEC),
        scratch_shapes=[pltpu.VMEM((n_win_rows, N_MELS), jnp.float32)],
    )(frames, W["wdft"], W["fb2"], W["w0c"], W["wrec"], W["bgru"], W["headw"], W["headb"])

    out = probs[0, 1]                                   # probs.squeeze(0)[..., 1]
    new_mel_state = mel_tail.T                          # mirrors torch (n_mels, frames) buffer
    new_gru_state = gru_seq                             # self.gru_output after cat (was empty)
    return out, h_out, new_gru_state, new_mel_state


# ------------------------------------- constants & parameters -------------------------------------
def _hz_to_mel(f):
    return 2595.0 * np.log10(1.0 + f / 700.0)


def _mel_to_hz(m):
    return 700.0 * (10.0 ** (m / 2595.0) - 1.0)


def build_consts():
    """Hann window, real-DFT matrices, torchaudio-style HTK mel filterbank (norm=None)."""
    n = np.arange(N_FFT)
    k = np.arange(N_FREQS)
    ang = 2.0 * np.pi * np.outer(n, k) / N_FFT
    window = (0.5 - 0.5 * np.cos(2.0 * np.pi * n / N_FFT)).astype(np.float32)   # periodic hann

    all_freqs = np.linspace(0.0, SAMPLE_RATE // 2, N_FREQS)
    m_pts = np.linspace(_hz_to_mel(0.0), _hz_to_mel(float(SAMPLE_RATE // 2)), N_MELS + 2)
    f_pts = _mel_to_hz(m_pts)
    f_diff = f_pts[1:] - f_pts[:-1]
    slopes = f_pts[None, :] - all_freqs[:, None]
    down = -slopes[:, :-2] / f_diff[:-1]
    up = slopes[:, 2:] / f_diff[1:]
    fb = np.maximum(0.0, np.minimum(down, up)).astype(np.float32)                # (n_freqs, n_mels)

    return dict(
        window=window[None, :],
        dft_r=np.cos(ang).astype(np.float32),
        dft_i=(-np.sin(ang)).astype(np.float32),
        mel_fb=fb,
    )


def pack_weights(P, C):
    """Host-side (one-time) folding/packing of weights for the fused kernel.

    - wdft  : Hann window pre-multiplied into concat([dft_re, dft_im]), zero-padded to
              (DFT_K, DFT_N) = (512, 512) and cast to bf16 (lane-dense, MXU-native).
    - fb2   : mel filterbank stacked twice with zero pad rows -> (DFT_N, N_MELS).
    - w0c   : Conv2d + Flatten + transpose composed with gru_wih0 -> (KT*N_MELS, 3H)
    - wrec  : [whh0.T ; wih1.T ; whh1.T] -> (3H, 3H)
    - bgru  : [bih0 folded with conv bias ; bhh0 ; bih1 ; bhh1] -> (4, 3H)
    - headw : [att_w1.T | att_w2.T | cls_w.T] -> (H, H+1+NUM_CLASSES),  headb likewise.
    """
    win = C["window"][0]
    wdft_full = (win[:, None] * np.concatenate([C["dft_r"], C["dft_i"]], axis=1))
    wdft = np.zeros((DFT_K, DFT_N), np.float32)
    wdft[:N_FFT, :2 * N_FREQS] = wdft_full
    fb2 = np.zeros((DFT_N, N_MELS), np.float32)
    fb2[:N_FREQS, :] = C["mel_fb"]
    fb2[N_FREQS:2 * N_FREQS, :] = C["mel_fb"]

    wih0_r = P["gru_wih0"].reshape(3 * HIDDEN, CNN_OUT, F_OUT)             # [g, c, f]
    t1 = np.einsum("gcf,ckt->gfkt", wih0_r, P["conv_w"][:, 0])             # (3H, F, KF, KT)
    w0m = np.zeros((3 * HIDDEN, N_MELS, KT), np.float32)
    for f in range(F_OUT):                                                 # scatter-add over m=f*SF+kf
        w0m[:, f * SF:f * SF + KF, :] += t1[:, f]
    w0c = np.ascontiguousarray(
        w0m.transpose(2, 1, 0).reshape(KT * N_MELS, 3 * HIDDEN)).astype(np.float32)
    b0c = (P["gru_bih0"] + np.einsum("gcf,c->g", wih0_r, P["conv_b"])).astype(np.float32)

    wrec = np.concatenate(
        [P["gru_whh0"].T, P["gru_wih1"].T, P["gru_whh1"].T], axis=0).astype(np.float32)
    bgru = np.stack(
        [b0c, P["gru_bhh0"], P["gru_bih1"], P["gru_bhh1"]], axis=0).astype(np.float32)
    headw = np.concatenate(
        [P["att_w1"].T, P["att_w2"].T, P["cls_w"].T], axis=1).astype(np.float32)
    headb = np.concatenate(
        [P["att_b1"], P["att_b2"], P["cls_b"]])[None, :].astype(np.float32)

    W = dict(fb2=fb2, w0c=w0c, wrec=wrec, bgru=bgru, headw=headw, headb=headb)
    W = {k: jnp.asarray(v) for k, v in W.items()}
    W["wdft"] = jnp.asarray(wdft, jnp.bfloat16)     # bf16 DFT weights: MXU-native, halves DMA
    return W


def init_params(key):
    """Deterministic synthetic weights in PyTorch layouts (uniform +-1/sqrt(fan_in))."""
    ks = jax.random.split(key, 16)

    def u(k, shape, fan_in):
        b = 1.0 / np.sqrt(fan_in)
        return np.asarray(jax.random.uniform(k, shape, jnp.float32, -b, b), np.float32)

    P = {}
    P["conv_w"] = u(ks[0], (CNN_OUT, 1, KF, KT), KF * KT)
    P["conv_b"] = u(ks[1], (CNN_OUT,), KF * KT)
    P["gru_wih0"] = u(ks[2], (3 * HIDDEN, GRU_IN), GRU_IN)
    P["gru_whh0"] = u(ks[3], (3 * HIDDEN, HIDDEN), HIDDEN)
    P["gru_bih0"] = u(ks[4], (3 * HIDDEN,), HIDDEN)
    P["gru_bhh0"] = u(ks[5], (3 * HIDDEN,), HIDDEN)
    P["gru_wih1"] = u(ks[6], (3 * HIDDEN, HIDDEN), HIDDEN)
    P["gru_whh1"] = u(ks[7], (3 * HIDDEN, HIDDEN), HIDDEN)
    P["gru_bih1"] = u(ks[8], (3 * HIDDEN,), HIDDEN)
    P["gru_bhh1"] = u(ks[9], (3 * HIDDEN,), HIDDEN)
    P["att_w1"] = u(ks[10], (HIDDEN, HIDDEN), HIDDEN)
    P["att_b1"] = u(ks[11], (HIDDEN,), HIDDEN)
    P["att_w2"] = u(ks[12], (1, HIDDEN), HIDDEN)
    P["att_b2"] = u(ks[13], (1,), HIDDEN)
    P["cls_w"] = u(ks[14], (NUM_CLASSES, HIDDEN), HIDDEN)
    P["cls_b"] = u(ks[15], (NUM_CLASSES,), HIDDEN)
    return P


# ------------------------------------- numpy reference (for checking) -------------------------------------
def reference_forward(audio, P, C):
    audio = np.asarray(audio, np.float32)
    pad = N_FFT // 2
    padded = np.pad(audio, (pad, pad), mode="reflect")
    n_frames = 1 + audio.shape[0] // HOP_LENGTH
    idx = np.arange(n_frames)[:, None] * HOP_LENGTH + np.arange(N_FFT)[None, :]
    x = padded[idx] * C["window"]
    power = (x @ C["dft_r"]) ** 2 + (x @ C["dft_i"]) ** 2
    logmel = np.log(np.clip(power @ C["mel_fb"], 1e-9, 1e9))
    mel_img = logmel.T

    t_out = (n_frames - KT) // ST + 1
    rows = (np.arange(F_OUT) * SF)[None, :, None, None] + np.arange(KF)[None, None, :, None]
    cols = (np.arange(t_out) * ST)[:, None, None, None] + np.arange(KT)[None, None, None, :]
    patches = mel_img[rows, cols].reshape(t_out * F_OUT, KF * KT)
    conv = patches @ P["conv_w"].reshape(CNN_OUT, -1).T + P["conv_b"]
    seq = conv.reshape(t_out, F_OUT, CNN_OUT).transpose(0, 2, 1).reshape(t_out, GRU_IN)

    def sigmoid(v):
        return 1.0 / (1.0 + np.exp(-v))

    H = HIDDEN
    hidden = np.zeros((NUM_LAYERS, H), np.float32)
    for l in range(NUM_LAYERS):
        wih, whh = P[f"gru_wih{l}"], P[f"gru_whh{l}"]
        bih, bhh = P[f"gru_bih{l}"], P[f"gru_bhh{l}"]
        h = np.zeros((H,), np.float32)
        new_seq = np.zeros((seq.shape[0], H), np.float32)
        for t in range(seq.shape[0]):
            gi = seq[t] @ wih.T + bih
            gh = h @ whh.T + bhh
            r = sigmoid(gi[:H] + gh[:H])
            z = sigmoid(gi[H:2 * H] + gh[H:2 * H])
            n = np.tanh(gi[2 * H:] + r * gh[2 * H:])
            h = (1.0 - z) * n + z * h
            new_seq[t] = h
        seq = new_seq
        hidden[l] = h

    e = np.tanh(seq @ P["att_w1"].T + P["att_b1"]) @ P["att_w2"].T + P["att_b2"]
    e = e - e.max()
    a = np.exp(e)
    alpha = a / a.sum()
    ctx = (seq * alpha).sum(axis=0)
    logits = ctx @ P["cls_w"].T + P["cls_b"]
    logits = logits - logits.max()
    p = np.exp(logits)
    probs = p / p.sum()
    return probs[1], hidden, seq


# ---------------------------------------------- demo ----------------------------------------------
if __name__ == "__main__":
    key = jax.random.PRNGKey(0)
    k_audio, k_params = jax.random.split(key)

    audio = 0.1 * jax.random.normal(k_audio, (AUDIO_LEN,), dtype=jnp.float32)
    P = init_params(k_params)
    C = build_consts()
    W = pack_weights(P, C)

    out, h_new, gru_state, mel_state = streaming_crnn_forward(audio, W, max_window_length=32)
    jax.block_until_ready((out, h_new, gru_state, mel_state))

    # Tolerances account for the bf16 DFT front-end (MXU-native) vs. the f32 numpy reference.
    ref_out, ref_h, ref_seq = reference_forward(np.asarray(audio), P, C)
    np.testing.assert_allclose(np.asarray(out), ref_out, atol=1e-2)
    np.testing.assert_allclose(np.asarray(h_new), ref_h, atol=2e-2)
    np.testing.assert_allclose(np.asarray(gru_state), ref_seq, atol=2e-2)

    print("KERNEL_OK")
</pallas_src>

<mosaic_0001>
module attributes {stable_mosaic.version = 11 : i64} {
  func.func @kernel(%arg0: memref<31x512xbf16, #tpu.memory_space<vmem>>, %arg1: memref<512x512xbf16, #tpu.memory_space<vmem>>, %arg2: memref<512x32xf32, #tpu.memory_space<vmem>>, %arg3: memref<256x96xf32, #tpu.memory_space<vmem>>, %arg4: memref<96x96xf32, #tpu.memory_space<vmem>>, %arg5: memref<4x96xf32, #tpu.memory_space<vmem>>, %arg6: memref<32x35xf32, #tpu.memory_space<vmem>>, %arg7: memref<1x35xf32, #tpu.memory_space<vmem>>, %arg8: memref<1x2xf32, #tpu.memory_space<vmem>>, %arg9: memref<2x32xf32, #tpu.memory_space<vmem>>, %arg10: memref<6x32xf32, #tpu.memory_space<vmem>>, %arg11: memref<2x32xf32, #tpu.memory_space<vmem>>, %arg12: memref<28x32xf32, #tpu.memory_space<vmem>>) attributes {dimension_semantics = [], scalar_prefetch = 0 : i64, scratch_operands = 1 : i64, tpu.core_type = #tpu.core_type<tc>} {
    %c0 = arith.constant 0 : index
    %c0_0 = arith.constant 0 : index
    %0 = vector.load %arg0[%c0, %c0_0] : memref<31x512xbf16, #tpu.memory_space<vmem>>, vector<31x512xbf16>
    %c0_1 = arith.constant 0 : index
    %c0_2 = arith.constant 0 : index
    %1 = vector.load %arg1[%c0_1, %c0_2] : memref<512x512xbf16, #tpu.memory_space<vmem>>, vector<512x512xbf16>
    %cst = arith.constant dense<0.000000e+00> : vector<31x512xf32>
    %2 = tpu.matmul %0, %1, %cst {dimension_numbers = #tpu.dot_dimension_numbers<[1], [0], [0], [1], [0, 0, 1, 1], [], []>} : vector<31x512xbf16>, vector<512x512xbf16>, vector<31x512xf32> -> vector<31x512xf32>
    %3 = arith.mulf %2, %2 : vector<31x512xf32>
    %c0_3 = arith.constant 0 : index
    %c0_4 = arith.constant 0 : index
    %4 = vector.load %arg2[%c0_3, %c0_4] : memref<512x32xf32, #tpu.memory_space<vmem>>, vector<512x32xf32>
    %cst_5 = arith.constant dense<0.000000e+00> : vector<31x32xf32>
    %5 = tpu.matmul %3, %4, %cst_5 {dimension_numbers = #tpu.dot_dimension_numbers<[1], [0], [0], [1], [0, 0, 1, 1], [], []>} : vector<31x512xf32>, vector<512x32xf32>, vector<31x32xf32> -> vector<31x32xf32>
    %cst_6 = arith.constant 9.99999971E-10 : f32
    %cst_7 = arith.constant 1.000000e+09 : f32
    %6 = vector.broadcast %cst_6 : f32 to vector<31x32xf32>
    %7 = arith.maximumf %6, %5 : vector<31x32xf32>
    %8 = vector.broadcast %cst_7 : f32 to vector<31x32xf32>
    %9 = arith.minimumf %8, %7 : vector<31x32xf32>
    %10 = math.log %9 : vector<31x32xf32>
    %11 = vector.extract_strided_slice %10 {offsets = [29, 0], sizes = [2, 32], strides = [1, 1]} : vector<31x32xf32> to vector<2x32xf32>
    %c0_8 = arith.constant 0 : index
    %c0_9 = arith.constant 0 : index
    %12 = vector.load %arg11[%c0_8, %c0_9] : memref<2x32xf32, #tpu.memory_space<vmem>>, vector<2x32xf32>
    tpu.vector_store %arg11[%c0_8, %c0_9], %11 {strides = array<i32>} : memref<2x32xf32, #tpu.memory_space<vmem>>, vector<2x32xf32>,
    %13 = vector.extract_strided_slice %10 {offsets = [0, 0], sizes = [28, 32], strides = [1, 1]} : vector<31x32xf32> to vector<28x32xf32>
    %c0_10 = arith.constant 0 : index
    %c0_11 = arith.constant 0 : index
    %14 = vector.load %arg12[%c0_10, %c0_11] : memref<28x32xf32, #tpu.memory_space<vmem>>, vector<28x32xf32>
    tpu.vector_store %arg12[%c0_10, %c0_11], %13 {strides = array<i32>} : memref<28x32xf32, #tpu.memory_space<vmem>>, vector<28x32xf32>,
    %cst_12 = arith.constant 0.000000e+00 : f32
    %15 = vector.broadcast %cst_12 : f32 to vector<6x96xf32>
    %c0_13 = arith.constant 0 : index
    %c0_14 = arith.constant 0 : index
    %16 = tpu.strided_load %arg12[%c0_13, %c0_14] {strides = array<i32: 4, 1>} : memref<28x32xf32, #tpu.memory_space<vmem>>, vector<6x32xf32>
    %c0_15 = arith.constant 0 : index
    %c0_16 = arith.constant 0 : index
    %17 = vector.load %arg3[%c0_15, %c0_16] : memref<256x96xf32, #tpu.memory_space<vmem>>, vector<32x96xf32>
    %cst_17 = arith.constant dense<0.000000e+00> : vector<6x96xf32>
    %18 = tpu.matmul %16, %17, %cst_17 {dimension_numbers = #tpu.dot_dimension_numbers<[1], [0], [0], [1], [0, 0, 1, 1], [], []>} : vector<6x32xf32>, vector<32x96xf32>, vector<6x96xf32> -> vector<6x96xf32>
    %19 = arith.addf %15, %18 : vector<6x96xf32>
    %c1 = arith.constant 1 : index
    %c0_18 = arith.constant 0 : index
    %20 = tpu.strided_load %arg12[%c1, %c0_18] {strides = array<i32: 4, 1>} : memref<28x32xf32, #tpu.memory_space<vmem>>, vector<6x32xf32>
    %c32 = arith.constant 32 : index
    %c0_19 = arith.constant 0 : index
    %21 = vector.load %arg3[%c32, %c0_19] : memref<256x96xf32, #tpu.memory_space<vmem>>, vector<32x96xf32>
    %cst_20 = arith.constant dense<0.000000e+00> : vector<6x96xf32>
    %22 = tpu.matmul %20, %21, %cst_20 {dimension_numbers = #tpu.dot_dimension_numbers<[1], [0], [0], [1], [0, 0, 1, 1], [], []>} : vector<6x32xf32>, vector<32x96xf32>, vector<6x96xf32> -> vector<6x96xf32>
    %23 = arith.addf %19, %22 : vector<6x96xf32>
    %c2 = arith.constant 2 : index
    %c0_21 = arith.constant 0 : index
    %24 = tpu.strided_load %arg12[%c2, %c0_21] {strides = array<i32: 4, 1>} : memref<28x32xf32, #tpu.memory_space<vmem>>, vector<6x32xf32>
    %c64 = arith.constant 64 : index
    %c0_22 = arith.constant 0 : index
    %25 = vector.load %arg3[%c64, %c0_22] : memref<256x96xf32, #tpu.memory_space<vmem>>, vector<32x96xf32>
    %cst_23 = arith.constant dense<0.000000e+00> : vector<6x96xf32>
    %26 = tpu.matmul %24, %25, %cst_23 {dimension_numbers = #tpu.dot_dimension_numbers<[1], [0], [0], [1], [0, 0, 1, 1], [], []>} : vector<6x32xf32>, vector<32x96xf32>, vector<6x96xf32> -> vector<6x96xf32>
    %27 = arith.addf %23, %26 : vector<6x96xf32>
    %c3 = arith.constant 3 : index
    %c0_24 = arith.constant 0 : index
    %28 = tpu.strided_load %arg12[%c3, %c0_24] {strides = array<i32: 4, 1>} : memref<28x32xf32, #tpu.memory_space<vmem>>, vector<6x32xf32>
    %c96 = arith.constant 96 : index
    %c0_25 = arith.constant 0 : index
    %29 = vector.load %arg3[%c96, %c0_25] : memref<256x96xf32, #tpu.memory_space<vmem>>, vector<32x96xf32>
    %cst_26 = arith.constant dense<0.000000e+00> : vector<6x96xf32>
    %30 = tpu.matmul %28, %29, %cst_26 {dimension_numbers = #tpu.dot_dimension_numbers<[1], [0], [0], [1], [0, 0, 1, 1], [], []>} : vector<6x32xf32>, vector<32x96xf32>, vector<6x96xf32> -> vector<6x96xf32>
    %31 = arith.addf %27, %30 : vector<6x96xf32>
    %c4 = arith.constant 4 : index
    %c0_27 = arith.constant 0 : index
    %32 = tpu.strided_load %arg12[%c4, %c0_27] {strides = array<i32: 4, 1>} : memref<28x32xf32, #tpu.memory_space<vmem>>, vector<6x32xf32>
    %c128 = arith.constant 128 : index
    %c0_28 = arith.constant 0 : index
    %33 = vector.load %arg3[%c128, %c0_28] : memref<256x96xf32, #tpu.memory_space<vmem>>, vector<32x96xf32>
    %cst_29 = arith.constant dense<0.000000e+00> : vector<6x96xf32>
    %34 = tpu.matmul %32, %33, %cst_29 {dimension_numbers = #tpu.dot_dimension_numbers<[1], [0], [0], [1], [0, 0, 1, 1], [], []>} : vector<6x32xf32>, vector<32x96xf32>, vector<6x96xf32> -> vector<6x96xf32>
    %35 = arith.addf %31, %34 : vector<6x96xf32>
    %c5 = arith.constant 5 : index
    %c0_30 = arith.constant 0 : index
    %36 = tpu.strided_load %arg12[%c5, %c0_30] {strides = array<i32: 4, 1>} : memref<28x32xf32, #tpu.memory_space<vmem>>, vector<6x32xf32>
    %c160 = arith.constant 160 : index
    %c0_31 = arith.constant 0 : index
    %37 = vector.load %arg3[%c160, %c0_31] : memref<256x96xf32, #tpu.memory_space<vmem>>, vector<32x96xf32>
    %cst_32 = arith.constant dense<0.000000e+00> : vector<6x96xf32>
    %38 = tpu.matmul %36, %37, %cst_32 {dimension_numbers = #tpu.dot_dimension_numbers<[1], [0], [0], [1], [0, 0, 1, 1], [], []>} : vector<6x32xf32>, vector<32x96xf32>, vector<6x96xf32> -> vector<6x96xf32>
    %39 = arith.addf %35, %38 : vector<6x96xf32>
    %c6 = arith.constant 6 : index
    %c0_33 = arith.constant 0 : index
    %40 = tpu.strided_load %arg12[%c6, %c0_33] {strides = array<i32: 4, 1>} : memref<28x32xf32, #tpu.memory_space<vmem>>, vector<6x32xf32>
    %c192 = arith.constant 192 : index
    %c0_34 = arith.constant 0 : index
    %41 = vector.load %arg3[%c192, %c0_34] : memref<256x96xf32, #tpu.memory_space<vmem>>, vector<32x96xf32>
    %cst_35 = arith.constant dense<0.000000e+00> : vector<6x96xf32>
    %42 = tpu.matmul %40, %41, %cst_35 {dimension_numbers = #tpu.dot_dimension_numbers<[1], [0], [0], [1], [0, 0, 1, 1], [], []>} : vector<6x32xf32>, vector<32x96xf32>, vector<6x96xf32> -> vector<6x96xf32>
    %43 = arith.addf %39, %42 : vector<6x96xf32>
    %c7 = arith.constant 7 : index
    %c0_36 = arith.constant 0 : index
    %44 = tpu.strided_load %arg12[%c7, %c0_36] {strides = array<i32: 4, 1>} : memref<28x32xf32, #tpu.memory_space<vmem>>, vector<6x32xf32>
    %c224 = arith.constant 224 : index
    %c0_37 = arith.constant 0 : index
    %45 = vector.load %arg3[%c224, %c0_37] : memref<256x96xf32, #tpu.memory_space<vmem>>, vector<32x96xf32>
    %cst_38 = arith.constant dense<0.000000e+00> : vector<6x96xf32>
    %46 = tpu.matmul %44, %45, %cst_38 {dimension_numbers = #tpu.dot_dimension_numbers<[1], [0], [0], [1], [0, 0, 1, 1], [], []>} : vector<6x32xf32>, vector<32x96xf32>, vector<6x96xf32> -> vector<6x96xf32>
    %47 = arith.addf %43, %46 : vector<6x96xf32>
    %c0_39 = arith.constant 0 : index
    %c0_40 = arith.constant 0 : index
    %48 = vector.load %arg5[%c0_39, %c0_40] : memref<4x96xf32, #tpu.memory_space<vmem>>, vector<1x96xf32>
    %49 = vector.broadcast %48 : vector<1x96xf32> to vector<6x96xf32>
    %50 = arith.addf %47, %49 : vector<6x96xf32>
    %c0_41 = arith.constant 0 : index
    %c0_42 = arith.constant 0 : index
    %51 = vector.load %arg4[%c0_41, %c0_42] : memref<96x96xf32, #tpu.memory_space<vmem>>, vector<32x96xf32>
    %c32_43 = arith.constant 32 : index
    %c0_44 = arith.constant 0 : index
    %52 = vector.load %arg4[%c32_43, %c0_44] : memref<96x96xf32, #tpu.memory_space<vmem>>, vector<32x96xf32>
    %c64_45 = arith.constant 64 : index
    %c0_46 = arith.constant 0 : index
    %53 = vector.load %arg4[%c64_45, %c0_46] : memref<96x96xf32, #tpu.memory_space<vmem>>, vector<32x96xf32>
    %c1_47 = arith.constant 1 : index
    %c0_48 = arith.constant 0 : index
    %54 = vector.load %arg5[%c1_47, %c0_48] : memref<4x96xf32, #tpu.memory_space<vmem>>, vector<1x96xf32>
    %c2_49 = arith.constant 2 : index
    %c0_50 = arith.constant 0 : index
    %55 = vector.load %arg5[%c2_49, %c0_50] : memref<4x96xf32, #tpu.memory_space<vmem>>, vector<1x96xf32>
    %c3_51 = arith.constant 3 : index
    %c0_52 = arith.constant 0 : index
    %56 = vector.load %arg5[%c3_51, %c0_52] : memref<4x96xf32, #tpu.memory_space<vmem>>, vector<1x96xf32>
    %cst_53 = arith.constant 0.000000e+00 : f32
    %57 = vector.broadcast %cst_53 : f32 to vector<1x32xf32>
    %cst_54 = arith.constant 0.000000e+00 : f32
    %58 = vector.broadcast %cst_54 : f32 to vector<1x32xf32>
    %cst_55 = arith.constant dense<0.000000e+00> : vector<1x96xf32>
    %59 = tpu.matmul %57, %51, %cst_55 {dimension_numbers = #tpu.dot_dimension_numbers<[1], [0], [0], [1], [0, 0, 1, 1], [], []>} : vector<1x32xf32>, vector<32x96xf32>, vector<1x96xf32> -> vector<1x96xf32>
    %60 = arith.addf %59, %54 : vector<1x96xf32>
    %61 = vector.extract_strided_slice %50 {offsets = [0, 0], sizes = [1, 96], strides = [1, 1]} : vector<6x96xf32> to vector<1x96xf32>
    %62 = vector.extract_strided_slice %61 {offsets = [0, 0], sizes = [1, 64], strides = [1, 1]} : vector<1x96xf32> to vector<1x64xf32>
    %63 = vector.extract_strided_slice %60 {offsets = [0, 0], sizes = [1, 64], strides = [1, 1]} : vector<1x96xf32> to vector<1x64xf32>
    %64 = arith.addf %62, %63 : vector<1x64xf32>
    %65 = arith.negf %64 : vector<1x64xf32>
    %66 = math.exp %65 : vector<1x64xf32>
    %cst_56 = arith.constant 1.000000e+00 : f32
    %67 = vector.broadcast %cst_56 : f32 to vector<1x64xf32>
    %68 = arith.addf %67, %66 : vector<1x64xf32>
    %69 = arith.divf %67, %68 : vector<1x64xf32>
    %70 = vector.extract_strided_slice %69 {offsets = [0, 0], sizes = [1, 32], strides = [1, 1]} : vector<1x64xf32> to vector<1x32xf32>
    %71 = vector.extract_strided_slice %69 {offsets = [0, 32], sizes = [1, 32], strides = [1, 1]} : vector<1x64xf32> to vector<1x32xf32>
    %72 = vector.extract_strided_slice %61 {offsets = [0, 64], sizes = [1, 32], strides = [1, 1]} : vector<1x96xf32> to vector<1x32xf32>
    %73 = vector.extract_strided_slice %60 {offsets = [0, 64], sizes = [1, 32], strides = [1, 1]} : vector<1x96xf32> to vector<1x32xf32>
    %74 = arith.mulf %70, %73 : vector<1x32xf32>
    %75 = arith.addf %72, %74 : vector<1x32xf32>
    %76 = math.tanh %75 : vector<1x32xf32>
    %cst_57 = arith.constant 1.000000e+00 : f32
    %77 = vector.broadcast %cst_57 : f32 to vector<1x32xf32>
    %78 = arith.subf %77, %71 : vector<1x32xf32>
    %79 = arith.mulf %78, %76 : vector<1x32xf32>
    %80 = arith.mulf %71, %57 : vector<1x32xf32>
    %81 = arith.addf %79, %80 : vector<1x32xf32>
    %cst_58 = arith.constant dense<0.000000e+00> : vector<1x96xf32>
    %82 = tpu.matmul %81, %51, %cst_58 {dimension_numbers = #tpu.dot_dimension_numbers<[1], [0], [0], [1], [0, 0, 1, 1], [], []>} : vector<1x32xf32>, vector<32x96xf32>, vector<1x96xf32> -> vector<1x96xf32>
    %83 = arith.addf %82, %54 : vector<1x96xf32>
    %84 = vector.extract_strided_slice %50 {offsets = [1, 0], sizes = [1, 96], strides = [1, 1]} : vector<6x96xf32> to vector<1x96xf32>
    %85 = vector.extract_strided_slice %84 {offsets = [0, 0], sizes = [1, 64], strides = [1, 1]} : vector<1x96xf32> to vector<1x64xf32>
    %86 = vector.extract_strided_slice %83 {offsets = [0, 0], sizes = [1, 64], strides = [1, 1]} : vector<1x96xf32> to vector<1x64xf32>
    %87 = arith.addf %85, %86 : vector<1x64xf32>
    %88 = arith.negf %87 : vector<1x64xf32>
    %89 = math.exp %88 : vector<1x64xf32>
    %cst_59 = arith.constant 1.000000e+00 : f32
    %90 = vector.broadcast %cst_59 : f32 to vector<1x64xf32>
    %91 = arith.addf %90, %89 : vector<1x64xf32>
    %92 = arith.divf %90, %91 : vector<1x64xf32>
    %93 = vector.extract_strided_slice %92 {offsets = [0, 0], sizes = [1, 32], strides = [1, 1]} : vector<1x64xf32> to vector<1x32xf32>
    %94 = vector.extract_strided_slice %92 {offsets = [0, 32], sizes = [1, 32], strides = [1, 1]} : vector<1x64xf32> to vector<1x32xf32>
    %95 = vector.extract_strided_slice %84 {offsets = [0, 64], sizes = [1, 32], strides = [1, 1]} : vector<1x96xf32> to vector<1x32xf32>
    %96 = vector.extract_strided_slice %83 {offsets = [0, 64], sizes = [1, 32], strides = [1, 1]} : vector<1x96xf32> to vector<1x32xf32>
    %97 = arith.mulf %93, %96 : vector<1x32xf32>
    %98 = arith.addf %95, %97 : vector<1x32xf32>
    %99 = math.tanh %98 : vector<1x32xf32>
    %cst_60 = arith.constant 1.000000e+00 : f32
    %100 = vector.broadcast %cst_60 : f32 to vector<1x32xf32>
    %101 = arith.subf %100, %94 : vector<1x32xf32>
    %102 = arith.mulf %101, %99 : vector<1x32xf32>
    %103 = arith.mulf %94, %81 : vector<1x32xf32>
    %104 = arith.addf %102, %103 : vector<1x32xf32>
    %cst_61 = arith.constant dense<0.000000e+00> : vector<1x96xf32>
    %105 = tpu.matmul %81, %52, %cst_61 {dimension_numbers = #tpu.dot_dimension_numbers<[1], [0], [0], [1], [0, 0, 1, 1], [], []>} : vector<1x32xf32>, vector<32x96xf32>, vector<1x96xf32> -> vector<1x96xf32>
    %106 = arith.addf %105, %55 : vector<1x96xf32>
    %cst_62 = arith.constant dense<0.000000e+00> : vector<1x96xf32>
    %107 = tpu.matmul %58, %53, %cst_62 {dimension_numbers = #tpu.dot_dimension_numbers<[1], [0], [0], [1], [0, 0, 1, 1], [], []>} : vector<1x32xf32>, vector<32x96xf32>, vector<1x96xf32> -> vector<1x96xf32>
    %108 = arith.addf %107, %56 : vector<1x96xf32>
    %109 = vector.extract_strided_slice %106 {offsets = [0, 0], sizes = [1, 64], strides = [1, 1]} : vector<1x96xf32> to vector<1x64xf32>
    %110 = vector.extract_strided_slice %108 {offsets = [0, 0], sizes = [1, 64], strides = [1, 1]} : vector<1x96xf32> to vector<1x64xf32>
    %111 = arith.addf %109, %110 : vector<1x64xf32>
    %112 = arith.negf %111 : vector<1x64xf32>
    %113 = math.exp %112 : vector<1x64xf32>
    %cst_63 = arith.constant 1.000000e+00 : f32
    %114 = vector.broadcast %cst_63 : f32 to vector<1x64xf32>
    %115 = arith.addf %114, %113 : vector<1x64xf32>
    %116 = arith.divf %114, %115 : vector<1x64xf32>
    %117 = vector.extract_strided_slice %116 {offsets = [0, 0], sizes = [1, 32], strides = [1, 1]} : vector<1x64xf32> to vector<1x32xf32>
    %118 = vector.extract_strided_slice %116 {offsets = [0, 32], sizes = [1, 32], strides = [1, 1]} : vector<1x64xf32> to vector<1x32xf32>
    %119 = vector.extract_strided_slice %106 {offsets = [0, 64], sizes = [1, 32], strides = [1, 1]} : vector<1x96xf32> to vector<1x32xf32>
    %120 = vector.extract_strided_slice %108 {offsets = [0, 64], sizes = [1, 32], strides = [1, 1]} : vector<1x96xf32> to vector<1x32xf32>
    %121 = arith.mulf %117, %120 : vector<1x32xf32>
    %122 = arith.addf %119, %121 : vector<1x32xf32>
    %123 = math.tanh %122 : vector<1x32xf32>
    %cst_64 = arith.constant 1.000000e+00 : f32
    %124 = vector.broadcast %cst_64 : f32 to vector<1x32xf32>
    %125 = arith.subf %124, %118 : vector<1x32xf32>
    %126 = arith.mulf %125, %123 : vector<1x32xf32>
    %127 = arith.mulf %118, %58 : vector<1x32xf32>
    %128 = arith.addf %126, %127 : vector<1x32xf32>
    %cst_65 = arith.constant dense<0.000000e+00> : vector<1x96xf32>
    %129 = tpu.matmul %104, %51, %cst_65 {dimension_numbers = #tpu.dot_dimension_numbers<[1], [0], [0], [1], [0, 0, 1, 1], [], []>} : vector<1x32xf32>, vector<32x96xf32>, vector<1x96xf32> -> vector<1x96xf32>
    %130 = arith.addf %129, %54 : vector<1x96xf32>
    %131 = vector.extract_strided_slice %50 {offsets = [2, 0], sizes = [1, 96], strides = [1, 1]} : vector<6x96xf32> to vector<1x96xf32>
    %132 = vector.extract_strided_slice %131 {offsets = [0, 0], sizes = [1, 64], strides = [1, 1]} : vector<1x96xf32> to vector<1x64xf32>
    %133 = vector.extract_strided_slice %130 {offsets = [0, 0], sizes = [1, 64], strides = [1, 1]} : vector<1x96xf32> to vector<1x64xf32>
    %134 = arith.addf %132, %133 : vector<1x64xf32>
    %135 = arith.negf %134 : vector<1x64xf32>
    %136 = math.exp %135 : vector<1x64xf32>
    %cst_66 = arith.constant 1.000000e+00 : f32
    %137 = vector.broadcast %cst_66 : f32 to vector<1x64xf32>
    %138 = arith.addf %137, %136 : vector<1x64xf32>
    %139 = arith.divf %137, %138 : vector<1x64xf32>
    %140 = vector.extract_strided_slice %139 {offsets = [0, 0], sizes = [1, 32], strides = [1, 1]} : vector<1x64xf32> to vector<1x32xf32>
    %141 = vector.extract_strided_slice %139 {offsets = [0, 32], sizes = [1, 32], strides = [1, 1]} : vector<1x64xf32> to vector<1x32xf32>
    %142 = vector.extract_strided_slice %131 {offsets = [0, 64], sizes = [1, 32], strides = [1, 1]} : vector<1x96xf32> to vector<1x32xf32>
    %143 = vector.extract_strided_slice %130 {offsets = [0, 64], sizes = [1, 32], strides = [1, 1]} : vector<1x96xf32> to vector<1x32xf32>
    %144 = arith.mulf %140, %143 : vector<1x32xf32>
    %145 = arith.addf %142, %144 : vector<1x32xf32>
    %146 = math.tanh %145 : vector<1x32xf32>
    %cst_67 = arith.constant 1.000000e+00 : f32
    %147 = vector.broadcast %cst_67 : f32 to vector<1x32xf32>
    %148 = arith.subf %147, %141 : vector<1x32xf32>
    %149 = arith.mulf %148, %146 : vector<1x32xf32>
    %150 = arith.mulf %141, %104 : vector<1x32xf32>
    %151 = arith.addf %149, %150 : vector<1x32xf32>
    %cst_68 = arith.constant dense<0.000000e+00> : vector<1x96xf32>
    %152 = tpu.matmul %104, %52, %cst_68 {dimension_numbers = #tpu.dot_dimension_numbers<[1], [0], [0], [1], [0, 0, 1, 1], [], []>} : vector<1x32xf32>, vector<32x96xf32>, vector<1x96xf32> -> vector<1x96xf32>
    %153 = arith.addf %152, %55 : vector<1x96xf32>
    %cst_69 = arith.constant dense<0.000000e+00> : vector<1x96xf32>
    %154 = tpu.matmul %128, %53, %cst_69 {dimension_numbers = #tpu.dot_dimension_numbers<[1], [0], [0], [1], [0, 0, 1, 1], [], []>} : vector<1x32xf32>, vector<32x96xf32>, vector<1x96xf32> -> vector<1x96xf32>
    %155 = arith.addf %154, %56 : vector<1x96xf32>
    %156 = vector.extract_strided_slice %153 {offsets = [0, 0], sizes = [1, 64], strides = [1, 1]} : vector<1x96xf32> to vector<1x64xf32>
    %157 = vector.extract_strided_slice %155 {offsets = [0, 0], sizes = [1, 64], strides = [1, 1]} : vector<1x96xf32> to vector<1x64xf32>
    %158 = arith.addf %156, %157 : vector<1x64xf32>
    %159 = arith.negf %158 : vector<1x64xf32>
    %160 = math.exp %159 : vector<1x64xf32>
    %cst_70 = arith.constant 1.000000e+00 : f32
    %161 = vector.broadcast %cst_70 : f32 to vector<1x64xf32>
    %162 = arith.addf %161, %160 : vector<1x64xf32>
    %163 = arith.divf %161, %162 : vector<1x64xf32>
    %164 = vector.extract_strided_slice %163 {offsets = [0, 0], sizes = [1, 32], strides = [1, 1]} : vector<1x64xf32> to vector<1x32xf32>
    %165 = vector.extract_strided_slice %163 {offsets = [0, 32], sizes = [1, 32], strides = [1, 1]} : vector<1x64xf32> to vector<1x32xf32>
    %166 = vector.extract_strided_slice %153 {offsets = [0, 64], sizes = [1, 32], strides = [1, 1]} : vector<1x96xf32> to vector<1x32xf32>
    %167 = vector.extract_strided_slice %155 {offsets = [0, 64], sizes = [1, 32], strides = [1, 1]} : vector<1x96xf32> to vector<1x32xf32>
    %168 = arith.mulf %164, %167 : vector<1x32xf32>
    %169 = arith.addf %166, %168 : vector<1x32xf32>
    %170 = math.tanh %169 : vector<1x32xf32>
    %cst_71 = arith.constant 1.000000e+00 : f32
    %171 = vector.broadcast %cst_71 : f32 to vector<1x32xf32>
    %172 = arith.subf %171, %165 : vector<1x32xf32>
    %173 = arith.mulf %172, %170 : vector<1x32xf32>
    %174 = arith.mulf %165, %128 : vector<1x32xf32>
    %175 = arith.addf %173, %174 : vector<1x32xf32>
    %cst_72 = arith.constant dense<0.000000e+00> : vector<1x96xf32>
    %176 = tpu.matmul %151, %51, %cst_72 {dimension_numbers = #tpu.dot_dimension_numbers<[1], [0], [0], [1], [0, 0, 1, 1], [], []>} : vector<1x32xf32>, vector<32x96xf32>, vector<1x96xf32> -> vector<1x96xf32>
    %177 = arith.addf %176, %54 : vector<1x96xf32>
    %178 = vector.extract_strided_slice %50 {offsets = [3, 0], sizes = [1, 96], strides = [1, 1]} : vector<6x96xf32> to vector<1x96xf32>
    %179 = vector.extract_strided_slice %178 {offsets = [0, 0], sizes = [1, 64], strides = [1, 1]} : vector<1x96xf32> to vector<1x64xf32>
    %180 = vector.extract_strided_slice %177 {offsets = [0, 0], sizes = [1, 64], strides = [1, 1]} : vector<1x96xf32> to vector<1x64xf32>
    %181 = arith.addf %179, %180 : vector<1x64xf32>
    %182 = arith.negf %181 : vector<1x64xf32>
    %183 = math.exp %182 : vector<1x64xf32>
    %cst_73 = arith.constant 1.000000e+00 : f32
    %184 = vector.broadcast %cst_73 : f32 to vector<1x64xf32>
    %185 = arith.addf %184, %183 : vector<1x64xf32>
    %186 = arith.divf %184, %185 : vector<1x64xf32>
    %187 = vector.extract_strided_slice %186 {offsets = [0, 0], sizes = [1, 32], strides = [1, 1]} : vector<1x64xf32> to vector<1x32xf32>
    %188 = vector.extract_strided_slice %186 {offsets = [0, 32], sizes = [1, 32], strides = [1, 1]} : vector<1x64xf32> to vector<1x32xf32>
    %189 = vector.extract_strided_slice %178 {offsets = [0, 64], sizes = [1, 32], strides = [1, 1]} : vector<1x96xf32> to vector<1x32xf32>
    %190 = vector.extract_strided_slice %177 {offsets = [0, 64], sizes = [1, 32], strides = [1, 1]} : vector<1x96xf32> to vector<1x32xf32>
    %191 = arith.mulf %187, %190 : vector<1x32xf32>
    %192 = arith.addf %189, %191 : vector<1x32xf32>
    %193 = math.tanh %192 : vector<1x32xf32>
    %cst_74 = arith.constant 1.000000e+00 : f32
    %194 = vector.broadcast %cst_74 : f32 to vector<1x32xf32>
    %195 = arith.subf %194, %188 : vector<1x32xf32>
    %196 = arith.mulf %195, %193 : vector<1x32xf32>
    %197 = arith.mulf %188, %151 : vector<1x32xf32>
    %198 = arith.addf %196, %197 : vector<1x32xf32>
    %cst_75 = arith.constant dense<0.000000e+00> : vector<1x96xf32>
    %199 = tpu.matmul %151, %52, %cst_75 {dimension_numbers = #tpu.dot_dimension_numbers<[1], [0], [0], [1], [0, 0, 1, 1], [], []>} : vector<1x32xf32>, vector<32x96xf32>, vector<1x96xf32> -> vector<1x96xf32>
    %200 = arith.addf %199, %55 : vector<1x96xf32>
    %cst_76 = arith.constant dense<0.000000e+00> : vector<1x96xf32>
    %201 = tpu.matmul %175, %53, %cst_76 {dimension_numbers = #tpu.dot_dimension_numbers<[1], [0], [0], [1], [0, 0, 1, 1], [], []>} : vector<1x32xf32>, vector<32x96xf32>, vector<1x96xf32> -> vector<1x96xf32>
    %202 = arith.addf %201, %56 : vector<1x96xf32>
    %203 = vector.extract_strided_slice %200 {offsets = [0, 0], sizes = [1, 64], strides = [1, 1]} : vector<1x96xf32> to vector<1x64xf32>
    %204 = vector.extract_strided_slice %202 {offsets = [0, 0], sizes = [1, 64], strides = [1, 1]} : vector<1x96xf32> to vector<1x64xf32>
    %205 = arith.addf %203, %204 : vector<1x64xf32>
    %206 = arith.negf %205 : vector<1x64xf32>
    %207 = math.exp %206 : vector<1x64xf32>
    %cst_77 = arith.constant 1.000000e+00 : f32
    %208 = vector.broadcast %cst_77 : f32 to vector<1x64xf32>
    %209 = arith.addf %208, %207 : vector<1x64xf32>
    %210 = arith.divf %208, %209 : vector<1x64xf32>
    %211 = vector.extract_strided_slice %210 {offsets = [0, 0], sizes = [1, 32], strides = [1, 1]} : vector<1x64xf32> to vector<1x32xf32>
    %212 = vector.extract_strided_slice %210 {offsets = [0, 32], sizes = [1, 32], strides = [1, 1]} : vector<1x64xf32> to vector<1x32xf32>
    %213 = vector.extract_strided_slice %200 {offsets = [0, 64], sizes = [1, 32], strides = [1, 1]} : vector<1x96xf32> to vector<1x32xf32>
    %214 = vector.extract_strided_slice %202 {offsets = [0, 64], sizes = [1, 32], strides = [1, 1]} : vector<1x96xf32> to vector<1x32xf32>
    %215 = arith.mulf %211, %214 : vector<1x32xf32>
    %216 = arith.addf %213, %215 : vector<1x32xf32>
    %217 = math.tanh %216 : vector<1x32xf32>
    %cst_78 = arith.constant 1.000000e+00 : f32
    %218 = vector.broadcast %cst_78 : f32 to vector<1x32xf32>
    %219 = arith.subf %218, %212 : vector<1x32xf32>
    %220 = arith.mulf %219, %217 : vector<1x32xf32>
    %221 = arith.mulf %212, %175 : vector<1x32xf32>
    %222 = arith.addf %220, %221 : vector<1x32xf32>
    %cst_79 = arith.constant dense<0.000000e+00> : vector<1x96xf32>
    %223 = tpu.matmul %198, %51, %cst_79 {dimension_numbers = #tpu.dot_dimension_numbers<[1], [0], [0], [1], [0, 0, 1, 1], [], []>} : vector<1x32xf32>, vector<32x96xf32>, vector<1x96xf32> -> vector<1x96xf32>
    %224 = arith.addf %223, %54 : vector<1x96xf32>
    %225 = vector.extract_strided_slice %50 {offsets = [4, 0], sizes = [1, 96], strides = [1, 1]} : vector<6x96xf32> to vector<1x96xf32>
    %226 = vector.extract_strided_slice %225 {offsets = [0, 0], sizes = [1, 64], strides = [1, 1]} : vector<1x96xf32> to vector<1x64xf32>
    %227 = vector.extract_strided_slice %224 {offsets = [0, 0], sizes = [1, 64], strides = [1, 1]} : vector<1x96xf32> to vector<1x64xf32>
    %228 = arith.addf %226, %227 : vector<1x64xf32>
    %229 = arith.negf %228 : vector<1x64xf32>
    %230 = math.exp %229 : vector<1x64xf32>
    %cst_80 = arith.constant 1.000000e+00 : f32
    %231 = vector.broadcast %cst_80 : f32 to vector<1x64xf32>
    %232 = arith.addf %231, %230 : vector<1x64xf32>
    %233 = arith.divf %231, %232 : vector<1x64xf32>
    %234 = vector.extract_strided_slice %233 {offsets = [0, 0], sizes = [1, 32], strides = [1, 1]} : vector<1x64xf32> to vector<1x32xf32>
    %235 = vector.extract_strided_slice %233 {offsets = [0, 32], sizes = [1, 32], strides = [1, 1]} : vector<1x64xf32> to vector<1x32xf32>
    %236 = vector.extract_strided_slice %225 {offsets = [0, 64], sizes = [1, 32], strides = [1, 1]} : vector<1x96xf32> to vector<1x32xf32>
    %237 = vector.extract_strided_slice %224 {offsets = [0, 64], sizes = [1, 32], strides = [1, 1]} : vector<1x96xf32> to vector<1x32xf32>
    %238 = arith.mulf %234, %237 : vector<1x32xf32>
    %239 = arith.addf %236, %238 : vector<1x32xf32>
    %240 = math.tanh %239 : vector<1x32xf32>
    %cst_81 = arith.constant 1.000000e+00 : f32
    %241 = vector.broadcast %cst_81 : f32 to vector<1x32xf32>
    %242 = arith.subf %241, %235 : vector<1x32xf32>
    %243 = arith.mulf %242, %240 : vector<1x32xf32>
    %244 = arith.mulf %235, %198 : vector<1x32xf32>
    %245 = arith.addf %243, %244 : vector<1x32xf32>
    %cst_82 = arith.constant dense<0.000000e+00> : vector<1x96xf32>
    %246 = tpu.matmul %198, %52, %cst_82 {dimension_numbers = #tpu.dot_dimension_numbers<[1], [0], [0], [1], [0, 0, 1, 1], [], []>} : vector<1x32xf32>, vector<32x96xf32>, vector<1x96xf32> -> vector<1x96xf32>
    %247 = arith.addf %246, %55 : vector<1x96xf32>
    %cst_83 = arith.constant dense<0.000000e+00> : vector<1x96xf32>
    %248 = tpu.matmul %222, %53, %cst_83 {dimension_numbers = #tpu.dot_dimension_numbers<[1], [0], [0], [1], [0, 0, 1, 1], [], []>} : vector<1x32xf32>, vector<32x96xf32>, vector<1x96xf32> -> vector<1x96xf32>
    %249 = arith.addf %248, %56 : vector<1x96xf32>
    %250 = vector.extract_strided_slice %247 {offsets = [0, 0], sizes = [1, 64], strides = [1, 1]} : vector<1x96xf32> to vector<1x64xf32>
    %251 = vector.extract_strided_slice %249 {offsets = [0, 0], sizes = [1, 64], strides = [1, 1]} : vector<1x96xf32> to vector<1x64xf32>
    %252 = arith.addf %250, %251 : vector<1x64xf32>
    %253 = arith.negf %252 : vector<1x64xf32>
    %254 = math.exp %253 : vector<1x64xf32>
    %cst_84 = arith.constant 1.000000e+00 : f32
    %255 = vector.broadcast %cst_84 : f32 to vector<1x64xf32>
    %256 = arith.addf %255, %254 : vector<1x64xf32>
    %257 = arith.divf %255, %256 : vector<1x64xf32>
    %258 = vector.extract_strided_slice %257 {offsets = [0, 0], sizes = [1, 32], strides = [1, 1]} : vector<1x64xf32> to vector<1x32xf32>
    %259 = vector.extract_strided_slice %257 {offsets = [0, 32], sizes = [1, 32], strides = [1, 1]} : vector<1x64xf32> to vector<1x32xf32>
    %260 = vector.extract_strided_slice %247 {offsets = [0, 64], sizes = [1, 32], strides = [1, 1]} : vector<1x96xf32> to vector<1x32xf32>
    %261 = vector.extract_strided_slice %249 {offsets = [0, 64], sizes = [1, 32], strides = [1, 1]} : vector<1x96xf32> to vector<1x32xf32>
    %262 = arith.mulf %258, %261 : vector<1x32xf32>
    %263 = arith.addf %260, %262 : vector<1x32xf32>
    %264 = math.tanh %263 : vector<1x32xf32>
    %cst_85 = arith.constant 1.000000e+00 : f32
    %265 = vector.broadcast %cst_85 : f32 to vector<1x32xf32>
    %266 = arith.subf %265, %259 : vector<1x32xf32>
    %267 = arith.mulf %266, %264 : vector<1x32xf32>
    %268 = arith.mulf %259, %222 : vector<1x32xf32>
    %269 = arith.addf %267, %268 : vector<1x32xf32>
    %cst_86 = arith.constant dense<0.000000e+00> : vector<1x96xf32>
    %270 = tpu.matmul %245, %51, %cst_86 {dimension_numbers = #tpu.dot_dimension_numbers<[1], [0], [0], [1], [0, 0, 1, 1], [], []>} : vector<1x32xf32>, vector<32x96xf32>, vector<1x96xf32> -> vector<1x96xf32>
    %271 = arith.addf %270, %54 : vector<1x96xf32>
    %272 = vector.extract_strided_slice %50 {offsets = [5, 0], sizes = [1, 96], strides = [1, 1]} : vector<6x96xf32> to vector<1x96xf32>
    %273 = vector.extract_strided_slice %272 {offsets = [0, 0], sizes = [1, 64], strides = [1, 1]} : vector<1x96xf32> to vector<1x64xf32>
    %274 = vector.extract_strided_slice %271 {offsets = [0, 0], sizes = [1, 64], strides = [1, 1]} : vector<1x96xf32> to vector<1x64xf32>
    %275 = arith.addf %273, %274 : vector<1x64xf32>
    %276 = arith.negf %275 : vector<1x64xf32>
    %277 = math.exp %276 : vector<1x64xf32>
    %cst_87 = arith.constant 1.000000e+00 : f32
    %278 = vector.broadcast %cst_87 : f32 to vector<1x64xf32>
    %279 = arith.addf %278, %277 : vector<1x64xf32>
    %280 = arith.divf %278, %279 : vector<1x64xf32>
    %281 = vector.extract_strided_slice %280 {offsets = [0, 0], sizes = [1, 32], strides = [1, 1]} : vector<1x64xf32> to vector<1x32xf32>
    %282 = vector.extract_strided_slice %280 {offsets = [0, 32], sizes = [1, 32], strides = [1, 1]} : vector<1x64xf32> to vector<1x32xf32>
    %283 = vector.extract_strided_slice %272 {offsets = [0, 64], sizes = [1, 32], strides = [1, 1]} : vector<1x96xf32> to vector<1x32xf32>
    %284 = vector.extract_strided_slice %271 {offsets = [0, 64], sizes = [1, 32], strides = [1, 1]} : vector<1x96xf32> to vector<1x32xf32>
    %285 = arith.mulf %281, %284 : vector<1x32xf32>
    %286 = arith.addf %283, %285 : vector<1x32xf32>
    %287 = math.tanh %286 : vector<1x32xf32>
    %cst_88 = arith.constant 1.000000e+00 : f32
    %288 = vector.broadcast %cst_88 : f32 to vector<1x32xf32>
    %289 = arith.subf %288, %282 : vector<1x32xf32>
    %290 = arith.mulf %289, %287 : vector<1x32xf32>
    %291 = arith.mulf %282, %245 : vector<1x32xf32>
    %292 = arith.addf %290, %291 : vector<1x32xf32>
    %cst_89 = arith.constant dense<0.000000e+00> : vector<1x96xf32>
    %293 = tpu.matmul %245, %52, %cst_89 {dimension_numbers = #tpu.dot_dimension_numbers<[1], [0], [0], [1], [0, 0, 1, 1], [], []>} : vector<1x32xf32>, vector<32x96xf32>, vector<1x96xf32> -> vector<1x96xf32>
    %294 = arith.addf %293, %55 : vector<1x96xf32>
    %cst_90 = arith.constant dense<0.000000e+00> : vector<1x96xf32>
    %295 = tpu.matmul %269, %53, %cst_90 {dimension_numbers = #tpu.dot_dimension_numbers<[1], [0], [0], [1], [0, 0, 1, 1], [], []>} : vector<1x32xf32>, vector<32x96xf32>, vector<1x96xf32> -> vector<1x96xf32>
    %296 = arith.addf %295, %56 : vector<1x96xf32>
    %297 = vector.extract_strided_slice %294 {offsets = [0, 0], sizes = [1, 64], strides = [1, 1]} : vector<1x96xf32> to vector<1x64xf32>
    %298 = vector.extract_strided_slice %296 {offsets = [0, 0], sizes = [1, 64], strides = [1, 1]} : vector<1x96xf32> to vector<1x64xf32>
    %299 = arith.addf %297, %298 : vector<1x64xf32>
    %300 = arith.negf %299 : vector<1x64xf32>
    %301 = math.exp %300 : vector<1x64xf32>
    %cst_91 = arith.constant 1.000000e+00 : f32
    %302 = vector.broadcast %cst_91 : f32 to vector<1x64xf32>
    %303 = arith.addf %302, %301 : vector<1x64xf32>
    %304 = arith.divf %302, %303 : vector<1x64xf32>
    %305 = vector.extract_strided_slice %304 {offsets = [0, 0], sizes = [1, 32], strides = [1, 1]} : vector<1x64xf32> to vector<1x32xf32>
    %306 = vector.extract_strided_slice %304 {offsets = [0, 32], sizes = [1, 32], strides = [1, 1]} : vector<1x64xf32> to vector<1x32xf32>
    %307 = vector.extract_strided_slice %294 {offsets = [0, 64], sizes = [1, 32], strides = [1, 1]} : vector<1x96xf32> to vector<1x32xf32>
    %308 = vector.extract_strided_slice %296 {offsets = [0, 64], sizes = [1, 32], strides = [1, 1]} : vector<1x96xf32> to vector<1x32xf32>
    %309 = arith.mulf %305, %308 : vector<1x32xf32>
    %310 = arith.addf %307, %309 : vector<1x32xf32>
    %311 = math.tanh %310 : vector<1x32xf32>
    %cst_92 = arith.constant 1.000000e+00 : f32
    %312 = vector.broadcast %cst_92 : f32 to vector<1x32xf32>
    %313 = arith.subf %312, %306 : vector<1x32xf32>
    %314 = arith.mulf %313, %311 : vector<1x32xf32>
    %315 = arith.mulf %306, %269 : vector<1x32xf32>
    %316 = arith.addf %314, %315 : vector<1x32xf32>
    %cst_93 = arith.constant dense<0.000000e+00> : vector<1x96xf32>
    %317 = tpu.matmul %292, %52, %cst_93 {dimension_numbers = #tpu.dot_dimension_numbers<[1], [0], [0], [1], [0, 0, 1, 1], [], []>} : vector<1x32xf32>, vector<32x96xf32>, vector<1x96xf32> -> vector<1x96xf32>
    %318 = arith.addf %317, %55 : vector<1x96xf32>
    %cst_94 = arith.constant dense<0.000000e+00> : vector<1x96xf32>
    %319 = tpu.matmul %316, %53, %cst_94 {dimension_numbers = #tpu.dot_dimension_numbers<[1], [0], [0], [1], [0, 0, 1, 1], [], []>} : vector<1x32xf32>, vector<32x96xf32>, vector<1x96xf32> -> vector<1x96xf32>
    %320 = arith.addf %319, %56 : vector<1x96xf32>
    %321 = vector.extract_strided_slice %318 {offsets = [0, 0], sizes = [1, 64], strides = [1, 1]} : vector<1x96xf32> to vector<1x64xf32>
    %322 = vector.extract_strided_slice %320 {offsets = [0, 0], sizes = [1, 64], strides = [1, 1]} : vector<1x96xf32> to vector<1x64xf32>
    %323 = arith.addf %321, %322 : vector<1x64xf32>
    %324 = arith.negf %323 : vector<1x64xf32>
    %325 = math.exp %324 : vector<1x64xf32>
    %cst_95 = arith.constant 1.000000e+00 : f32
    %326 = vector.broadcast %cst_95 : f32 to vector<1x64xf32>
    %327 = arith.addf %326, %325 : vector<1x64xf32>
    %328 = arith.divf %326, %327 : vector<1x64xf32>
    %329 = vector.extract_strided_slice %328 {offsets = [0, 0], sizes = [1, 32], strides = [1, 1]} : vector<1x64xf32> to vector<1x32xf32>
    %330 = vector.extract_strided_slice %328 {offsets = [0, 32], sizes = [1, 32], strides = [1, 1]} : vector<1x64xf32> to vector<1x32xf32>
    %331 = vector.extract_strided_slice %318 {offsets = [0, 64], sizes = [1, 32], strides = [1, 1]} : vector<1x96xf32> to vector<1x32xf32>
    %332 = vector.extract_strided_slice %320 {offsets = [0, 64], sizes = [1, 32], strides = [1, 1]} : vector<1x96xf32> to vector<1x32xf32>
    %333 = arith.mulf %329, %332 : vector<1x32xf32>
    %334 = arith.addf %331, %333 : vector<1x32xf32>
    %335 = math.tanh %334 : vector<1x32xf32>
    %cst_96 = arith.constant 1.000000e+00 : f32
    %336 = vector.broadcast %cst_96 : f32 to vector<1x32xf32>
    %337 = arith.subf %336, %330 : vector<1x32xf32>
    %338 = arith.mulf %337, %335 : vector<1x32xf32>
    %339 = arith.mulf %330, %316 : vector<1x32xf32>
    %340 = arith.addf %338, %339 : vector<1x32xf32>
    %341 = tpu.concatenate %128, %175, %222, %269, %316, %340 in 0 : vector<1x32xf32>, vector<1x32xf32>, vector<1x32xf32>, vector<1x32xf32>, vector<1x32xf32>, vector<1x32xf32> -> vector<6x32xf32>
    %c0_97 = arith.constant 0 : index
    %c0_98 = arith.constant 0 : index
    %342 = vector.load %arg10[%c0_97, %c0_98] : memref<6x32xf32, #tpu.memory_space<vmem>>, vector<6x32xf32>
    tpu.vector_store %arg10[%c0_97, %c0_98], %341 {strides = array<i32>} : memref<6x32xf32, #tpu.memory_space<vmem>>, vector<6x32xf32>,
    %343 = tpu.concatenate %292, %340 in 0 : vector<1x32xf32>, vector<1x32xf32> -> vector<2x32xf32>
    %c0_99 = arith.constant 0 : index
    %c0_100 = arith.constant 0 : index
    %344 = vector.load %arg9[%c0_99, %c0_100] : memref<2x32xf32, #tpu.memory_space<vmem>>, vector<2x32xf32>
    tpu.vector_store %arg9[%c0_99, %c0_100], %343 {strides = array<i32>} : memref<2x32xf32, #tpu.memory_space<vmem>>, vector<2x32xf32>,
    %c0_101 = arith.constant 0 : index
    %c0_102 = arith.constant 0 : index
    %345 = vector.load %arg6[%c0_101, %c0_102] : memref<32x35xf32, #tpu.memory_space<vmem>>, vector<32x32xf32>
    %c0_103 = arith.constant 0 : index
    %c32_104 = arith.constant 32 : index
    %346 = vector.load %arg6[%c0_103, %c32_104] : memref<32x35xf32, #tpu.memory_space<vmem>>, vector<32x1xf32>
    %c0_105 = arith.constant 0 : index
    %c33 = arith.constant 33 : index
    %347 = vector.load %arg6[%c0_105, %c33] : memref<32x35xf32, #tpu.memory_space<vmem>>, vector<32x2xf32>
    %c0_106 = arith.constant 0 : index
    %c0_107 = arith.constant 0 : index
    %348 = vector.load %arg7[%c0_106, %c0_107] : memref<1x35xf32, #tpu.memory_space<vmem>>, vector<1x32xf32>
    %c0_108 = arith.constant 0 : index
    %c32_109 = arith.constant 32 : index
    %349 = vector.load %arg7[%c0_108, %c32_109] : memref<1x35xf32, #tpu.memory_space<vmem>>, vector<1x1xf32>
    %c0_110 = arith.constant 0 : index
    %c33_111 = arith.constant 33 : index
    %350 = vector.load %arg7[%c0_110, %c33_111] : memref<1x35xf32, #tpu.memory_space<vmem>>, vector<1x2xf32>
    %cst_112 = arith.constant dense<0.000000e+00> : vector<6x32xf32>
    %351 = tpu.matmul %341, %345, %cst_112 {dimension_numbers = #tpu.dot_dimension_numbers<[1], [0], [0], [1], [0, 0, 1, 1], [], []>} : vector<6x32xf32>, vector<32x32xf32>, vector<6x32xf32> -> vector<6x32xf32>
    %352 = vector.broadcast %348 : vector<1x32xf32> to vector<6x32xf32>
    %353 = arith.addf %351, %352 : vector<6x32xf32>
    %354 = math.tanh %353 : vector<6x32xf32>
    %cst_113 = arith.constant dense<0.000000e+00> : vector<6x1xf32>
    %355 = tpu.matmul %354, %346, %cst_113 {dimension_numbers = #tpu.dot_dimension_numbers<[1], [0], [0], [1], [0, 0, 1, 1], [], []>} : vector<6x32xf32>, vector<32x1xf32>, vector<6x1xf32> -> vector<6x1xf32>
    %356 = vector.broadcast %349 : vector<1x1xf32> to vector<6x1xf32>
    %357 = arith.addf %355, %356 : vector<6x1xf32>
    %cst_114 = arith.constant dense<0xFF800000> : vector<1xf32>
    %358 = vector.multi_reduction <maximumf>, %357, %cst_114 [0] : vector<6x1xf32> to vector<1xf32>
    %359 = vector.shape_cast %358 : vector<1xf32> to vector<1x1xf32>
    %360 = vector.broadcast %359 : vector<1x1xf32> to vector<6x1xf32>
    %361 = arith.subf %357, %360 : vector<6x1xf32>
    %362 = math.exp %361 : vector<6x1xf32>
    %cst_115 = arith.constant dense<0.000000e+00> : vector<1xf32>
    %363 = vector.multi_reduction <add>, %362, %cst_115 [0] : vector<6x1xf32> to vector<1xf32>
    %364 = vector.shape_cast %363 : vector<1xf32> to vector<1x1xf32>
    %365 = tpu.reciprocal %364 {approx = true} : vector<1x1xf32> -> vector<1x1xf32>
    %366 = vector.broadcast %365 : vector<1x1xf32> to vector<6x1xf32>
    %367 = arith.mulf %362, %366 : vector<6x1xf32>
    %368 = vector.broadcast %367 : vector<6x1xf32> to vector<6x32xf32>
    %369 = arith.mulf %341, %368 : vector<6x32xf32>
    %cst_116 = arith.constant dense<0.000000e+00> : vector<32xf32>
    %370 = vector.multi_reduction <add>, %369, %cst_116 [0] : vector<6x32xf32> to vector<32xf32>
    %371 = vector.shape_cast %370 : vector<32xf32> to vector<1x32xf32>
    %cst_117 = arith.constant dense<0.000000e+00> : vector<1x2xf32>
    %372 = tpu.matmul %371, %347, %cst_117 {dimension_numbers = #tpu.dot_dimension_numbers<[1], [0], [0], [1], [0, 0, 1, 1], [], []>} : vector<1x32xf32>, vector<32x2xf32>, vector<1x2xf32> -> vector<1x2xf32>
    %373 = arith.addf %372, %350 : vector<1x2xf32>
    %cst_118 = arith.constant dense<0xFF800000> : vector<1xf32>
    %374 = vector.multi_reduction <maximumf>, %373, %cst_118 [1] : vector<1x2xf32> to vector<1xf32>
    %375 = vector.shape_cast %374 : vector<1xf32> to vector<1x1xf32>
    %376 = vector.broadcast %375 : vector<1x1xf32> to vector<1x2xf32>
    %377 = arith.subf %373, %376 : vector<1x2xf32>
    %378 = math.exp %377 : vector<1x2xf32>
    %cst_119 = arith.constant dense<0.000000e+00> : vector<1xf32>
    %379 = vector.multi_reduction <add>, %378, %cst_119 [1] : vector<1x2xf32> to vector<1xf32>
    %380 = vector.shape_cast %379 : vector<1xf32> to vector<1x1xf32>
    %381 = tpu.reciprocal %380 {approx = true} : vector<1x1xf32> -> vector<1x1xf32>
    %382 = vector.broadcast %381 : vector<1x1xf32> to vector<1x2xf32>
    %383 = arith.mulf %378, %382 : vector<1x2xf32>
    %c0_120 = arith.constant 0 : index
    %c0_121 = arith.constant 0 : index
    %384 = vector.load %arg8[%c0_120, %c0_121] : memref<1x2xf32, #tpu.memory_space<vmem>>, vector<1x2xf32>
    tpu.vector_store %arg8[%c0_120, %c0_121], %383 {strides = array<i32>} : memref<1x2xf32, #tpu.memory_space<vmem>>, vector<1x2xf32>,
    return
  }
}

</mosaic_0001>

<llo_original>
// kernel: reverse.1
$region0: #{reverse.1}
  %s0 = inlined_call_operand.vmem [shape: bf16[256], index: 0, kind: input, shape index: {}]
  %s1 = inlined_call_operand.vmem [shape: bf16[256], index: 1, kind: output, shape index: {}]
  %v2 = vlaneseq
  %v3 = vsub.s32 127, %v2
  %4 = vset.pattern.permute.xlu0 %v3
  $region1: #{reverse.1} parent=0
    #allocation0 [shape = 'u8[8192]{0}', space=vmem, size = 0x2000, scoped, tag = 'operand span for operand 0']
    #allocation1 [shape = 'u8[1024]{0}', space=vmem, size = 0x400, scoped, tag = 'packed  for operand 0']
    #allocation2 [shape = 'u8[4096]{0}', space=vmem, size = 0x1000, scoped, tag = 'operand span for operand 1']
    #allocation3 [shape = 'u8[512]{0}', space=vmem, size = 0x400, scoped, tag = 'packed  for operand 1']
    %s5 = scalar_lea.vmem [#allocation1], 1
    // Predicated region
    $region2: #{reverse.1} parent=1 // pred_check
      _
    $region3: #{reverse.1} parent=1 // pred_check_branch
      %7 = sbr.rel (0) target = $region5
    $region4: #{reverse.1} parent=1 // pred_region
      // Predicated region
      $region6: #{reverse.1} parent=4 // pred_check
        _
      $region7: #{reverse.1} parent=4 // pred_check_branch
        %9 = sbr.rel target = $region9
      $region8: #{reverse.1} parent=4 // pred_region
        // Predicated region
        $region21: #{reverse.1} parent=8 // pred_check
          _
        $region22: #{reverse.1} parent=8 // pred_check_branch
          %25 = sbr.rel (0) target = $region24
        $region23: #{reverse.1} parent=8 // pred_region
          %s27 = ssub.s32 2, 1
          loop: start=0, step=1, limit=1
          $region25: #{reverse.1} parent=23 // loop_pre_header
            _
          $region26: #{reverse.1} parent=23 // loop_header
            %s29 = sphi 0, %s33
            %p30 = scmp.ge.s32.totalorder %s29, 1
            %s34 = sphi %s0, %s0
            %s35 = sphi %s5, %s5
          $region27: #{reverse.1} parent=23 // loop_header_branch
            %32 = sbr.rel (%p30) target = $region31
          $region28: #{reverse.1} parent=23 // loop_body
            %v36 = vld [vmem:[%s34] sm:%s27]
            %37 = vst [vmem:[%s35] sm:%s27] %v36
          $region29: #{reverse.1} parent=23 // loop_footer
            %s33 = sadd.s32 1, %s29
          $region30: #{reverse.1} parent=23 // loop_footer_branch
            %28 = sbr.rel target = $region26
          $region31: #{reverse.1} parent=23 // loop_exit
            _
        $region24: #{reverse.1} parent=8 // pred_fallthru
          _
      $region9: #{reverse.1} parent=4 // pred_fallthru
        _
      // Predicated region
      $region10: #{reverse.1} parent=4 // pred_check
        _
      $region11: #{reverse.1} parent=4 // pred_check_branch
        %11 = sbr.rel (0) target = $region13
      $region12: #{reverse.1} parent=4 // pred_region
        %s13 = ssub.s32 2, 1
        loop: start=0, step=1, limit=1
        $region14: #{reverse.1} parent=12 // loop_pre_header
          _
        $region15: #{reverse.1} parent=12 // loop_header
          %s15 = sphi 0, %s19
          %p16 = scmp.ge.s32.totalorder %s15, 1
          %s20 = sphi %s0, %s0
          %s21 = sphi %s5, %s5
        $region16: #{reverse.1} parent=12 // loop_header_branch
          %18 = sbr.rel (%p16) target = $region20
        $region17: #{reverse.1} parent=12 // loop_body
          %v22 = vld [vmem:[%s20] sm:%s13]
          %23 = vst [vmem:[%s21] sm:%s13] %v22
        $region18: #{reverse.1} parent=12 // loop_footer
          %s19 = sadd.s32 1, %s15
        $region19: #{reverse.1} parent=12 // loop_footer_branch
          %14 = sbr.rel target = $region15
        $region20: #{reverse.1} parent=12 // loop_exit
          _
      $region13: #{reverse.1} parent=4 // pred_fallthru
        _
    $region5: #{reverse.1} parent=1 // pred_fallthru
      _
    %38 = vnop
    %s40 = ssub.s32 4, 1
    %s41 = scalar_lea.vmem [#allocation1], 1
    %s42 = sshrl.u32 %s40, 1
    %s43 = sor.u32 %s40, %s42
    %s44 = sand.u32 %s43, 85
    %s45 = sshrl.u32 %s44, 1
    %s46 = sor.u32 %s44, %s45
    %s47 = sand.u32 51, %s46
    %s48 = sshrl.u32 %s47, 2
    %s49 = sor.u32 %s47, %s48
    %s50 = sand.u32 15, %s49
    %v51 = vld [vmem:[%s41] sm:%s50]
    %v52 = vunpack.c.l.bf16 %v51
    %v53 = vunpack.c.h.bf16 %v51
    %s54 = scalar_lea.vmem [#allocation0], 8
    %55 = vst [vmem:[%s54] sm:%s40] %v52
    %s56 = sshrl.u32 %s40, 1
    %s57 = sor.u32 %s40, %s56
    %s58 = sand.u32 %s57, 85
    %s59 = sshrl.u32 %s58, 1
    %s60 = sor.u32 %s58, %s59
    %s61 = sand.u32 51, %s60
    %s62 = sshrl.u32 %s61, 2
    %s63 = sor.u32 %s61, %s62
    %s64 = sand.u32 15, %s63
    %v65 = vld [vmem:[#allocation1] sm:%s64]
    %v66 = vunpack.c.l.bf16 %v65
    %v67 = vunpack.c.h.bf16 %v65
    %68 = vst [vmem:[#allocation0] sm:%s40] %v66
    %s69 = scalar_lea.vmem [#allocation0], 7
    %v70 = vld [vmem:[%s69] ss:$-1 sm:$0xff]
    %v71 = vrot.slane %v70, 6
    %72 = vperm.xlu0 %4, %v71
    %v73 = vpop.permute.xlu0 %72
    %74 = vst [vmem:[#allocation2] sm:$0xff] %v73
    %s75 = scalar_lea.vmem [#allocation0], 8
    %s76 = scalar_lea.vmem %s75, 7 [#allocation0]
    %v77 = vld [vmem:[%s76] ss:$-1 sm:$0xff]
    %v78 = vrot.slane %v77, 6
    %79 = vperm.xlu0 %4, %v78
    %v80 = vpop.permute.xlu0 %79
    %v81 = vlaneseq
    %v82 = vshrl.u32 %v81, 7
    %vm83 = vcmp.lt.s32.totalorder %v82, 2
    %84 = vst.msk [vmem:[#allocation2] sm:$0xff] %vm83, %v80
    %s86 = ssub.s32 4, 1
    %v87 = vld [vmem:[#allocation2] sm:%s86]
    %v88 = vpack.c.bf16 0.0, %v87
    %s90 = ssub.s32 2, 1
    %91 = vst [vmem:[#allocation3] sm:%s90] %v88
    // Predicated region
    $region32: #{reverse.1} parent=1 // pred_check
      _
    $region33: #{reverse.1} parent=1 // pred_check_branch
      %93 = sbr.rel (0) target = $region35
    $region34: #{reverse.1} parent=1 // pred_region
      // Predicated region
      $region36: #{reverse.1} parent=34 // pred_check
        _
      $region37: #{reverse.1} parent=34 // pred_check_branch
        %95 = sbr.rel target = $region39
      $region38: #{reverse.1} parent=34 // pred_region
        // Predicated region
        $region51: #{reverse.1} parent=38 // pred_check
          _
        $region52: #{reverse.1} parent=38 // pred_check_branch
          %111 = sbr.rel (0) target = $region54
        $region53: #{reverse.1} parent=38 // pred_region
          %s113 = ssub.s32 2, 1
          loop: start=0, step=1, limit=1
          $region55: #{reverse.1} parent=53 // loop_pre_header
            _
          $region56: #{reverse.1} parent=53 // loop_header
            %s115 = sphi 0, %s119
            %p116 = scmp.ge.s32.totalorder %s115, 1
            %s120 = sphi [#allocation3], [#allocation3]
            %s121 = sphi %s1, %s1
          $region57: #{reverse.1} parent=53 // loop_header_branch
            %118 = sbr.rel (%p116) target = $region61
          $region58: #{reverse.1} parent=53 // loop_body
            %v122 = vld [vmem:[%s120] sm:%s113]
            %123 = vst [vmem:[%s121] sm:%s113] %v122
          $region59: #{reverse.1} parent=53 // loop_footer
            %s119 = sadd.s32 1, %s115
          $region60: #{reverse.1} parent=53 // loop_footer_branch
            %114 = sbr.rel target = $region56
          $region61: #{reverse.1} parent=53 // loop_exit
            _
        $region54: #{reverse.1} parent=38 // pred_fallthru
          _
      $region39: #{reverse.1} parent=34 // pred_fallthru
        _
      // Predicated region
      $region40: #{reverse.1} parent=34 // pred_check
        _
      $region41: #{reverse.1} parent=34 // pred_check_branch
        %97 = sbr.rel (0) target = $region43
      $region42: #{reverse.1} parent=34 // pred_region
        %s99 = ssub.s32 2, 1
        loop: start=0, step=1, limit=1
        $region44: #{reverse.1} parent=42 // loop_pre_header
          _
        $region45: #{reverse.1} parent=42 // loop_header
          %s101 = sphi 0, %s105
          %p102 = scmp.ge.s32.totalorder %s101, 1
          %s106 = sphi [#allocation3], [#allocation3]
          %s107 = sphi %s1, %s1
        $region46: #{reverse.1} parent=42 // loop_header_branch
          %104 = sbr.rel (%p102) target = $region50
        $region47: #{reverse.1} parent=42 // loop_body
          %v108 = vld [vmem:[%s106] sm:%s99]
          %109 = vst [vmem:[%s107] sm:%s99] %v108
        $region48: #{reverse.1} parent=42 // loop_footer
          %s105 = sadd.s32 1, %s101
        $region49: #{reverse.1} parent=42 // loop_footer_branch
          %100 = sbr.rel target = $region45
        $region50: #{reverse.1} parent=42 // loop_exit
          _
      $region43: #{reverse.1} parent=34 // pred_fallthru
        _
    $region35: #{reverse.1} parent=1 // pred_fallthru
      _
    %124 = vnop

// kernel: streaming_crnn_forward.1
$region0: #{streaming_crnn_forward.1}
  #allocation0 [shape = 'u32[]', space=smem, size = 0x4, offset = 0x4, fixed_abs, tag = 'smem constant byte address 0x4 - core index']
  #allocation1 [shape = 'u32[72,128]{1,0:T(1,128)}', space=vmem, size = 0x9000, scoped, tag = 'internal scratch']
  #allocation2 [shape = 'f32[28,32]{1,0:T(8,128)}', space=vmem, size = 0x4000, scoped, tag = 'scratch operand']
  %s0 = inlined_call_operand.vmem [shape: bf16[31,512], index: 0, kind: input, shape index: {}]
  %s1 = inlined_call_operand.hbm [shape: bf16[512,512], index: 1, kind: input, shape index: {}]
  %s2 = inlined_call_operand.vmem [shape: f32[512,32], index: 2, kind: input, shape index: {}]
  %s3 = inlined_call_operand.vmem [shape: f32[256,96], index: 3, kind: input, shape index: {}]
  %s4 = inlined_call_operand.vmem [shape: f32[96,96], index: 4, kind: input, shape index: {}]
  %s5 = inlined_call_operand.vmem [shape: f32[4,96], index: 5, kind: input, shape index: {}]
  %s6 = inlined_call_operand.vmem [shape: f32[32,35], index: 6, kind: input, shape index: {}]
  %s7 = inlined_call_operand.vmem [shape: f32[1,35], index: 7, kind: input, shape index: {}]
  %s8 = inlined_call_operand.vmem [shape: f32[1,2], index: 8, kind: output, shape index: {0}]
  %s9 = inlined_call_operand.hbm [shape: f32[2,32], index: 9, kind: output, shape index: {1}]
  %s10 = inlined_call_operand.hbm [shape: f32[6,32], index: 10, kind: output, shape index: {2}]
  %s11 = inlined_call_operand.hbm [shape: f32[2,32], index: 11, kind: output, shape index: {3}]
  %12 = xla_tuple %s8, %s9, %s10, %s11
  %s13 = sld [smem:[#allocation0]]
  $region70: #{streaming_crnn_forward.1} parent=0
    _
  %s15 = ssub.s32 1, %s13
  %s16 = scalar_select 0, %s15, %s13
  $region1: #{streaming_crnn_forward.1} parent=0
    #allocation3 [shape = 'u8[524288]{0}', space=vmem, size = 0x80000, scoped, tag = 'input window, operand 1, single buffered']
    #allocation4 [shape = 's32[1]{0}', space=sflag, size = 0x4, scoped, tag = 'scoped memory for streaming_crnn_forward.1']
    #allocation5 [shape = 's32[1]{0}', space=sflag, size = 0x4, scoped, tag = 'scoped memory for streaming_crnn_forward.1']
    #allocation6 [shape = 'u8[1024]{0}', space=vmem, size = 0x400, scoped, tag = 'output window, operand 1, single buffered']
    #allocation7 [shape = 'u8[4096]{0}', space=vmem, size = 0x1000, scoped, tag = 'output window, operand 2, single buffered']
    #allocation8 [shape = 's32[1]{0}', space=sflag, size = 0x4, scoped, tag = 'scoped memory for streaming_crnn_forward.1']
    #allocation9 [shape = 'u8[1024]{0}', space=vmem, size = 0x400, scoped, tag = 'output window, operand 3, single buffered']
    %17 = vsyncpa [#allocation4], 0
    %18 = vsyncpa [#allocation5], 0
    %19 = vsyncpa [#allocation8], 0
    // Predicated region
    $region2: #{streaming_crnn_forward.1} parent=1 // pred_check
      _
    $region3: #{streaming_crnn_forward.1} parent=1 // pred_check_branch
      %21 = sbr.rel (0) target = $region5
    $region4: #{streaming_crnn_forward.1} parent=1 // pred_region
      _
    $region5: #{streaming_crnn_forward.1} parent=1 // pred_fallthru
      _
    // Predicated region
    $region6: #{streaming_crnn_forward.1} parent=1 // pred_check
      _
    $region7: #{streaming_crnn_forward.1} parent=1 // pred_check_branch
      %23 = sbr.rel (0) target = $region9
    $region8: #{streaming_crnn_forward.1} parent=1 // pred_region
      %25 = vsyncadd [#allocation4], 0
      %s26 = sshll.u32 %s1, 4
      %s27 = int_to_ptr.hbm [resolvable:$true] %s26
      %s28 = sshll.u32 [#allocation3], 4
      %s29 = int_to_ptr.vmem [resolvable:$true] %s28
      %34 = dma.hbm_to_vmem [thread:$0]  %s27, 16384, %s29, [#allocation4], 256, 256, 16
    $region9: #{streaming_crnn_forward.1} parent=1 // pred_fallthru
      _
    // Predicated region
    $region10: #{streaming_crnn_forward.1} parent=1 // pred_check
      _
    $region11: #{streaming_crnn_forward.1} parent=1 // pred_check_branch
      %36 = sbr.rel (0) target = $region13
    $region12: #{streaming_crnn_forward.1} parent=1 // pred_region
      _
    $region13: #{streaming_crnn_forward.1} parent=1 // pred_fallthru
      _
    // Predicated region
    $region14: #{streaming_crnn_forward.1} parent=1 // pred_check
      _
    $region15: #{streaming_crnn_forward.1} parent=1 // pred_check_branch
      %38 = sbr.rel (0) target = $region17
    $region16: #{streaming_crnn_forward.1} parent=1 // pred_region
      _
    $region17: #{streaming_crnn_forward.1} parent=1 // pred_fallthru
      _
    // Predicated region
    $region18: #{streaming_crnn_forward.1} parent=1 // pred_check
      _
    $region19: #{streaming_crnn_forward.1} parent=1 // pred_check_branch
      %40 = sbr.rel (0) target = $region21
    $region20: #{streaming_crnn_forward.1} parent=1 // pred_region
      _
    $region21: #{streaming_crnn_forward.1} parent=1 // pred_fallthru
      _
    // Predicated region
    $region22: #{streaming_crnn_forward.1} parent=1 // pred_check
      _
    $region23: #{streaming_crnn_forward.1} parent=1 // pred_check_branch
      %42 = sbr.rel (0) target = $region25
    $region24: #{streaming_crnn_forward.1} parent=1 // pred_region
      _
    $region25: #{streaming_crnn_forward.1} parent=1 // pred_fallthru
      _
    // Predicated region
    $region26: #{streaming_crnn_forward.1} parent=1 // pred_check
      _
    $region27: #{streaming_crnn_forward.1} parent=1 // pred_check_branch
      %44 = sbr.rel (0) target = $region29
    $region28: #{streaming_crnn_forward.1} parent=1 // pred_region
      _
    $region29: #{streaming_crnn_forward.1} parent=1 // pred_fallthru
      _
    // Predicated region
    $region30: #{streaming_crnn_forward.1} parent=1 // pred_check
      _
    $region31: #{streaming_crnn_forward.1} parent=1 // pred_check_branch
      %46 = sbr.rel (0) target = $region33
    $region32: #{streaming_crnn_forward.1} parent=1 // pred_region
      _
    $region33: #{streaming_crnn_forward.1} parent=1 // pred_fallthru
      _
    // Predicated region
    $region34: #{streaming_crnn_forward.1} parent=1 // pred_check
      _
    $region35: #{streaming_crnn_forward.1} parent=1 // pred_check_branch
      %48 = sbr.rel (0) target = $region37
    $region36: #{streaming_crnn_forward.1} parent=1 // pred_region
      %50 = dma.done [#allocation4], 16384
    $region37: #{streaming_crnn_forward.1} parent=1 // pred_fallthru
      _
    %v51 = vld [vmem:[%s0] sm:$0xff]
    %v52 = vld [vmem:[%s0 + $0x8] sm:$0xff]
    %v53 = vld [vmem:[%s0 + $0x10] sm:$0xff]
    %v54 = vld [vmem:[%s0 + $0x18] sm:$0xff]
    %v55 = vld [vmem:[%s0 + $0x20] sm:$0xff]
    %v56 = vld [vmem:[%s0 + $0x28] sm:$0xff]
    %v57 = vld [vmem:[%s0 + $0x30] sm:$0xff]
    %v58 = vld [vmem:[%s0 + $0x38] sm:$0xff]
    %v59 = vld [vmem:[#allocation3] sm:$0xff]
    %v60 = vld [vmem:[#allocation3 + $0x8] sm:$0xff]
    %v61 = vld [vmem:[#allocation3 + $0x10] sm:$0xff]
    %v62 = vld [vmem:[#allocation3 + $0x18] sm:$0xff]
    %v63 = vld [vmem:[#allocation3 + $0x20] sm:$0xff]
    %v64 = vld [vmem:[#allocation3 + $0x28] sm:$0xff]
    %v65 = vld [vmem:[#allocation3 + $0x30] sm:$0xff]
    %v66 = vld [vmem:[#allocation3 + $0x38] sm:$0xff]
    %v67 = vld [vmem:[#allocation3 + $0x40] sm:$0xff]
    %v68 = vld [vmem:[#allocation3 + $0x48] sm:$0xff]
    %v69 = vld [vmem:[#allocation3 + $0x50] sm:$0xff]
    %v70 = vld [vmem:[#allocation3 + $0x58] sm:$0xff]
    %v71 = vld [vmem:[#allocation3 + $0x60] sm:$0xff]
    %v72 = vld [vmem:[#allocation3 + $0x68] sm:$0xff]
    %v73 = vld [vmem:[#allocation3 + $0x70] sm:$0xff]
    %v74 = vld [vmem:[#allocation3 + $0x78] sm:$0xff]
    %v75 = vld [vmem:[#allocation3 + $0x80] sm:$0xff]
    %v76 = vld [vmem:[#allocation3 + $0x88] sm:$0xff]
    %v77 = vld [vmem:[#allocation3 + $0x90] sm:$0xff]
    %v78 = vld [vmem:[#allocation3 + $0x98] sm:$0xff]
    %v79 = vld [vmem:[#allocation3 + $0xa0] sm:$0xff]
    %v80 = vld [vmem:[#allocation3 + $0xa8] sm:$0xff]
    %v81 = vld [vmem:[#allocation3 + $0xb0] sm:$0xff]
    %v82 = vld [vmem:[#allocation3 + $0xb8] sm:$0xff]
    %v83 = vld [vmem:[#allocation3 + $0xc0] sm:$0xff]
    %v84 = vld [vmem:[#allocation3 + $0xc8] sm:$0xff]
    %v85 = vld [vmem:[#allocation3 + $0xd0] sm:$0xff]
    %v86 = vld [vmem:[#allocation3 + $0xd8] sm:$0xff]
    %v87 = vld [vmem:[#allocation3 + $0xe0] sm:$0xff]
    %v88 = vld [vmem:[#allocation3 + $0xe8] sm:$0xff]
    %v89 = vld [vmem:[#allocation3 + $0xf0] sm:$0xff]
    %v90 = vld [vmem:[#allocation3 + $0xf8] sm:$0xff]
    %v91 = vld [vmem:[#allocation3 + $0x100] sm:$0xff]
    %v92 = vld [vmem:[#allocation3 + $0x108] sm:$0xff]
    %v93 = vld [vmem:[#allocation3 + $0x110] sm:$0xff]
    %v94 = vld [vmem:[#allocation3 + $0x118] sm:$0xff]
    %v95 = vld [vmem:[#allocation3 + $0x120] sm:$0xff]
    %v96 = vld [vmem:[#allocation3 + $0x128] sm:$0xff]
    %v97 = vld [vmem:[#allocation3 + $0x130] sm:$0xff]
    %v98 = vld [vmem:[#allocation3 + $0x138] sm:$0xff]
    %v99 = vld [vmem:[#allocation3 + $0x140] sm:$0xff]
    %v100 = vld [vmem:[#allocation3 + $0x148] sm:$0xff]
    %v101 = vld [vmem:[#allocation3 + $0x150] sm:$0xff]
    %v102 = vld [vmem:[#allocation3 + $0x158] sm:$0xff]
    %v103 = vld [vmem:[#allocation3 + $0x160] sm:$0xff]
    %v104 = vld [vmem:[#allocation3 + $0x168] sm:$0xff]
    %v105 = vld [vmem:[#allocation3 + $0x170] sm:$0xff]
    %v106 = vld [vmem:[#allocation3 + $0x178] sm:$0xff]
    %v107 = vld [vmem:[#allocation3 + $0x180] sm:$0xff]
    %v108 = vld [vmem:[#allocation3 + $0x188] sm:$0xff]
    %v109 = vld [vmem:[#allocation3 + $0x190] sm:$0xff]
    %v110 = vld [vmem:[#allocation3 + $0x198] sm:$0xff]
    %v111 = vld [vmem:[#allocation3 + $0x1a0] sm:$0xff]
    %v112 = vld [vmem:[#allocation3 + $0x1a8] sm:$0xff]
    %v113 = vld [vmem:[#allocation3 + $0x1b0] sm:$0xff]
    %v114 = vld [vmem:[#allocation3 + $0x1b8] sm:$0xff]
    %v115 = vld [vmem:[#allocation3 + $0x1c0] sm:$0xff]
    %v116 = vld [vmem:[#allocation3 + $0x1c8] sm:$0xff]
    %v117 = vld [vmem:[#allocation3 + $0x1d0] sm:$0xff]
    %v118 = vld [vmem:[#allocation3 + $0x1d8] sm:$0xff]
    %v119 = vld [vmem:[#allocation3 + $0x1e0] sm:$0xff]
    %v120 = vld [vmem:[#allocation3 + $0x1e8] sm:$0xff]
    %v121 = vld [vmem:[#allocation3 + $0x1f0] sm:$0xff]
    %v122 = vld [vmem:[#allocation3 + $0x1f8] sm:$0xff]
    %v123 = vld [vmem:[#allocation3 + $0x200] sm:$0xff]
    %v124 = vld [vmem:[#allocation3 + $0x208] sm:$0xff]
    %v125 = vld [vmem:[#allocation3 + $0x210] sm:$0xff]
    %v126 = vld [vmem:[#allocation3 + $0x218] sm:$0xff]
    %v127 = vld [vmem:[#allocation3 + $0x220] sm:$0xff]
    %v128 = vld [vmem:[#allocation3 + $0x228] sm:$0xff]
    %v129 = vld [vmem:[#allocation3 + $0x230] sm:$0xff]
    %v130 = vld [vmem:[#allocation3 + $0x238] sm:$0xff]
    %v131 = vld [vmem:[#allocation3 + $0x240] sm:$0xff]
    %v132 = vld [vmem:[#allocation3 + $0x248] sm:$0xff]
    %v133 = vld [vmem:[#allocation3 + $0x250] sm:$0xff]
    %v134 = vld [vmem:[#allocation3 + $0x258] sm:$0xff]
    %v135 = vld [vmem:[#allocation3 + $0x260] sm:$0xff]
    %v136 = vld [vmem:[#allocation3 + $0x268] sm:$0xff]
    %v137 = vld [vmem:[#allocation3 + $0x270] sm:$0xff]
    %v138 = vld [vmem:[#allocation3 + $0x278] sm:$0xff]
    %v139 = vld [vmem:[#allocation3 + $0x280] sm:$0xff]
    %v140 = vld [vmem:[#allocation3 + $0x288] sm:$0xff]
    %v141 = vld [vmem:[#allocation3 + $0x290] sm:$0xff]
    %v142 = vld [vmem:[#allocation3 + $0x298] sm:$0xff]
    %v143 = vld [vmem:[#allocation3 + $0x2a0] sm:$0xff]
    %v144 = vld [vmem:[#allocation3 + $0x2a8] sm:$0xff]
    %v145 = vld [vmem:[#allocation3 + $0x2b0] sm:$0xff]
    %v146 = vld [vmem:[#allocation3 + $0x2b8] sm:$0xff]
    %v147 = vld [vmem:[#allocation3 + $0x2c0] sm:$0xff]
    %v148 = vld [vmem:[#allocation3 + $0x2c8] sm:$0xff]
    %v149 = vld [vmem:[#allocation3 + $0x2d0] sm:$0xff]
    %v150 = vld [vmem:[#allocation3 + $0x2d8] sm:$0xff]
    %v151 = vld [vmem:[#allocation3 + $0x2e0] sm:$0xff]
    %v152 = vld [vmem:[#allocation3 + $0x2e8] sm:$0xff]
    %v153 = vld [vmem:[#allocation3 + $0x2f0] sm:$0xff]
    %v154 = vld [vmem:[#allocation3 + $0x2f8] sm:$0xff]
    %v155 = vld [vmem:[#allocation3 + $0x300] sm:$0xff]
    %v156 = vld [vmem:[#allocation3 + $0x308] sm:$0xff]
    %v157 = vld [vmem:[#allocation3 + $0x310] sm:$0xff]
    %v158 = vld [vmem:[#allocation3 + $0x318] sm:$0xff]
    %v159 = vld [vmem:[#allocation3 + $0x320] sm:$0xff]
    %v160 = vld [vmem:[#allocation3 + $0x328] sm:$0xff]
    %v161 = vld [vmem:[#allocation3 + $0x330] sm:$0xff]
    %v162 = vld [vmem:[#allocation3 + $0x338] sm:$0xff]
    %v163 = vld [vmem:[#allocation3 + $0x340] sm:$0xff]
    %v164 = vld [vmem:[#allocation3 + $0x348] sm:$0xff]
    %v165 = vld [vmem:[#allocation3 + $0x350] sm:$0xff]
    %v166 = vld [vmem:[#allocation3 + $0x358] sm:$0xff]
    %v167 = vld [vmem:[#allocation3 + $0x360] sm:$0xff]
    %v168 = vld [vmem:[#allocation3 + $0x368] sm:$0xff]
    %v169 = vld [vmem:[#allocation3 + $0x370] sm:$0xff]
    %v170 = vld [vmem:[#allocation3 + $0x378] sm:$0xff]
    %v171 = vld [vmem:[#allocation3 + $0x380] sm:$0xff]
    %v172 = vld [vmem:[#allocation3 + $0x388] sm:$0xff]
    %v173 = vld [vmem:[#allocation3 + $0x390] sm:$0xff]
    %v174 = vld [vmem:[#allocation3 + $0x398] sm:$0xff]
    %v175 = vld [vmem:[#allocation3 + $0x3a0] sm:$0xff]
    %v176 = vld [vmem:[#allocation3 + $0x3a8] sm:$0xff]
    %v177 = vld [vmem:[#allocation3 + $0x3b0] sm:$0xff]
    %v178 = vld [vmem:[#allocation3 + $0x3b8] sm:$0xff]
    %v179 = vld [vmem:[#allocation3 + $0x3c0] sm:$0xff]
    %v180 = vld [vmem:[#allocation3 + $0x3c8] sm:$0xff]
    %v181 = vld [vmem:[#allocation3 + $0x3d0] sm:$0xff]
    %v182 = vld [vmem:[#allocation3 + $0x3d8] sm:$0xff]
    %v183 = vld [vmem:[#allocation3 + $0x3e0] sm:$0xff]
    %v184 = vld [vmem:[#allocation3 + $0x3e8] sm:$0xff]
    %v185 = vld [vmem:[#allocation3 + $0x3f0] sm:$0xff]
    %v186 = vld [vmem:[#allocation3 + $0x3f8] sm:$0xff]
    %v195 = vunpack.c.l.b16 %v51
    %v196 = vunpack.c.h.b16 %v51
    %v197 = vunpack.c.l.b16 %v52
    %v198 = vunpack.c.h.b16 %v52
    %v199 = vunpack.c.l.b16 %v53
    %v200 = vunpack.c.h.b16 %v53
    %v201 = vunpack.c.l.b16 %v54
    %v202 = vunpack.c.h.b16 %v54
    %v203 = vunpack.c.l.b16 %v55
    %v204 = vunpack.c.h.b16 %v55
    %v205 = vunpack.c.l.b16 %v56
    %v206 = vunpack.c.h.b16 %v56
    %v207 = vunpack.c.l.b16 %v57
    %v208 = vunpack.c.h.b16 %v57
    %v209 = vunpack.c.l.b16 %v58
    %v210 = vunpack.c.h.b16 %v58
    %v211 = vpack.c.b16 %v199, %v195
    %v212 = vpack.c.b16 %v200, %v196
    %v213 = vpack.c.b16 %v201, %v197
    %v214 = vpack.c.b16 %v202, %v198
    %v215 = vpack.c.b16 %v207, %v203
    %v216 = vpack.c.b16 %v208, %v204
    %v217 = vpack.c.b16 %v209, %v205
    %v218 = vpack.c.b16 %v210, %v206
    %v355 = vunpack.c.l.b16 %v59
    %v356 = vunpack.c.h.b16 %v59
    %v357 = vunpack.c.l.b16 %v60
    %v358 = vunpack.c.h.b16 %v60
    %v359 = vunpack.c.l.b16 %v61
    %v360 = vunpack.c.h.b16 %v61
    %v361 = vunpack.c.l.b16 %v62
    %v362 = vunpack.c.h.b16 %v62
    %v363 = vunpack.c.l.b16 %v63
    %v364 = vunpack.c.h.b16 %v63
    %v365 = vunpack.c.l.b16 %v64
    %v366 = vunpack.c.h.b16 %v64
    %v367 = vunpack.c.l.b16 %v65
    %v368 = vunpack.c.h.b16 %v65
    %v369 = vunpack.c.l.b16 %v66
    %v370 = vunpack.c.h.b16 %v66
    %v371 = vunpack.c.l.b16 %v67
    %v372 = vunpack.c.h.b16 %v67
    %v373 = vunpack.c.l.b16 %v68
    %v374 = vunpack.c.h.b16 %v68
    %v375 = vunpack.c.l.b16 %v69
    %v376 = vunpack.c.h.b16 %v69
    %v377 = vunpack.c.l.b16 %v70
    %v378 = vunpack.c.h.b16 %v70
    %v379 = vunpack.c.l.b16 %v71
    %v380 = vunpack.c.h.b16 %v71
    %v381 = vunpack.c.l.b16 %v72
    %v382 = vunpack.c.h.b16 %v72
    %v383 = vunpack.c.l.b16 %v73
    %v384 = vunpack.c.h.b16 %v73
    %v385 = vunpack.c.l.b16 %v74
    %v386 = vunpack.c.h.b16 %v74
    %v387 = vunpack.c.l.b16 %v75
    %v388 = vunpack.c.h.b16 %v75
    %v389 = vunpack.c.l.b16 %v76
    %v390 = vunpack.c.h.b16 %v76
    %v391 = vunpack.c.l.b16 %v77
    %v392 = vunpack.c.h.b16 %v77
    %v393 = vunpack.c.l.b16 %v78
    %v394 = vunpack.c.h.b16 %v78
    %v395 = vunpack.c.l.b16 %v79
    %v396 = vunpack.c.h.b16 %v79
    %v397 = vunpack.c.l.b16 %v80
    %v398 = vunpack.c.h.b16 %v80
    %v399 = vunpack.c.l.b16 %v81
    %v400 = vunpack.c.h.b16 %v81
    %v401 = vunpack.c.l.b16 %v82
    %v402 = vunpack.c.h.b16 %v82
    %v403 = vunpack.c.l.b16 %v83
    %v404 = vunpack.c.h.b16 %v83
    %v405 = vunpack.c.l.b16 %v84
    %v406 = vunpack.c.h.b16 %v84
    %v407 = vunpack.c.l.b16 %v85
    %v408 = vunpack.c.h.b16 %v85
    %v409 = vunpack.c.l.b16 %v86
    %v410 = vunpack.c.h.b16 %v86
    %v411 = vunpack.c.l.b16 %v87
    %v412 = vunpack.c.h.b16 %v87
    %v413 = vunpack.c.l.b16 %v88
    %v414 = vunpack.c.h.b16 %v88
    %v415 = vunpack.c.l.b16 %v89
    %v416 = vunpack.c.h.b16 %v89
    %v417 = vunpack.c.l.b16 %v90
    %v418 = vunpack.c.h.b16 %v90
    %v419 = vunpack.c.l.b16 %v91
    %v420 = vunpack.c.h.b16 %v91
    %v421 = vunpack.c.l.b16 %v92
    %v422 = vunpack.c.h.b16 %v92
    %v423 = vunpack.c.l.b16 %v93
    %v424 = vunpack.c.h.b16 %v93
    %v425 = vunpack.c.l.b16 %v94
    %v426 = vunpack.c.h.b16 %v94
    %v427 = vunpack.c.l.b16 %v95
    %v428 = vunpack.c.h.b16 %v95
    %v429 = vunpack.c.l.b16 %v96
    %v430 = vunpack.c.h.b16 %v96
    %v431 = vunpack.c.l.b16 %v97
    %v432 = vunpack.c.h.b16 %v97
    %v433 = vunpack.c.l.b16 %v98
    %v434 = vunpack.c.h.b16 %v98
    %v435 = vunpack.c.l.b16 %v99
    %v436 = vunpack.c.h.b16 %v99
    %v437 = vunpack.c.l.b16 %v100
    %v438 = vunpack.c.h.b16 %v100
    %v439 = vunpack.c.l.b16 %v101
    %v440 = vunpack.c.h.b16 %v101
    %v441 = vunpack.c.l.b16 %v102
    %v442 = vunpack.c.h.b16 %v102
    %v443 = vunpack.c.l.b16 %v103
    %v444 = vunpack.c.h.b16 %v103
    %v445 = vunpack.c.l.b16 %v104
    %v446 = vunpack.c.h.b16 %v104
    %v447 = vunpack.c.l.b16 %v105
    %v448 = vunpack.c.h.b16 %v105
    %v449 = vunpack.c.l.b16 %v106
    %v450 = vunpack.c.h.b16 %v106
    %v451 = vunpack.c.l.b16 %v107
    %v452 = vunpack.c.h.b16 %v107
    %v453 = vunpack.c.l.b16 %v108
    %v454 = vunpack.c.h.b16 %v108
    %v455 = vunpack.c.l.b16 %v109
    %v456 = vunpack.c.h.b16 %v109
    %v457 = vunpack.c.l.b16 %v110
    %v458 = vunpack.c.h.b16 %v110
    %v459 = vunpack.c.l.b16 %v111
    %v460 = vunpack.c.h.b16 %v111
    %v461 = vunpack.c.l.b16 %v112
    %v462 = vunpack.c.h.b16 %v112
    %v463 = vunpack.c.l.b16 %v113
    %v464 = vunpack.c.h.b16 %v113
    %v465 = vunpack.c.l.b16 %v114
    %v466 = vunpack.c.h.b16 %v114
    %v467 = vunpack.c.l.b16 %v115
    %v468 = vunpack.c.h.b16 %v115
    %v469 = vunpack.c.l.b16 %v116
    %v470 = vunpack.c.h.b16 %v116
    %v471 = vunpack.c.l.b16 %v117
    %v472 = vunpack.c.h.b16 %v117
    %v473 = vunpack.c.l.b16 %v118
    %v474 = vunpack.c.h.b16 %v118
    %v475 = vunpack.c.l.b16 %v119
    %v476 = vunpack.c.h.b16 %v119
    %v477 = vunpack.c.l.b16 %v120
    %v478 = vunpack.c.h.b16 %v120
    %v479 = vunpack.c.l.b16 %v121
    %v480 = vunpack.c.h.b16 %v121
    %v481 = vunpack.c.l.b16 %v122
    %v482 = vunpack.c.h.b16 %v122
    %v483 = vunpack.c.l.b16 %v123
    %v484 = vunpack.c.h.b16 %v123
    %v485 = vunpack.c.l.b16 %v124
    %v486 = vunpack.c.h.b16 %v124
    %v487 = vunpack.c.l.b16 %v125
    %v488 = vunpack.c.h.b16 %v125
    %v489 = vunpack.c.l.b16 %v126
    %v490 = vunpack.c.h.b16 %v126
    %v491 = vunpack.c.l.b16 %v127
    %v492 = vunpack.c.h.b16 %v127
    %v493 = vunpack.c.l.b16 %v128
    %v494 = vunpack.c.h.b16 %v128
    %v495 = vunpack.c.l.b16 %v129
    %v496 = vunpack.c.h.b16 %v129
    %v497 = vunpack.c.l.b16 %v130
    %v498 = vunpack.c.h.b16 %v130
    %v499 = vunpack.c.l.b16 %v131
    %v500 = vunpack.c.h.b16 %v131
    %v501 = vunpack.c.l.b16 %v132
    %v502 = vunpack.c.h.b16 %v132
    %v503 = vunpack.c.l.b16 %v133
    %v504 = vunpack.c.h.b16 %v133
    %v505 = vunpack.c.l.b16 %v134
    %v506 = vunpack.c.h.b16 %v134
    %v507 = vunpack.c.l.b16 %v135
    %v508 = vunpack.c.h.b16 %v135
    %v509 = vunpack.c.l.b16 %v136
    %v510 = vunpack.c.h.b16 %v136
    %v511 = vunpack.c.l.b16 %v137
    %v512 = vunpack.c.h.b16 %v137
    %v513 = vunpack.c.l.b16 %v138
    %v514 = vunpack.c.h.b16 %v138
    %v515 = vunpack.c.l.b16 %v139
    %v516 = vunpack.c.h.b16 %v139
    %v517 = vunpack.c.l.b16 %v140
    %v518 = vunpack.c.h.b16 %v140
    %v519 = vunpack.c.l.b16 %v141
    %v520 = vunpack.c.h.b16 %v141
    %v521 = vunpack.c.l.b16 %v142
    %v522 = vunpack.c.h.b16 %v142
    %v523 = vunpack.c.l.b16 %v143
    %v524 = vunpack.c.h.b16 %v143
    %v525 = vunpack.c.l.b16 %v144
    %v526 = vunpack.c.h.b16 %v144
    %v527 = vunpack.c.l.b16 %v145
    %v528 = vunpack.c.h.b16 %v145
    %v529 = vunpack.c.l.b16 %v146
    %v530 = vunpack.c.h.b16 %v146
    %v531 = vunpack.c.l.b16 %v147
    %v532 = vunpack.c.h.b16 %v147
    %v533 = vunpack.c.l.b16 %v148
    %v534 = vunpack.c.h.b16 %v148
    %v535 = vunpack.c.l.b16 %v149
    %v536 = vunpack.c.h.b16 %v149
    %v537 = vunpack.c.l.b16 %v150
    %v538 = vunpack.c.h.b16 %v150
    %v539 = vunpack.c.l.b16 %v151
    %v540 = vunpack.c.h.b16 %v151
    %v541 = vunpack.c.l.b16 %v152
    %v542 = vunpack.c.h.b16 %v152
    %v543 = vunpack.c.l.b16 %v153
    %v544 = vunpack.c.h.b16 %v153
    %v545 = vunpack.c.l.b16 %v154
    %v546 = vunpack.c.h.b16 %v154
    %v547 = vunpack.c.l.b16 %v155
    %v548 = vunpack.c.h.b16 %v155
    %v549 = vunpack.c.l.b16 %v156
    %v550 = vunpack.c.h.b16 %v156
    %v551 = vunpack.c.l.b16 %v157
    %v552 = vunpack.c.h.b16 %v157
    %v553 = vunpack.c.l.b16 %v158
    %v554 = vunpack.c.h.b16 %v158
    %v555 = vunpack.c.l.b16 %v159
    %v556 = vunpack.c.h.b16 %v159
    %v557 = vunpack.c.l.b16 %v160
    %v558 = vunpack.c.h.b16 %v160
    %v559 = vunpack.c.l.b16 %v161
    %v560 = vunpack.c.h.b16 %v161
    %v561 = vunpack.c.l.b16 %v162
    %v562 = vunpack.c.h.b16 %v162
    %v563 = vunpack.c.l.b16 %v163
    %v564 = vunpack.c.h.b16 %v163
    %v565 = vunpack.c.l.b16 %v164
    %v566 = vunpack.c.h.b16 %v164
    %v567 = vunpack.c.l.b16 %v165
    %v568 = vunpack.c.h.b16 %v165
    %v569 = vunpack.c.l.b16 %v166
    %v570 = vunpack.c.h.b16 %v166
    %v571 = vunpack.c.l.b16 %v167
    %v572 = vunpack.c.h.b16 %v167
    %v573 = vunpack.c.l.b16 %v168
    %v574 = vunpack.c.h.b16 %v168
    %v575 = vunpack.c.l.b16 %v169
    %v576 = vunpack.c.h.b16 %v169
    %v577 = vunpack.c.l.b16 %v170
    %v578 = vunpack.c.h.b16 %v170
    %v579 = vunpack.c.l.b16 %v171
    %v580 = vunpack.c.h.b16 %v171
    %v581 = vunpack.c.l.b16 %v172
    %v582 = vunpack.c.h.b16 %v172
    %v583 = vunpack.c.l.b16 %v173
    %v584 = vunpack.c.h.b16 %v173
    %v585 = vunpack.c.l.b16 %v174
    %v586 = vunpack.c.h.b16 %v174
    %v587 = vunpack.c.l.b16 %v175
    %v588 = vunpack.c.h.b16 %v175
    %v589 = vunpack.c.l.b16 %v176
    %v590 = vunpack.c.h.b16 %v176
    %v591 = vunpack.c.l.b16 %v177
    %v592 = vunpack.c.h.b16 %v177
    %v593 = vunpack.c.l.b16 %v178
    %v594 = vunpack.c.h.b16 %v178
    %v595 = vunpack.c.l.b16 %v179
    %v596 = vunpack.c.h.b16 %v179
    %v597 = vunpack.c.l.b16 %v180
    %v598 = vunpack.c.h.b16 %v180
    %v599 = vunpack.c.l.b16 %v181
    %v600 = vunpack.c.h.b16 %v181
    %v601 = vunpack.c.l.b16 %v182
    %v602 = vunpack.c.h.b16 %v182
    %v603 = vunpack.c.l.b16 %v183
    %v604 = vunpack.c.h.b16 %v183
    %v605 = vunpack.c.l.b16 %v184
    %v606 = vunpack.c.h.b16 %v184
    %v607 = vunpack.c.l.b16 %v185
    %v608 = vunpack.c.h.b16 %v185
    %v609 = vunpack.c.l.b16 %v186
    %v610 = vunpack.c.h.b16 %v186
    %v611 = vpack.c.b16 %v359, %v355
    %v612 = vpack.c.b16 %v360, %v356
    %v613 = vpack.c.b16 %v361, %v357
    %v614 = vpack.c.b16 %v362, %v358
    %v615 = vpack.c.b16 %v367, %v363
    %v616 = vpack.c.b16 %v368, %v364
    %v617 = vpack.c.b16 %v369, %v365
    %v618 = vpack.c.b16 %v370, %v366
    %v619 = vpack.c.b16 %v375, %v371
    %v620 = vpack.c.b16 %v376, %v372
    %v621 = vpack.c.b16 %v377, %v373
    %v622 = vpack.c.b16 %v378, %v374
    %v623 = vpack.c.b16 %v383, %v379
    %v624 = vpack.c.b16 %v384, %v380
    %v625 = vpack.c.b16 %v385, %v381
    %v626 = vpack.c.b16 %v386, %v382
    %v627 = vpack.c.b16 %v391, %v387
    %v628 = vpack.c.b16 %v392, %v388
    %v629 = vpack.c.b16 %v393, %v389
    %v630 = vpack.c.b16 %v394, %v390
    %v631 = vpack.c.b16 %v399, %v395
    %v632 = vpack.c.b16 %v400, %v396
    %v633 = vpack.c.b16 %v401, %v397
    %v634 = vpack.c.b16 %v402, %v398
    %v635 = vpack.c.b16 %v407, %v403
    %v636 = vpack.c.b16 %v408, %v404
    %v637 = vpack.c.b16 %v409, %v405
    %v638 = vpack.c.b16 %v410, %v406
    %v639 = vpack.c.b16 %v415, %v411
    %v640 = vpack.c.b16 %v416, %v412
    %v641 = vpack.c.b16 %v417, %v413
    %v642 = vpack.c.b16 %v418, %v414
    %v643 = vpack.c.b16 %v423, %v419
    %v644 = vpack.c.b16 %v424, %v420
    %v645 = vpack.c.b16 %v425, %v421
    %v646 = vpack.c.b16 %v426, %v422
    %v647 = vpack.c.b16 %v431, %v427
    %v648 = vpack.c.b16 %v432, %v428
    %v649 = vpack.c.b16 %v433, %v429
    %v650 = vpack.c.b16 %v434, %v430
    %v651 = vpack.c.b16 %v439, %v435
    %v652 = vpack.c.b16 %v440, %v436
    %v653 = vpack.c.b16 %v441, %v437
    %v654 = vpack.c.b16 %v442, %v438
    %v655 = vpack.c.b16 %v447, %v443
    %v656 = vpack.c.b16 %v448, %v444
    %v657 = vpack.c.b16 %v449, %v445
    %v658 = vpack.c.b16 %v450, %v446
    %v659 = vpack.c.b16 %v455, %v451
    %v660 = vpack.c.b16 %v456, %v452
    %v661 = vpack.c.b16 %v457, %v453
    %v662 = vpack.c.b16 %v458, %v454
    %v663 = vpack.c.b16 %v463, %v459
    %v664 = vpack.c.b16 %v464, %v460
    %v665 = vpack.c.b16 %v465, %v461
    %v666 = vpack.c.b16 %v466, %v462
    %v667 = vpack.c.b16 %v471, %v467
    %v668 = vpack.c.b16 %v472, %v468
    %v669 = vpack.c.b16 %v473, %v469
    %v670 = vpack.c.b16 %v474, %v470
    %v671 = vpack.c.b16 %v479, %v475
    %v672 = vpack.c.b16 %v480, %v476
    %v673 = vpack.c.b16 %v481, %v477
    %v674 = vpack.c.b16 %v482, %v478
    %v675 = vpack.c.b16 %v487, %v483
    %v676 = vpack.c.b16 %v488, %v484
    %v677 = vpack.c.b16 %v489, %v485
    %v678 = vpack.c.b16 %v490, %v486
    %v679 = vpack.c.b16 %v495, %v491
    %v680 = vpack.c.b16 %v496, %v492
    %v681 = vpack.c.b16 %v497, %v493
    %v682 = vpack.c.b16 %v498, %v494
    %v683 = vpack.c.b16 %v503, %v499
    %v684 = vpack.c.b16 %v504, %v500
    %v685 = vpack.c.b16 %v505, %v501
    %v686 = vpack.c.b16 %v506, %v502
    %v687 = vpack.c.b16 %v511, %v507
    %v688 = vpack.c.b16 %v512, %v508
    %v689 = vpack.c.b16 %v513, %v509
    %v690 = vpack.c.b16 %v514, %v510
    %v691 = vpack.c.b16 %v519, %v515
    %v692 = vpack.c.b16 %v520, %v516
    %v693 = vpack.c.b16 %v521, %v517
    %v694 = vpack.c.b16 %v522, %v518
    %v695 = vpack.c.b16 %v527, %v523
    %v696 = vpack.c.b16 %v528, %v524
    %v697 = vpack.c.b16 %v529, %v525
    %v698 = vpack.c.b16 %v530, %v526
    %v699 = vpack.c.b16 %v535, %v531
    %v700 = vpack.c.b16 %v536, %v532
    %v701 = vpack.c.b16 %v537, %v533
    %v702 = vpack.c.b16 %v538, %v534
    %v703 = vpack.c.b16 %v543, %v539
    %v704 = vpack.c.b16 %v544, %v540
    %v705 = vpack.c.b16 %v545, %v541
    %v706 = vpack.c.b16 %v546, %v542
    %v707 = vpack.c.b16 %v551, %v547
    %v708 = vpack.c.b16 %v552, %v548
    %v709 = vpack.c.b16 %v553, %v549
    %v710 = vpack.c.b16 %v554, %v550
    %v711 = vpack.c.b16 %v559, %v555
    %v712 = vpack.c.b16 %v560, %v556
    %v713 = vpack.c.b16 %v561, %v557
    %v714 = vpack.c.b16 %v562, %v558
    %v715 = vpack.c.b16 %v567, %v563
    %v716 = vpack.c.b16 %v568, %v564
    %v717 = vpack.c.b16 %v569, %v565
    %v718 = vpack.c.b16 %v570, %v566
    %v719 = vpack.c.b16 %v575, %v571
    %v720 = vpack.c.b16 %v576, %v572
    %v721 = vpack.c.b16 %v577, %v573
    %v722 = vpack.c.b16 %v578, %v574
    %v723 = vpack.c.b16 %v583, %v579
    %v724 = vpack.c.b16 %v584, %v580
    %v725 = vpack.c.b16 %v585, %v581
    %v726 = vpack.c.b16 %v586, %v582
    %v727 = vpack.c.b16 %v591, %v587
    %v728 = vpack.c.b16 %v592, %v588
    %v729 = vpack.c.b16 %v593, %v589
    %v730 = vpack.c.b16 %v594, %v590
    %v731 = vpack.c.b16 %v599, %v595
    %v732 = vpack.c.b16 %v600, %v596
    %v733 = vpack.c.b16 %v601, %v597
    %v734 = vpack.c.b16 %v602, %v598
    %v735 = vpack.c.b16 %v607, %v603
    %v736 = vpack.c.b16 %v608, %v604
    %v737 = vpack.c.b16 %v609, %v605
    %v738 = vpack.c.b16 %v610, %v606
    %867 = vmatpush.bf16.msra.mxu0 %v639
    %868 = vmatpush.bf16.msra.mxu0 %v635
    %869 = vmatpush.bf16.msra.mxu0 %v631
    %870 = vmatpush.bf16.msra.mxu0 %v627
    %871 = vmatpush.bf16.msra.mxu0 %v623
    %872 = vmatpush.bf16.msra.mxu0 %v619
    %873 = vmatpush.bf16.msra.mxu0 %v615
    %874 = vmatpush.bf16.msra.mxu0 %v611
    %875 = vmatmul.bf16.gmra.mxu0 %v211
    %v876 = vpop.f32.mrf.mxu0
    %v877 = vadd.f32 0.0, %v876
    %v878 = vpop.f32.mrf.mxu0
    %v879 = vadd.f32 0.0, %v878
    %880 = vmatmul.bf16.gmra.mxu0 %v215
    %v881 = vpop.f32.mrf.mxu0
    %v882 = vadd.f32 0.0, %v881
    %v883 = vpop.f32.mrf.mxu0
    %v884 = vadd.f32 0.0, %v883
    %885 = vdwg.mxu0
    %886 = vmatpush.bf16.msra.mxu0 %v671
    %887 = vmatpush.bf16.msra.mxu0 %v667
    %888 = vmatpush.bf16.msra.mxu0 %v663
    %889 = vmatpush.bf16.msra.mxu0 %v659
    %890 = vmatpush.bf16.msra.mxu0 %v655
    %891 = vmatpush.bf16.msra.mxu0 %v651
    %892 = vmatpush.bf16.msra.mxu0 %v647
    %893 = vmatpush.bf16.msra.mxu0 %v643
    %894 = vmatmul.bf16.gmra.mxu0 %v212
    %v895 = vpop.f32.mrf.mxu0
    %v896 = vadd.f32 %v877, %v895
    %v897 = vpop.f32.mrf.mxu0
    %v898 = vadd.f32 %v879, %v897
    %899 = vmatmul.bf16.gmra.mxu0 %v216
    %v900 = vpop.f32.mrf.mxu0
    %v901 = vadd.f32 %v882, %v900
    %v902 = vpop.f32.mrf.mxu0
    %v903 = vadd.f32 %v884, %v902
    %904 = vdwg.mxu0
    %905 = vmatpush.bf16.msra.mxu0 %v703
    %906 = vmatpush.bf16.msra.mxu0 %v699
    %907 = vmatpush.bf16.msra.mxu0 %v695
    %908 = vmatpush.bf16.msra.mxu0 %v691
    %909 = vmatpush.bf16.msra.mxu0 %v687
    %910 = vmatpush.bf16.msra.mxu0 %v683
    %911 = vmatpush.bf16.msra.mxu0 %v679
    %912 = vmatpush.bf16.msra.mxu0 %v675
    %913 = vmatmul.bf16.gmra.mxu0 %v213
    %v914 = vpop.f32.mrf.mxu0
    %v915 = vadd.f32 %v896, %v914
    %v916 = vpop.f32.mrf.mxu0
    %v917 = vadd.f32 %v898, %v916
    %918 = vmatmul.bf16.gmra.mxu0 %v217
    %v919 = vpop.f32.mrf.mxu0
    %v920 = vadd.f32 %v901, %v919
    %v921 = vpop.f32.mrf.mxu0
    %v922 = vadd.f32 %v903, %v921
    %923 = vdwg.mxu0
    %924 = vmatpush.bf16.msra.mxu0 %v735
    %925 = vmatpush.bf16.msra.mxu0 %v731
    %926 = vmatpush.bf16.msra.mxu0 %v727
    %927 = vmatpush.bf16.msra.mxu0 %v723
    %928 = vmatpush.bf16.msra.mxu0 %v719
    %929 = vmatpush.bf16.msra.mxu0 %v715
    %930 = vmatpush.bf16.msra.mxu0 %v711
    %931 = vmatpush.bf16.msra.mxu0 %v707
    %932 = vmatmul.bf16.gmra.mxu0 %v214
    %v933 = vpop.f32.mrf.mxu0
    %v934 = vadd.f32 %v915, %v933
    %v935 = vpop.f32.mrf.mxu0
    %v936 = vadd.f32 %v917, %v935
    %937 = vmatmul.bf16.gmra.mxu0 %v218
    %v938 = vpop.f32.mrf.mxu0
    %v939 = vadd.f32 %v920, %v938
    %v940 = vpop.f32.mrf.mxu0
    %v941 = vadd.f32 %v922, %v940
    %942 = vdwg.mxu0
    %943 = vmatpush.bf16.msra.mxu0 %v640
    %944 = vmatpush.bf16.msra.mxu0 %v636
    %945 = vmatpush.bf16.msra.mxu0 %v632
    %946 = vmatpush.bf16.msra.mxu0 %v628
    %947 = vmatpush.bf16.msra.mxu0 %v624
    %948 = vmatpush.bf16.msra.mxu0 %v620
    %949 = vmatpush.bf16.msra.mxu0 %v616
    %950 = vmatpush.bf16.msra.mxu0 %v612
    %951 = vmatmul.bf16.gmra.mxu0 %v211
    %v952 = vpop.f32.mrf.mxu0
    %v953 = vadd.f32 0.0, %v952
    %v954 = vpop.f32.mrf.mxu0
    %v955 = vadd.f32 0.0, %v954
    %956 = vmatmul.bf16.gmra.mxu0 %v215
    %v957 = vpop.f32.mrf.mxu0
    %v958 = vadd.f32 0.0, %v957
    %v959 = vpop.f32.mrf.mxu0
    %v960 = vadd.f32 0.0, %v959
    %961 = vdwg.mxu0
    %962 = vmatpush.bf16.msra.mxu0 %v672
    %963 = vmatpush.bf16.msra.mxu0 %v668
    %964 = vmatpush.bf16.msra.mxu0 %v664
    %965 = vmatpush.bf16.msra.mxu0 %v660
    %966 = vmatpush.bf16.msra.mxu0 %v656
    %967 = vmatpush.bf16.msra.mxu0 %v652
    %968 = vmatpush.bf16.msra.mxu0 %v648
    %969 = vmatpush.bf16.msra.mxu0 %v644
    %970 = vmatmul.bf16.gmra.mxu0 %v212
    %v971 = vpop.f32.mrf.mxu0
    %v972 = vadd.f32 %v953, %v971
    %v973 = vpop.f32.mrf.mxu0
    %v974 = vadd.f32 %v955, %v973
    %975 = vmatmul.bf16.gmra.mxu0 %v216
    %v976 = vpop.f32.mrf.mxu0
    %v977 = vadd.f32 %v958, %v976
    %v978 = vpop.f32.mrf.mxu0
    %v979 = vadd.f32 %v960, %v978
    %980 = vdwg.mxu0
    %981 = vmatpush.bf16.msra.mxu0 %v704
    %982 = vmatpush.bf16.msra.mxu0 %v700
    %983 = vmatpush.bf16.msra.mxu0 %v696
    %984 = vmatpush.bf16.msra.mxu0 %v692
    %985 = vmatpush.bf16.msra.mxu0 %v688
    %986 = vmatpush.bf16.msra.mxu0 %v684
    %987 = vmatpush.bf16.msra.mxu0 %v680
    %988 = vmatpush.bf16.msra.mxu0 %v676
    %989 = vmatmul.bf16.gmra.mxu0 %v213
    %v990 = vpop.f32.mrf.mxu0
    %v991 = vadd.f32 %v972, %v990
    %v992 = vpop.f32.mrf.mxu0
    %v993 = vadd.f32 %v974, %v992
    %994 = vmatmul.bf16.gmra.mxu0 %v217
    %v995 = vpop.f32.mrf.mxu0
    %v996 = vadd.f32 %v977, %v995
    %v997 = vpop.f32.mrf.mxu0
    %v998 = vadd.f32 %v979, %v997
    %999 = vdwg.mxu0
    %1000 = vmatpush.bf16.msra.mxu0 %v736
    %1001 = vmatpush.bf16.msra.mxu0 %v732
    %1002 = vmatpush.bf16.msra.mxu0 %v728
    %1003 = vmatpush.bf16.msra.mxu0 %v724
    %1004 = vmatpush.bf16.msra.mxu0 %v720
    %1005 = vmatpush.bf16.msra.mxu0 %v716
    %1006 = vmatpush.bf16.msra.mxu0 %v712
    %1007 = vmatpush.bf16.msra.mxu0 %v708
    %1008 = vmatmul.bf16.gmra.mxu0 %v214
    %v1009 = vpop.f32.mrf.mxu0
    %v1010 = vadd.f32 %v991, %v1009
    %v1011 = vpop.f32.mrf.mxu0
    %v1012 = vadd.f32 %v993, %v1011
    %1013 = vmatmul.bf16.gmra.mxu0 %v218
    %v1014 = vpop.f32.mrf.mxu0
    %v1015 = vadd.f32 %v996, %v1014
    %v1016 = vpop.f32.mrf.mxu0
    %v1017 = vadd.f32 %v998, %v1016
    %1018 = vdwg.mxu0
    %1019 = vmatpush.bf16.msra.mxu0 %v641
    %1020 = vmatpush.bf16.msra.mxu0 %v637
    %1021 = vmatpush.bf16.msra.mxu0 %v633
    %1022 = vmatpush.bf16.msra.mxu0 %v629
    %1023 = vmatpush.bf16.msra.mxu0 %v625
    %1024 = vmatpush.bf16.msra.mxu0 %v621
    %1025 = vmatpush.bf16.msra.mxu0 %v617
    %1026 = vmatpush.bf16.msra.mxu0 %v613
    %1027 = vmatmul.bf16.gmra.mxu0 %v211
    %v1028 = vpop.f32.mrf.mxu0
    %v1029 = vadd.f32 0.0, %v1028
    %v1030 = vpop.f32.mrf.mxu0
    %v1031 = vadd.f32 0.0, %v1030
    %1032 = vmatmul.bf16.gmra.mxu0 %v215
    %v1033 = vpop.f32.mrf.mxu0
    %v1034 = vadd.f32 0.0, %v1033
    %v1035 = vpop.f32.mrf.mxu0
    %v1036 = vadd.f32 0.0, %v1035
    %1037 = vdwg.mxu0
    %1038 = vmatpush.bf16.msra.mxu0 %v673
    %1039 = vmatpush.bf16.msra.mxu0 %v669
    %1040 = vmatpush.bf16.msra.mxu0 %v665
    %1041 = vmatpush.bf16.msra.mxu0 %v661
    %1042 = vmatpush.bf16.msra.mxu0 %v657
    %1043 = vmatpush.bf16.msra.mxu0 %v653
    %1044 = vmatpush.bf16.msra.mxu0 %v649
    %1045 = vmatpush.bf16.msra.mxu0 %v645
    %1046 = vmatmul.bf16.gmra.mxu0 %v212
    %v1047 = vpop.f32.mrf.mxu0
    %v1048 = vadd.f32 %v1029, %v1047
    %v1049 = vpop.f32.mrf.mxu0
    %v1050 = vadd.f32 %v1031, %v1049
    %1051 = vmatmul.bf16.gmra.mxu0 %v216
    %v1052 = vpop.f32.mrf.mxu0
    %v1053 = vadd.f32 %v1034, %v1052
    %v1054 = vpop.f32.mrf.mxu0
    %v1055 = vadd.f32 %v1036, %v1054
    %1056 = vdwg.mxu0
    %1057 = vmatpush.bf16.msra.mxu0 %v705
    %1058 = vmatpush.bf16.msra.mxu0 %v701
    %1059 = vmatpush.bf16.msra.mxu0 %v697
    %1060 = vmatpush.bf16.msra.mxu0 %v693
    %1061 = vmatpush.bf16.msra.mxu0 %v689
    %1062 = vmatpush.bf16.msra.mxu0 %v685
    %1063 = vmatpush.bf16.msra.mxu0 %v681
    %1064 = vmatpush.bf16.msra.mxu0 %v677
    %1065 = vmatmul.bf16.gmra.mxu0 %v213
    %v1066 = vpop.f32.mrf.mxu0
    %v1067 = vadd.f32 %v1048, %v1066
    %v1068 = vpop.f32.mrf.mxu0
    %v1069 = vadd.f32 %v1050, %v1068
    %1070 = vmatmul.bf16.gmra.mxu0 %v217
    %v1071 = vpop.f32.mrf.mxu0
    %v1072 = vadd.f32 %v1053, %v1071
    %v1073 = vpop.f32.mrf.mxu0
    %v1074 = vadd.f32 %v1055, %v1073
    %1075 = vdwg.mxu0
    %1076 = vmatpush.bf16.msra.mxu0 %v737
    %1077 = vmatpush.bf16.msra.mxu0 %v733
    %1078 = vmatpush.bf16.msra.mxu0 %v729
    %1079 = vmatpush.bf16.msra.mxu0 %v725
    %1080 = vmatpush.bf16.msra.mxu0 %v721
    %1081 = vmatpush.bf16.msra.mxu0 %v717
    %1082 = vmatpush.bf16.msra.mxu0 %v713
    %1083 = vmatpush.bf16.msra.mxu0 %v709
    %1084 = vmatmul.bf16.gmra.mxu0 %v214
    %v1085 = vpop.f32.mrf.mxu0
    %v1086 = vadd.f32 %v1067, %v1085
    %v1087 = vpop.f32.mrf.mxu0
    %v1088 = vadd.f32 %v1069, %v1087
    %1089 = vmatmul.bf16.gmra.mxu0 %v218
    %v1090 = vpop.f32.mrf.mxu0
    %v1091 = vadd.f32 %v1072, %v1090
    %v1092 = vpop.f32.mrf.mxu0
    %v1093 = vadd.f32 %v1074, %v1092
    %1094 = vdwg.mxu0
    %1095 = vmatpush.bf16.msra.mxu0 %v642
    %1096 = vmatpush.bf16.msra.mxu0 %v638
    %1097 = vmatpush.bf16.msra.mxu0 %v634
    %1098 = vmatpush.bf16.msra.mxu0 %v630
    %1099 = vmatpush.bf16.msra.mxu0 %v626
    %1100 = vmatpush.bf16.msra.mxu0 %v622
    %1101 = vmatpush.bf16.msra.mxu0 %v618
    %1102 = vmatpush.bf16.msra.mxu0 %v614
    %1103 = vmatmul.bf16.gmra.mxu0 %v211
    %v1104 = vpop.f32.mrf.mxu0
    %v1105 = vadd.f32 0.0, %v1104
    %v1106 = vpop.f32.mrf.mxu0
    %v1107 = vadd.f32 0.0, %v1106
    %1108 = vmatmul.bf16.gmra.mxu0 %v215
    %v1109 = vpop.f32.mrf.mxu0
    %v1110 = vadd.f32 0.0, %v1109
    %v1111 = vpop.f32.mrf.mxu0
    %v1112 = vadd.f32 0.0, %v1111
    %1113 = vdwg.mxu0
    %1114 = vmatpush.bf16.msra.mxu0 %v674
    %1115 = vmatpush.bf16.msra.mxu0 %v670
    %1116 = vmatpush.bf16.msra.mxu0 %v666
    %1117 = vmatpush.bf16.msra.mxu0 %v662
    %1118 = vmatpush.bf16.msra.mxu0 %v658
    %1119 = vmatpush.bf16.msra.mxu0 %v654
    %1120 = vmatpush.bf16.msra.mxu0 %v650
    %1121 = vmatpush.bf16.msra.mxu0 %v646
    %1122 = vmatmul.bf16.gmra.mxu0 %v212
    %v1123 = vpop.f32.mrf.mxu0
    %v1124 = vadd.f32 %v1105, %v1123
    %v1125 = vpop.f32.mrf.mxu0
    %v1126 = vadd.f32 %v1107, %v1125
    %1127 = vmatmul.bf16.gmra.mxu0 %v216
    %v1128 = vpop.f32.mrf.mxu0
    %v1129 = vadd.f32 %v1110, %v1128
    %v1130 = vpop.f32.mrf.mxu0
    %v1131 = vadd.f32 %v1112, %v1130
    %1132 = vdwg.mxu0
    %1133 = vmatpush.bf16.msra.mxu0 %v706
    %1134 = vmatpush.bf16.msra.mxu0 %v702
    %1135 = vmatpush.bf16.msra.mxu0 %v698
    %1136 = vmatpush.bf16.msra.mxu0 %v694
    %1137 = vmatpush.bf16.msra.mxu0 %v690
    %1138 = vmatpush.bf16.msra.mxu0 %v686
    %1139 = vmatpush.bf16.msra.mxu0 %v682
    %1140 = vmatpush.bf16.msra.mxu0 %v678
    %1141 = vmatmul.bf16.gmra.mxu0 %v213
    %v1142 = vpop.f32.mrf.mxu0
    %v1143 = vadd.f32 %v1124, %v1142
    %v1144 = vpop.f32.mrf.mxu0
    %v1145 = vadd.f32 %v1126, %v1144
    %1146 = vmatmul.bf16.gmra.mxu0 %v217
    %v1147 = vpop.f32.mrf.mxu0
    %v1148 = vadd.f32 %v1129, %v1147
    %v1149 = vpop.f32.mrf.mxu0
    %v1150 = vadd.f32 %v1131, %v1149
    %1151 = vdwg.mxu0
    %1152 = vmatpush.bf16.msra.mxu0 %v738
    %1153 = vmatpush.bf16.msra.mxu0 %v734
    %1154 = vmatpush.bf16.msra.mxu0 %v730
    %1155 = vmatpush.bf16.msra.mxu0 %v726
    %1156 = vmatpush.bf16.msra.mxu0 %v722
    %1157 = vmatpush.bf16.msra.mxu0 %v718
    %1158 = vmatpush.bf16.msra.mxu0 %v714
    %1159 = vmatpush.bf16.msra.mxu0 %v710
    %1160 = vmatmul.bf16.gmra.mxu0 %v214
    %v1161 = vpop.f32.mrf.mxu0
    %v1162 = vadd.f32 %v1143, %v1161
    %v1163 = vpop.f32.mrf.mxu0
    %v1164 = vadd.f32 %v1145, %v1163
    %1165 = vmatmul.bf16.gmra.mxu0 %v218
    %v1166 = vpop.f32.mrf.mxu0
    %v1167 = vadd.f32 %v1148, %v1166
    %v1168 = vpop.f32.mrf.mxu0
    %v1169 = vadd.f32 %v1150, %v1168
    %1170 = vdwg.mxu0
    %v1171 = vmul.f32 %v934, %v934
    %v1172 = vmul.f32 %v1010, %v1010
    %v1173 = vmul.f32 %v1086, %v1086
    %v1174 = vmul.f32 %v1162, %v1162
    %v1175 = vmul.f32 %v936, %v936
    %v1176 = vmul.f32 %v1012, %v1012
    %v1177 = vmul.f32 %v1088, %v1088
    %v1178 = vmul.f32 %v1164, %v1164
    %v1179 = vmul.f32 %v939, %v939
    %v1180 = vmul.f32 %v1015, %v1015
    %v1181 = vmul.f32 %v1091, %v1091
    %v1182 = vmul.f32 %v1167, %v1167
    %v1183 = vmul.f32 %v941, %v941
    %v1184 = vmul.f32 %v1017, %v1017
    %v1185 = vmul.f32 %v1093, %v1093
    %v1186 = vmul.f32 %v1169, %v1169
    %v1187 = vld [vmem:[%s2] sm:$0xff]
    %v1188 = vld [vmem:[%s2 + $0x8] sm:$0xff]
    %v1189 = vld [vmem:[%s2 + $0x10] sm:$0xff]
    %v1190 = vld [vmem:[%s2 + $0x18] sm:$0xff]
    %v1191 = vld [vmem:[%s2 + $0x20] sm:$0xff]
    %v1192 = vld [vmem:[%s2 + $0x28] sm:$0xff]
    %v1193 = vld [vmem:[%s2 + $0x30] sm:$0xff]
    %v1194 = vld [vmem:[%s2 + $0x38] sm:$0xff]
    %v1195 = vld [vmem:[%s2 + $0x40] sm:$0xff]
    %v1196 = vld [vmem:[%s2 + $0x48] sm:$0xff]
    %v1197 = vld [vmem:[%s2 + $0x50] sm:$0xff]
    %v1198 = vld [vmem:[%s2 + $0x58] sm:$0xff]
    %v1199 = vld [vmem:[%s2 + $0x60] sm:$0xff]
    %v1200 = vld [vmem:[%s2 + $0x68] sm:$0xff]
    %v1201 = vld [vmem:[%s2 + $0x70] sm:$0xff]
    %v1202 = vld [vmem:[%s2 + $0x78] sm:$0xff]
    %v1203 = vld [vmem:[%s2 + $0x80] sm:$0xff]
    %v1204 = vld [vmem:[%s2 + $0x88] sm:$0xff]
    %v1205 = vld [vmem:[%s2 + $0x90] sm:$0xff]
    %v1206 = vld [vmem:[%s2 + $0x98] sm:$0xff]
    %v1207 = vld [vmem:[%s2 + $0xa0] sm:$0xff]
    %v1208 = vld [vmem:[%s2 + $0xa8] sm:$0xff]
    %v1209 = vld [vmem:[%s2 + $0xb0] sm:$0xff]
    %v1210 = vld [vmem:[%s2 + $0xb8] sm:$0xff]
    %v1211 = vld [vmem:[%s2 + $0xc0] sm:$0xff]
    %v1212 = vld [vmem:[%s2 + $0xc8] sm:$0xff]
    %v1213 = vld [vmem:[%s2 + $0xd0] sm:$0xff]
    %v1214 = vld [vmem:[%s2 + $0xd8] sm:$0xff]
    %v1215 = vld [vmem:[%s2 + $0xe0] sm:$0xff]
    %v1216 = vld [vmem:[%s2 + $0xe8] sm:$0xff]
    %v1217 = vld [vmem:[%s2 + $0xf0] sm:$0xff]
    %v1218 = vld [vmem:[%s2 + $0xf8] sm:$0xff]
    %v1219 = vld [vmem:[%s2 + $0x100] sm:$0xff]
    %v1220 = vld [vmem:[%s2 + $0x108] sm:$0xff]
    %v1221 = vld [vmem:[%s2 + $0x110] sm:$0xff]
    %v1222 = vld [vmem:[%s2 + $0x118] sm:$0xff]
    %v1223 = vld [vmem:[%s2 + $0x120] sm:$0xff]
    %v1224 = vld [vmem:[%s2 + $0x128] sm:$0xff]
    %v1225 = vld [vmem:[%s2 + $0x130] sm:$0xff]
    %v1226 = vld [vmem:[%s2 + $0x138] sm:$0xff]
    %v1227 = vld [vmem:[%s2 + $0x140] sm:$0xff]
    %v1228 = vld [vmem:[%s2 + $0x148] sm:$0xff]
    %v1229 = vld [vmem:[%s2 + $0x150] sm:$0xff]
    %v1230 = vld [vmem:[%s2 + $0x158] sm:$0xff]
    %v1231 = vld [vmem:[%s2 + $0x160] sm:$0xff]
    %v1232 = vld [vmem:[%s2 + $0x168] sm:$0xff]
    %v1233 = vld [vmem:[%s2 + $0x170] sm:$0xff]
    %v1234 = vld [vmem:[%s2 + $0x178] sm:$0xff]
    %v1235 = vld [vmem:[%s2 + $0x180] sm:$0xff]
    %v1236 = vld [vmem:[%s2 + $0x188] sm:$0xff]
    %v1237 = vld [vmem:[%s2 + $0x190] sm:$0xff]
    %v1238 = vld [vmem:[%s2 + $0x198] sm:$0xff]
    %v1239 = vld [vmem:[%s2 + $0x1a0] sm:$0xff]
    %v1240 = vld [vmem:[%s2 + $0x1a8] sm:$0xff]
    %v1241 = vld [vmem:[%s2 + $0x1b0] sm:$0xff]
    %v1242 = vld [vmem:[%s2 + $0x1b8] sm:$0xff]
    %v1243 = vld [vmem:[%s2 + $0x1c0] sm:$0xff]
    %v1244 = vld [vmem:[%s2 + $0x1c8] sm:$0xff]
    %v1245 = vld [vmem:[%s2 + $0x1d0] sm:$0xff]
    %v1246 = vld [vmem:[%s2 + $0x1d8] sm:$0xff]
    %v1247 = vld [vmem:[%s2 + $0x1e0] sm:$0xff]
    %v1248 = vld [vmem:[%s2 + $0x1e8] sm:$0xff]
    %v1249 = vld [vmem:[%s2 + $0x1f0] sm:$0xff]
    %v1250 = vld [vmem:[%s2 + $0x1f8] sm:$0xff]
    %1251 = vmatpush.msra.mxu0 %v1202
    %1252 = vmatpush.msra.mxu0 %v1201
    %1253 = vmatpush.msra.mxu0 %v1200
    %1254 = vmatpush.msra.mxu0 %v1199
    %1255 = vmatpush.msra.mxu0 %v1198
    %1256 = vmatpush.msra.mxu0 %v1197
    %1257 = vmatpush.msra.mxu0 %v1196
    %1258 = vmatpush.msra.mxu0 %v1195
    %1259 = vmatpush.msra.mxu0 %v1194
    %1260 = vmatpush.msra.mxu0 %v1193
    %1261 = vmatpush.msra.mxu0 %v1192
    %1262 = vmatpush.msra.mxu0 %v1191
    %1263 = vmatpush.msra.mxu0 %v1190
    %1264 = vmatpush.msra.mxu0 %v1189
    %1265 = vmatpush.msra.mxu0 %v1188
    %1266 = vmatpush.msra.mxu0 %v1187
    %1267 = vmatmul.f32.gmra.mxu0 %v1171
    %v1268 = vpop.f32.mrf.mxu0
    %v1269 = vadd.f32 0.0, %v1268
    %1270 = vmatmul.f32.gmra.mxu0 %v1175
    %v1271 = vpop.f32.mrf.mxu0
    %v1272 = vadd.f32 0.0, %v1271
    %1273 = vmatmul.f32.gmra.mxu0 %v1179
    %v1274 = vpop.f32.mrf.mxu0
    %v1275 = vadd.f32 0.0, %v1274
    %1276 = vmatmul.f32.gmra.mxu0 %v1183
    %v1277 = vpop.f32.mrf.mxu0
    %v1278 = vadd.f32 0.0, %v1277
    %1279 = vdwg.mxu0
    %1280 = vmatpush.msra.mxu0 %v1218
    %1281 = vmatpush.msra.mxu0 %v1217
    %1282 = vmatpush.msra.mxu0 %v1216
    %1283 = vmatpush.msra.mxu0 %v1215
    %1284 = vmatpush.msra.mxu0 %v1214
    %1285 = vmatpush.msra.mxu0 %v1213
    %1286 = vmatpush.msra.mxu0 %v1212
    %1287 = vmatpush.msra.mxu0 %v1211
    %1288 = vmatpush.msra.mxu0 %v1210
    %1289 = vmatpush.msra.mxu0 %v1209
    %1290 = vmatpush.msra.mxu0 %v1208
    %1291 = vmatpush.msra.mxu0 %v1207
    %1292 = vmatpush.msra.mxu0 %v1206
    %1293 = vmatpush.msra.mxu0 %v1205
    %1294 = vmatpush.msra.mxu0 %v1204
    %1295 = vmatpush.msra.mxu0 %v1203
    %1296 = vmatmul.f32.gmra.mxu0 %v1172
    %v1297 = vpop.f32.mrf.mxu0
    %v1298 = vadd.f32 %v1269, %v1297
    %1299 = vmatmul.f32.gmra.mxu0 %v1176
    %v1300 = vpop.f32.mrf.mxu0
    %v1301 = vadd.f32 %v1272, %v1300
    %1302 = vmatmul.f32.gmra.mxu0 %v1180
    %v1303 = vpop.f32.mrf.mxu0
    %v1304 = vadd.f32 %v1275, %v1303
    %1305 = vmatmul.f32.gmra.mxu0 %v1184
    %v1306 = vpop.f32.mrf.mxu0
    %v1307 = vadd.f32 %v1278, %v1306
    %1308 = vdwg.mxu0
    %1309 = vmatpush.msra.mxu0 %v1234
    %1310 = vmatpush.msra.mxu0 %v1233
    %1311 = vmatpush.msra.mxu0 %v1232
    %1312 = vmatpush.msra.mxu0 %v1231
    %1313 = vmatpush.msra.mxu0 %v1230
    %1314 = vmatpush.msra.mxu0 %v1229
    %1315 = vmatpush.msra.mxu0 %v1228
    %1316 = vmatpush.msra.mxu0 %v1227
    %1317 = vmatpush.msra.mxu0 %v1226
    %1318 = vmatpush.msra.mxu0 %v1225
    %1319 = vmatpush.msra.mxu0 %v1224
    %1320 = vmatpush.msra.mxu0 %v1223
    %1321 = vmatpush.msra.mxu0 %v1222
    %1322 = vmatpush.msra.mxu0 %v1221
    %1323 = vmatpush.msra.mxu0 %v1220
    %1324 = vmatpush.msra.mxu0 %v1219
    %1325 = vmatmul.f32.gmra.mxu0 %v1173
    %v1326 = vpop.f32.mrf.mxu0
    %v1327 = vadd.f32 %v1298, %v1326
    %1328 = vmatmul.f32.gmra.mxu0 %v1177
    %v1329 = vpop.f32.mrf.mxu0
    %v1330 = vadd.f32 %v1301, %v1329
    %1331 = vmatmul.f32.gmra.mxu0 %v1181
    %v1332 = vpop.f32.mrf.mxu0
    %v1333 = vadd.f32 %v1304, %v1332
    %1334 = vmatmul.f32.gmra.mxu0 %v1185
    %v1335 = vpop.f32.mrf.mxu0
    %v1336 = vadd.f32 %v1307, %v1335
    %1337 = vdwg.mxu0
    %1338 = vmatpush.msra.mxu0 %v1250
    %1339 = vmatpush.msra.mxu0 %v1249
    %1340 = vmatpush.msra.mxu0 %v1248
    %1341 = vmatpush.msra.mxu0 %v1247
    %1342 = vmatpush.msra.mxu0 %v1246
    %1343 = vmatpush.msra.mxu0 %v1245
    %1344 = vmatpush.msra.mxu0 %v1244
    %1345 = vmatpush.msra.mxu0 %v1243
    %1346 = vmatpush.msra.mxu0 %v1242
    %1347 = vmatpush.msra.mxu0 %v1241
    %1348 = vmatpush.msra.mxu0 %v1240
    %1349 = vmatpush.msra.mxu0 %v1239
    %1350 = vmatpush.msra.mxu0 %v1238
    %1351 = vmatpush.msra.mxu0 %v1237
    %1352 = vmatpush.msra.mxu0 %v1236
    %1353 = vmatpush.msra.mxu0 %v1235
    %1354 = vmatmul.f32.gmra.mxu0 %v1174
    %v1355 = vpop.f32.mrf.mxu0
    %v1356 = vadd.f32 %v1327, %v1355
    %1357 = vmatmul.f32.gmra.mxu0 %v1178
    %v1358 = vpop.f32.mrf.mxu0
    %v1359 = vadd.f32 %v1330, %v1358
    %1360 = vmatmul.f32.gmra.mxu0 %v1182
    %v1361 = vpop.f32.mrf.mxu0
    %v1362 = vadd.f32 %v1333, %v1361
    %1363 = vmatmul.f32.gmra.mxu0 %v1186
    %v1364 = vpop.f32.mrf.mxu0
    %v1365 = vadd.f32 %v1336, %v1364
    %1366 = vdwg.mxu0
    %v1367 = vmax.f32 %v1356, 1e-09
    %v1368 = vmax.f32 %v1359, 1e-09
    %v1369 = vmax.f32 %v1362, 1e-09
    %v1370 = vmax.f32 %v1365, 1e-09
    %v1371 = vmin.f32 %v1367, 1e+09
    %v1372 = vmin.f32 %v1368, 1e+09
    %v1373 = vmin.f32 %v1369, 1e+09
    %v1374 = vmin.f32 %v1370, 1e+09
    %v1375 = vlog2.pop %v1371
    %v1376 = vmul.f32 %v1375, 0.6931472
    %v1377 = vlog2.pop %v1372
    %v1378 = vmul.f32 %v1377, 0.6931472
    %v1379 = vlog2.pop %v1373
    %v1380 = vmul.f32 %v1379, 0.6931472
    %v1381 = vlog2.pop %v1374
    %v1382 = vmul.f32 %v1381, 0.6931472
    %vm1383 = vcmask 260101
    %1384 = vst.msk [vmem:[#allocation9 - $0x5] sm:$0x60] %vm1383, %v1382
    %vm1385 = vcmask 261120
    %1386 = vst.msk [vmem:[#allocation2] sm:$0xff] %vm1385, %v1376
    %1387 = vst.msk [vmem:[#allocation2 + $0x8] sm:$0xff] %vm1385, %v1378
    %1388 = vst.msk [vmem:[#allocation2 + $0x10] sm:$0xff] %vm1385, %v1380
    %vm1389 = vcmask 257024
    %1390 = vst.msk [vmem:[#allocation2 + $0x18] sm:$0xf] %vm1389, %v1382
    %v1391 = vld [vmem:[#allocation2] ss:$4 sm:$0x3f]
    %v1392 = vld [vmem:[%s3] sm:$0xff]
    %v1393 = vld [vmem:[%s3 + $0x8] sm:$0xff]
    %v1394 = vld [vmem:[%s3 + $0x10] sm:$0xff]
    %v1395 = vld [vmem:[%s3 + $0x18] sm:$0xff]
    %s1396 = scalar_lea.vmem [#allocation2], 1
    %v1397 = vld [vmem:[%s1396] ss:$4 sm:$0x3f]
    %v1398 = vld [vmem:[%s3 + $0x20] sm:$0xff]
    %v1399 = vld [vmem:[%s3 + $0x28] sm:$0xff]
    %v1400 = vld [vmem:[%s3 + $0x30] sm:$0xff]
    %v1401 = vld [vmem:[%s3 + $0x38] sm:$0xff]
    %v1403 = vsel %vm1385, %v1397, 0
    %1405 = vmatpush.msra.mxu0 0.0
    %1406 = vmatpush.msra.mxu0 0.0
    %1407 = vmatpush.msra.mxu0 0.0
    %1408 = vmatpush.msra.mxu0 0.0
    %1409 = vmatpush.msra.mxu0 0.0
    %1410 = vmatpush.msra.mxu0 0.0
    %1411 = vmatpush.msra.mxu0 0.0
    %1412 = vmatpush.msra.mxu0 0.0
    %1413 = vmatpush.msra.mxu0 0.0
    %1414 = vmatpush.msra.mxu0 0.0
    %1415 = vmatpush.msra.mxu0 0.0
    %1416 = vmatpush.msra.mxu0 0.0
    %1417 = vmatpush.msra.mxu0 %v1401
    %1418 = vmatpush.msra.mxu0 %v1400
    %1419 = vmatpush.msra.mxu0 %v1399
    %1420 = vmatpush.msra.mxu0 %v1398
    %1421 = vmatmul.f32.gmra.mxu0 %v1403
    %v1422 = vpop.f32.mrf.mxu0
    %v1423 = vadd.f32 0.0, %v1422
    %1424 = vdwg.mxu0
    %v1426 = vsel %vm1385, %v1391, 0
    %1428 = vmatpush.msra.mxu0 0.0
    %1429 = vmatpush.msra.mxu0 0.0
    %1430 = vmatpush.msra.mxu0 0.0
    %1431 = vmatpush.msra.mxu0 0.0
    %1432 = vmatpush.msra.mxu0 0.0
    %1433 = vmatpush.msra.mxu0 0.0
    %1434 = vmatpush.msra.mxu0 0.0
    %1435 = vmatpush.msra.mxu0 0.0
    %1436 = vmatpush.msra.mxu0 0.0
    %1437 = vmatpush.msra.mxu0 0.0
    %1438 = vmatpush.msra.mxu0 0.0
    %1439 = vmatpush.msra.mxu0 0.0
    %1440 = vmatpush.msra.mxu0 %v1395
    %1441 = vmatpush.msra.mxu0 %v1394
    %1442 = vmatpush.msra.mxu0 %v1393
    %1443 = vmatpush.msra.mxu0 %v1392
    %1444 = vmatmul.f32.gmra.mxu0 %v1426
    %v1445 = vpop.f32.mrf.mxu0
    %v1446 = vadd.f32 %v1423, %v1445
    %1447 = vdwg.mxu0
    %s1448 = scalar_lea.vmem [#allocation2], 2
    %v1449 = vld [vmem:[%s1448] ss:$4 sm:$0x3f]
    %v1450 = vld [vmem:[%s3 + $0x40] sm:$0xff]
    %v1451 = vld [vmem:[%s3 + $0x48] sm:$0xff]
    %v1452 = vld [vmem:[%s3 + $0x50] sm:$0xff]
    %v1453 = vld [vmem:[%s3 + $0x58] sm:$0xff]
    %v1455 = vsel %vm1385, %v1449, 0
    %1457 = vmatpush.msra.mxu0 0.0
    %1458 = vmatpush.msra.mxu0 0.0
    %1459 = vmatpush.msra.mxu0 0.0
    %1460 = vmatpush.msra.mxu0 0.0
    %1461 = vmatpush.msra.mxu0 0.0
    %1462 = vmatpush.msra.mxu0 0.0
    %1463 = vmatpush.msra.mxu0 0.0
    %1464 = vmatpush.msra.mxu0 0.0
    %1465 = vmatpush.msra.mxu0 0.0
    %1466 = vmatpush.msra.mxu0 0.0
    %1467 = vmatpush.msra.mxu0 0.0
    %1468 = vmatpush.msra.mxu0 0.0
    %1469 = vmatpush.msra.mxu0 %v1453
    %1470 = vmatpush.msra.mxu0 %v1452
    %1471 = vmatpush.msra.mxu0 %v1451
    %1472 = vmatpush.msra.mxu0 %v1450
    %1473 = vmatmul.f32.gmra.mxu0 %v1455
    %v1474 = vpop.f32.mrf.mxu0
    %v1475 = vadd.f32 0.0, %v1474
    %1476 = vdwg.mxu0
    %v1477 = vadd.f32 %v1446, %v1475
    %s1478 = scalar_lea.vmem [#allocation2], 3
    %v1479 = vld [vmem:[%s1478] ss:$4 sm:$0x3f]
    %v1480 = vld [vmem:[%s3 + $0x60] sm:$0xff]
    %v1481 = vld [vmem:[%s3 + $0x68] sm:$0xff]
    %v1482 = vld [vmem:[%s3 + $0x70] sm:$0xff]
    %v1483 = vld [vmem:[%s3 + $0x78] sm:$0xff]
    %v1485 = vsel %vm1385, %v1479, 0
    %1487 = vmatpush.msra.mxu0 0.0
    %1488 = vmatpush.msra.mxu0 0.0
    %1489 = vmatpush.msra.mxu0 0.0
    %1490 = vmatpush.msra.mxu0 0.0
    %1491 = vmatpush.msra.mxu0 0.0
    %1492 = vmatpush.msra.mxu0 0.0
    %1493 = vmatpush.msra.mxu0 0.0
    %1494 = vmatpush.msra.mxu0 0.0
    %1495 = vmatpush.msra.mxu0 0.0
    %1496 = vmatpush.msra.mxu0 0.0
    %1497 = vmatpush.msra.mxu0 0.0
    %1498 = vmatpush.msra.mxu0 0.0
    %1499 = vmatpush.msra.mxu0 %v1483
    %1500 = vmatpush.msra.mxu0 %v1482
    %1501 = vmatpush.msra.mxu0 %v1481
    %1502 = vmatpush.msra.mxu0 %v1480
    %1503 = vmatmul.f32.gmra.mxu0 %v1485
    %v1504 = vpop.f32.mrf.mxu0
    %v1505 = vadd.f32 0.0, %v1504
    %1506 = vdwg.mxu0
    %v1507 = vadd.f32 %v1477, %v1505
    %s1508 = scalar_lea.vmem [#allocation2], 4
    %v1509 = vld [vmem:[%s1508] ss:$4 sm:$0x3f]
    %v1510 = vld [vmem:[%s3 + $0x80] sm:$0xff]
    %v1511 = vld [vmem:[%s3 + $0x88] sm:$0xff]
    %v1512 = vld [vmem:[%s3 + $0x90] sm:$0xff]
    %v1513 = vld [vmem:[%s3 + $0x98] sm:$0xff]
    %v1515 = vsel %vm1385, %v1509, 0
    %1517 = vmatpush.msra.mxu0 0.0
    %1518 = vmatpush.msra.mxu0 0.0
    %1519 = vmatpush.msra.mxu0 0.0
    %1520 = vmatpush.msra.mxu0 0.0
    %1521 = vmatpush.msra.mxu0 0.0
    %1522 = vmatpush.msra.mxu0 0.0
    %1523 = vmatpush.msra.mxu0 0.0
    %1524 = vmatpush.msra.mxu0 0.0
    %1525 = vmatpush.msra.mxu0 0.0
    %1526 = vmatpush.msra.mxu0 0.0
    %1527 = vmatpush.msra.mxu0 0.0
    %1528 = vmatpush.msra.mxu0 0.0
    %1529 = vmatpush.msra.mxu0 %v1513
    %1530 = vmatpush.msra.mxu0 %v1512
    %1531 = vmatpush.msra.mxu0 %v1511
    %1532 = vmatpush.msra.mxu0 %v1510
    %1533 = vmatmul.f32.gmra.mxu0 %v1515
    %v1534 = vpop.f32.mrf.mxu0
    %v1535 = vadd.f32 0.0, %v1534
    %1536 = vdwg.mxu0
    %v1537 = vadd.f32 %v1507, %v1535
    %s1538 = scalar_lea.vmem [#allocation2], 5
    %v1539 = vld [vmem:[%s1538] ss:$4 sm:$0x3f]
    %v1540 = vld [vmem:[%s3 + $0xa0] sm:$0xff]
    %v1541 = vld [vmem:[%s3 + $0xa8] sm:$0xff]
    %v1542 = vld [vmem:[%s3 + $0xb0] sm:$0xff]
    %v1543 = vld [vmem:[%s3 + $0xb8] sm:$0xff]
    %v1545 = vsel %vm1385, %v1539, 0
    %1547 = vmatpush.msra.mxu0 0.0
    %1548 = vmatpush.msra.mxu0 0.0
    %1549 = vmatpush.msra.mxu0 0.0
    %1550 = vmatpush.msra.mxu0 0.0
    %1551 = vmatpush.msra.mxu0 0.0
    %1552 = vmatpush.msra.mxu0 0.0
    %1553 = vmatpush.msra.mxu0 0.0
    %1554 = vmatpush.msra.mxu0 0.0
    %1555 = vmatpush.msra.mxu0 0.0
    %1556 = vmatpush.msra.mxu0 0.0
    %1557 = vmatpush.msra.mxu0 0.0
    %1558 = vmatpush.msra.mxu0 0.0
    %1559 = vmatpush.msra.mxu0 %v1543
    %1560 = vmatpush.msra.mxu0 %v1542
    %1561 = vmatpush.msra.mxu0 %v1541
    %1562 = vmatpush.msra.mxu0 %v1540
    %1563 = vmatmul.f32.gmra.mxu0 %v1545
    %v1564 = vpop.f32.mrf.mxu0
    %v1565 = vadd.f32 0.0, %v1564
    %1566 = vdwg.mxu0
    %v1567 = vadd.f32 %v1537, %v1565
    %s1568 = scalar_lea.vmem [#allocation2], 6
    %v1569 = vld [vmem:[%s1568] ss:$4 sm:$0x3f]
    %v1570 = vld [vmem:[%s3 + $0xc0] sm:$0xff]
    %v1571 = vld [vmem:[%s3 + $0xc8] sm:$0xff]
    %v1572 = vld [vmem:[%s3 + $0xd0] sm:$0xff]
    %v1573 = vld [vmem:[%s3 + $0xd8] sm:$0xff]
    %v1575 = vsel %vm1385, %v1569, 0
    %1577 = vmatpush.msra.mxu0 0.0
    %1578 = vmatpush.msra.mxu0 0.0
    %1579 = vmatpush.msra.mxu0 0.0
    %1580 = vmatpush.msra.mxu0 0.0
    %1581 = vmatpush.msra.mxu0 0.0
    %1582 = vmatpush.msra.mxu0 0.0
    %1583 = vmatpush.msra.mxu0 0.0
    %1584 = vmatpush.msra.mxu0 0.0
    %1585 = vmatpush.msra.mxu0 0.0
    %1586 = vmatpush.msra.mxu0 0.0
    %1587 = vmatpush.msra.mxu0 0.0
    %1588 = vmatpush.msra.mxu0 0.0
    %1589 = vmatpush.msra.mxu0 %v1573
    %1590 = vmatpush.msra.mxu0 %v1572
    %1591 = vmatpush.msra.mxu0 %v1571
    %1592 = vmatpush.msra.mxu0 %v1570
    %1593 = vmatmul.f32.gmra.mxu0 %v1575
    %v1594 = vpop.f32.mrf.mxu0
    %v1595 = vadd.f32 0.0, %v1594
    %1596 = vdwg.mxu0
    %v1597 = vadd.f32 %v1567, %v1595
    %s1598 = scalar_lea.vmem [#allocation2], 7
    %v1599 = vld [vmem:[%s1598] ss:$4 sm:$0x3f]
    %v1600 = vld [vmem:[%s3 + $0xe0] sm:$0xff]
    %v1601 = vld [vmem:[%s3 + $0xe8] sm:$0xff]
    %v1602 = vld [vmem:[%s3 + $0xf0] sm:$0xff]
    %v1603 = vld [vmem:[%s3 + $0xf8] sm:$0xff]
    %v1605 = vsel %vm1385, %v1599, 0
    %1607 = vmatpush.msra.mxu0 0.0
    %1608 = vmatpush.msra.mxu0 0.0
    %1609 = vmatpush.msra.mxu0 0.0
    %1610 = vmatpush.msra.mxu0 0.0
    %1611 = vmatpush.msra.mxu0 0.0
    %1612 = vmatpush.msra.mxu0 0.0
    %1613 = vmatpush.msra.mxu0 0.0
    %1614 = vmatpush.msra.mxu0 0.0
    %1615 = vmatpush.msra.mxu0 0.0
    %1616 = vmatpush.msra.mxu0 0.0
    %1617 = vmatpush.msra.mxu0 0.0
    %1618 = vmatpush.msra.mxu0 0.0
    %1619 = vmatpush.msra.mxu0 %v1603
    %1620 = vmatpush.msra.mxu0 %v1602
    %1621 = vmatpush.msra.mxu0 %v1601
    %1622 = vmatpush.msra.mxu0 %v1600
    %1623 = vmatmul.f32.gmra.mxu0 %v1605
    %v1624 = vpop.f32.mrf.mxu0
    %v1625 = vadd.f32 0.0, %v1624
    %1626 = vdwg.mxu0
    %v1627 = vadd.f32 %v1597, %v1625
    %v1628 = vld [vmem:[%s5] sm:$0x1]
    %v1629 = vperm.slane %v1628, 0
    %v1630 = vadd.f32 %v1627, %v1629
    %v1631 = vld [vmem:[%s4] sm:$0xff]
    %v1632 = vld [vmem:[%s4 + $0x8] sm:$0xff]
    %v1633 = vld [vmem:[%s4 + $0x10] sm:$0xff]
    %v1634 = vld [vmem:[%s4 + $0x18] sm:$0xff]
    %v1635 = vld [vmem:[%s4 + $0x20] sm:$0xff]
    %v1636 = vld [vmem:[%s4 + $0x28] sm:$0xff]
    %v1637 = vld [vmem:[%s4 + $0x30] sm:$0xff]
    %v1638 = vld [vmem:[%s4 + $0x38] sm:$0xff]
    %v1639 = vld [vmem:[%s4 + $0x40] sm:$0xff]
    %v1640 = vld [vmem:[%s4 + $0x48] sm:$0xff]
    %v1641 = vld [vmem:[%s4 + $0x50] sm:$0xff]
    %v1642 = vld [vmem:[%s4 + $0x58] sm:$0xff]
    %v1643 = vld [vmem:[%s5 + $0x1] sm:$0x1]
    %v1644 = vld [vmem:[%s5 + $0x2] sm:$0x1]
    %v1645 = vld [vmem:[%s5 + $0x3] sm:$0x1]
    %v1647 = vsel %vm1385, 0.0, 0
    %1649 = vmatpush.msra.mxu0 0.0
    %1650 = vmatpush.msra.mxu0 0.0
    %1651 = vmatpush.msra.mxu0 0.0
    %1652 = vmatpush.msra.mxu0 0.0
    %1653 = vmatpush.msra.mxu0 0.0
    %1654 = vmatpush.msra.mxu0 0.0
    %1655 = vmatpush.msra.mxu0 0.0
    %1656 = vmatpush.msra.mxu0 0.0
    %1657 = vmatpush.msra.mxu0 0.0
    %1658 = vmatpush.msra.mxu0 0.0
    %1659 = vmatpush.msra.mxu0 0.0
    %1660 = vmatpush.msra.mxu0 0.0
    %1661 = vmatpush.msra.mxu0 %v1634
    %1662 = vmatpush.msra.mxu0 %v1633
    %1663 = vmatpush.msra.mxu0 %v1632
    %1664 = vmatpush.msra.mxu0 %v1631
    %1665 = vmatmul.f32.gmra.mxu0 %v1647
    %v1666 = vpop.f32.mrf.mxu0
    %v1667 = vadd.f32 %v1643, %v1666
    %1668 = vdwg.mxu0
    %v1669 = vadd.f32 %v1630, %v1667
    %v1670 = vxor.u32 %v1669, 2147483648
    %v1671 = vmul.f32 %v1670, 1.442695
    %v1672 = vpow.pop %v1671
    %v1673 = vadd.f32 %v1672, 1.0
    %v1674 = vrcp.pop %v1673
    %v1675 = vmul.f32 %v1673, %v1674
    %v1676 = vsub.f32 1.0, %v1675
    %v1677 = vmul.f32 %v1674, %v1676
    %v1678 = vadd.f32 %v1674, %v1677
    %vm1679 = vweird.f32 %v1673
    %vm1680 = vweird.f32 %v1674
    %vm1681 = vmor %vm1679, %vm1680
    %v1682 = vsel %vm1681, %v1674, %v1678
    %v1683 = vand.u32 2147483647, %v1673
    %vm1684 = vcmp.eq.f32.partialorder %v1683, 8.507059e+37
    %v1685 = vand.u32 %v1673, 2147483648
    %v1686 = vor.u32 1.1754944e-38, %v1685
    %v1687 = vsel %vm1684, %v1686, %v1682
    %v1688 = vmul.f32 1.0, %v1687
    %1690 = vrot.lane.b32.xlu0 %v1667, 64
    %v1691 = vpop.permute.xlu0 %1690
    %v1693 = vmul.f32 %v1688, %v1691
    %1695 = vrot.lane.b32.xlu0 %v1693, 64
    %v1696 = vpop.permute.xlu0 %1695
    %v1698 = vadd.f32 %v1630, %v1696
    %v1699 = vtanh.pop %v1698
    %v1700 = vsub.f32 1.0, %v1688
    %1702 = vrot.lane.b32.xlu0 %v1699, 96
    %v1703 = vpop.permute.xlu0 %1702
    %v1705 = vmul.f32 %v1700, %v1703
    %v1706 = vmul.f32 %v1688, 0.0
    %v1707 = vadd.f32 %v1705, %v1706
    %1709 = vrot.lane.b32.xlu0 %v1707, 96
    %v1710 = vpop.permute.xlu0 %1709
    %v1711 = vsel %vm1385, %v1710, 0
    %1713 = vmatpush.msra.mxu0 0.0
    %1714 = vmatpush.msra.mxu0 0.0
    %1715 = vmatpush.msra.mxu0 0.0
    %1716 = vmatpush.msra.mxu0 0.0
    %1717 = vmatpush.msra.mxu0 0.0
    %1718 = vmatpush.msra.mxu0 0.0
    %1719 = vmatpush.msra.mxu0 0.0
    %1720 = vmatpush.msra.mxu0 0.0
    %1721 = vmatpush.msra.mxu0 0.0
    %1722 = vmatpush.msra.mxu0 0.0
    %1723 = vmatpush.msra.mxu0 0.0
    %1724 = vmatpush.msra.mxu0 0.0
    %1725 = vmatpush.msra.mxu0 %v1634
    %1726 = vmatpush.msra.mxu0 %v1633
    %1727 = vmatpush.msra.mxu0 %v1632
    %1728 = vmatpush.msra.mxu0 %v1631
    %1729 = vmatmul.f32.gmra.mxu0 %v1711
    %v1730 = vpop.f32.mrf.mxu0
    %v1731 = vadd.f32 %v1643, %v1730
    %1732 = vdwg.mxu0
    %v1734 = vrot.slane %v1731, 7
    %v1736 = vadd.f32 %v1630, %v1734
    %v1737 = vxor.u32 %v1736, 2147483648
    %v1738 = vmul.f32 %v1737, 1.442695
    %v1739 = vpow.pop %v1738
    %v1740 = vadd.f32 %v1739, 1.0
    %v1741 = vrcp.pop %v1740
    %v1742 = vmul.f32 %v1740, %v1741
    %v1743 = vsub.f32 1.0, %v1742
    %v1744 = vmul.f32 %v1741, %v1743
    %v1745 = vadd.f32 %v1741, %v1744
    %vm1746 = vweird.f32 %v1740
    %vm1747 = vweird.f32 %v1741
    %vm1748 = vmor %vm1746, %vm1747
    %v1749 = vsel %vm1748, %v1741, %v1745
    %v1750 = vand.u32 2147483647, %v1740
    %vm1751 = vcmp.eq.f32.partialorder %v1750, 8.507059e+37
    %v1752 = vand.u32 %v1740, 2147483648
    %v1753 = vor.u32 1.1754944e-38, %v1752
    %v1754 = vsel %vm1751, %v1753, %v1749
    %v1755 = vmul.f32 1.0, %v1754
    %1756 = vrot.lane.b32.xlu0 %v1734, 64
    %v1757 = vpop.permute.xlu0 %1756
    %v1759 = vmul.f32 %v1755, %v1757
    %1761 = vrot.lane.b32.xlu0 %v1759, 64
    %v1762 = vpop.permute.xlu0 %1761
    %v1764 = vadd.f32 %v1630, %v1762
    %v1765 = vtanh.pop %v1764
    %v1766 = vsub.f32 1.0, %v1755
    %1768 = vrot.lane.b32.xlu0 %v1765, 96
    %v1769 = vpop.permute.xlu0 %1768
    %v1771 = vmul.f32 %v1766, %v1769
    %v1772 = vrot.slane %v1707, 7
    %v1774 = vmul.f32 %v1755, %v1772
    %v1775 = vadd.f32 %v1771, %v1774
    %1776 = vmatpush.msra.mxu0 0.0
    %1777 = vmatpush.msra.mxu0 0.0
    %1778 = vmatpush.msra.mxu0 0.0
    %1779 = vmatpush.msra.mxu0 0.0
    %1780 = vmatpush.msra.mxu0 0.0
    %1781 = vmatpush.msra.mxu0 0.0
    %1782 = vmatpush.msra.mxu0 0.0
    %1783 = vmatpush.msra.mxu0 0.0
    %1784 = vmatpush.msra.mxu0 0.0
    %1785 = vmatpush.msra.mxu0 0.0
    %1786 = vmatpush.msra.mxu0 0.0
    %1787 = vmatpush.msra.mxu0 0.0
    %1788 = vmatpush.msra.mxu0 %v1638
    %1789 = vmatpush.msra.mxu0 %v1637
    %1790 = vmatpush.msra.mxu0 %v1636
    %1791 = vmatpush.msra.mxu0 %v1635
    %1792 = vmatmul.f32.gmra.mxu0 %v1711
    %v1793 = vpop.f32.mrf.mxu0
    %v1794 = vadd.f32 %v1644, %v1793
    %1795 = vdwg.mxu0
    %1796 = vmatpush.msra.mxu0 0.0
    %1797 = vmatpush.msra.mxu0 0.0
    %1798 = vmatpush.msra.mxu0 0.0
    %1799 = vmatpush.msra.mxu0 0.0
    %1800 = vmatpush.msra.mxu0 0.0
    %1801 = vmatpush.msra.mxu0 0.0
    %1802 = vmatpush.msra.mxu0 0.0
    %1803 = vmatpush.msra.mxu0 0.0
    %1804 = vmatpush.msra.mxu0 0.0
    %1805 = vmatpush.msra.mxu0 0.0
    %1806 = vmatpush.msra.mxu0 0.0
    %1807 = vmatpush.msra.mxu0 0.0
    %1808 = vmatpush.msra.mxu0 %v1642
    %1809 = vmatpush.msra.mxu0 %v1641
    %1810 = vmatpush.msra.mxu0 %v1640
    %1811 = vmatpush.msra.mxu0 %v1639
    %1812 = vmatmul.f32.gmra.mxu0 %v1647
    %v1813 = vpop.f32.mrf.mxu0
    %v1814 = vadd.f32 %v1645, %v1813
    %1815 = vdwg.mxu0
    %v1816 = vadd.f32 %v1794, %v1814
    %v1817 = vxor.u32 %v1816, 2147483648
    %v1818 = vmul.f32 %v1817, 1.442695
    %v1819 = vpow.pop %v1818
    %v1820 = vadd.f32 %v1819, 1.0
    %v1821 = vrcp.pop %v1820
    %v1822 = vmul.f32 %v1820, %v1821
    %v1823 = vsub.f32 1.0, %v1822
    %v1824 = vmul.f32 %v1821, %v1823
    %v1825 = vadd.f32 %v1821, %v1824
    %vm1826 = vweird.f32 %v1820
    %vm1827 = vweird.f32 %v1821
    %vm1828 = vmor %vm1826, %vm1827
    %v1829 = vsel %vm1828, %v1821, %v1825
    %v1830 = vand.u32 2147483647, %v1820
    %vm1831 = vcmp.eq.f32.partialorder %v1830, 8.507059e+37
    %v1832 = vand.u32 %v1820, 2147483648
    %v1833 = vor.u32 1.1754944e-38, %v1832
    %v1834 = vsel %vm1831, %v1833, %v1829
    %v1835 = vmul.f32 1.0, %v1834
    %1837 = vrot.lane.b32.xlu0 %v1814, 64
    %v1838 = vpop.permute.xlu0 %1837
    %v1840 = vmul.f32 %v1835, %v1838
    %1842 = vrot.lane.b32.xlu0 %v1840, 64
    %v1843 = vpop.permute.xlu0 %1842
    %v1845 = vadd.f32 %v1794, %v1843
    %v1846 = vtanh.pop %v1845
    %v1847 = vsub.f32 1.0, %v1835
    %1849 = vrot.lane.b32.xlu0 %v1846, 96
    %v1850 = vpop.permute.xlu0 %1849
    %v1852 = vmul.f32 %v1847, %v1850
    %v1853 = vmul.f32 %v1835, 0.0
    %v1854 = vadd.f32 %v1852, %v1853
    %v1856 = vrot.slane %v1775, 1
    %1857 = vrot.lane.b32.xlu0 %v1856, 96
    %v1858 = vpop.permute.xlu0 %1857
    %v1859 = vsel %vm1385, %v1858, 0
    %1861 = vmatpush.msra.mxu0 0.0
    %1862 = vmatpush.msra.mxu0 0.0
    %1863 = vmatpush.msra.mxu0 0.0
    %1864 = vmatpush.msra.mxu0 0.0
    %1865 = vmatpush.msra.mxu0 0.0
    %1866 = vmatpush.msra.mxu0 0.0
    %1867 = vmatpush.msra.mxu0 0.0
    %1868 = vmatpush.msra.mxu0 0.0
    %1869 = vmatpush.msra.mxu0 0.0
    %1870 = vmatpush.msra.mxu0 0.0
    %1871 = vmatpush.msra.mxu0 0.0
    %1872 = vmatpush.msra.mxu0 0.0
    %1873 = vmatpush.msra.mxu0 %v1634
    %1874 = vmatpush.msra.mxu0 %v1633
    %1875 = vmatpush.msra.mxu0 %v1632
    %1876 = vmatpush.msra.mxu0 %v1631
    %1877 = vmatmul.f32.gmra.mxu0 %v1859
    %v1878 = vpop.f32.mrf.mxu0
    %v1879 = vadd.f32 %v1643, %v1878
    %1880 = vdwg.mxu0
    %v1882 = vrot.slane %v1879, 6
    %v1884 = vadd.f32 %v1630, %v1882
    %v1885 = vxor.u32 %v1884, 2147483648
    %v1886 = vmul.f32 %v1885, 1.442695
    %v1887 = vpow.pop %v1886
    %v1888 = vadd.f32 %v1887, 1.0
    %v1889 = vrcp.pop %v1888
    %v1890 = vmul.f32 %v1888, %v1889
    %v1891 = vsub.f32 1.0, %v1890
    %v1892 = vmul.f32 %v1889, %v1891
    %v1893 = vadd.f32 %v1889, %v1892
    %vm1894 = vweird.f32 %v1888
    %vm1895 = vweird.f32 %v1889
    %vm1896 = vmor %vm1894, %vm1895
    %v1897 = vsel %vm1896, %v1889, %v1893
    %v1898 = vand.u32 2147483647, %v1888
    %vm1899 = vcmp.eq.f32.partialorder %v1898, 8.507059e+37
    %v1900 = vand.u32 %v1888, 2147483648
    %v1901 = vor.u32 1.1754944e-38, %v1900
    %v1902 = vsel %vm1899, %v1901, %v1897
    %v1903 = vmul.f32 1.0, %v1902
    %1904 = vrot.lane.b32.xlu0 %v1882, 64
    %v1905 = vpop.permute.xlu0 %1904
    %v1907 = vmul.f32 %v1903, %v1905
    %1909 = vrot.lane.b32.xlu0 %v1907, 64
    %v1910 = vpop.permute.xlu0 %1909
    %v1912 = vadd.f32 %v1630, %v1910
    %v1913 = vtanh.pop %v1912
    %v1914 = vsub.f32 1.0, %v1903
    %1916 = vrot.lane.b32.xlu0 %v1913, 96
    %v1917 = vpop.permute.xlu0 %1916
    %v1919 = vmul.f32 %v1914, %v1917
    %v1920 = vrot.slane %v1775, 7
    %v1922 = vmul.f32 %v1903, %v1920
    %v1923 = vadd.f32 %v1919, %v1922
    %1924 = vmatpush.msra.mxu0 0.0
    %1925 = vmatpush.msra.mxu0 0.0
    %1926 = vmatpush.msra.mxu0 0.0
    %1927 = vmatpush.msra.mxu0 0.0
    %1928 = vmatpush.msra.mxu0 0.0
    %1929 = vmatpush.msra.mxu0 0.0
    %1930 = vmatpush.msra.mxu0 0.0
    %1931 = vmatpush.msra.mxu0 0.0
    %1932 = vmatpush.msra.mxu0 0.0
    %1933 = vmatpush.msra.mxu0 0.0
    %1934 = vmatpush.msra.mxu0 0.0
    %1935 = vmatpush.msra.mxu0 0.0
    %1936 = vmatpush.msra.mxu0 %v1638
    %1937 = vmatpush.msra.mxu0 %v1637
    %1938 = vmatpush.msra.mxu0 %v1636
    %1939 = vmatpush.msra.mxu0 %v1635
    %1940 = vmatmul.f32.gmra.mxu0 %v1859
    %v1941 = vpop.f32.mrf.mxu0
    %v1942 = vadd.f32 %v1644, %v1941
    %1943 = vdwg.mxu0
    %1945 = vrot.lane.b32.xlu0 %v1854, 96
    %v1946 = vpop.permute.xlu0 %1945
    %v1947 = vsel %vm1385, %v1946, 0
    %1949 = vmatpush.msra.mxu0 0.0
    %1950 = vmatpush.msra.mxu0 0.0
    %1951 = vmatpush.msra.mxu0 0.0
    %1952 = vmatpush.msra.mxu0 0.0
    %1953 = vmatpush.msra.mxu0 0.0
    %1954 = vmatpush.msra.mxu0 0.0
    %1955 = vmatpush.msra.mxu0 0.0
    %1956 = vmatpush.msra.mxu0 0.0
    %1957 = vmatpush.msra.mxu0 0.0
    %1958 = vmatpush.msra.mxu0 0.0
    %1959 = vmatpush.msra.mxu0 0.0
    %1960 = vmatpush.msra.mxu0 0.0
    %1961 = vmatpush.msra.mxu0 %v1642
    %1962 = vmatpush.msra.mxu0 %v1641
    %1963 = vmatpush.msra.mxu0 %v1640
    %1964 = vmatpush.msra.mxu0 %v1639
    %1965 = vmatmul.f32.gmra.mxu0 %v1947
    %v1966 = vpop.f32.mrf.mxu0
    %v1967 = vadd.f32 %v1645, %v1966
    %1968 = vdwg.mxu0
    %v1969 = vadd.f32 %v1942, %v1967
    %v1970 = vxor.u32 %v1969, 2147483648
    %v1971 = vmul.f32 %v1970, 1.442695
    %v1972 = vpow.pop %v1971
    %v1973 = vadd.f32 %v1972, 1.0
    %v1974 = vrcp.pop %v1973
    %v1975 = vmul.f32 %v1973, %v1974
    %v1976 = vsub.f32 1.0, %v1975
    %v1977 = vmul.f32 %v1974, %v1976
    %v1978 = vadd.f32 %v1974, %v1977
    %vm1979 = vweird.f32 %v1973
    %vm1980 = vweird.f32 %v1974
    %vm1981 = vmor %vm1979, %vm1980
    %v1982 = vsel %vm1981, %v1974, %v1978
    %v1983 = vand.u32 2147483647, %v1973
    %vm1984 = vcmp.eq.f32.partialorder %v1983, 8.507059e+37
    %v1985 = vand.u32 %v1973, 2147483648
    %v1986 = vor.u32 1.1754944e-38, %v1985
    %v1987 = vsel %vm1984, %v1986, %v1982
    %v1988 = vmul.f32 1.0, %v1987
    %1990 = vrot.lane.b32.xlu0 %v1967, 64
    %v1991 = vpop.permute.xlu0 %1990
    %v1993 = vmul.f32 %v1988, %v1991
    %1995 = vrot.lane.b32.xlu0 %v1993, 64
    %v1996 = vpop.permute.xlu0 %1995
    %v1998 = vadd.f32 %v1942, %v1996
    %v1999 = vtanh.pop %v1998
    %v2000 = vsub.f32 1.0, %v1988
    %2002 = vrot.lane.b32.xlu0 %v1999, 96
    %v2003 = vpop.permute.xlu0 %2002
    %v2005 = vmul.f32 %v2000, %v2003
    %v2006 = vmul.f32 %v1988, %v1854
    %v2007 = vadd.f32 %v2005, %v2006
    %v2009 = vrot.slane %v1923, 2
    %2010 = vrot.lane.b32.xlu0 %v2009, 96
    %v2011 = vpop.permute.xlu0 %2010
    %v2012 = vsel %vm1385, %v2011, 0
    %2014 = vmatpush.msra.mxu0 0.0
    %2015 = vmatpush.msra.mxu0 0.0
    %2016 = vmatpush.msra.mxu0 0.0
    %2017 = vmatpush.msra.mxu0 0.0
    %2018 = vmatpush.msra.mxu0 0.0
    %2019 = vmatpush.msra.mxu0 0.0
    %2020 = vmatpush.msra.mxu0 0.0
    %2021 = vmatpush.msra.mxu0 0.0
    %2022 = vmatpush.msra.mxu0 0.0
    %2023 = vmatpush.msra.mxu0 0.0
    %2024 = vmatpush.msra.mxu0 0.0
    %2025 = vmatpush.msra.mxu0 0.0
    %2026 = vmatpush.msra.mxu0 %v1634
    %2027 = vmatpush.msra.mxu0 %v1633
    %2028 = vmatpush.msra.mxu0 %v1632
    %2029 = vmatpush.msra.mxu0 %v1631
    %2030 = vmatmul.f32.gmra.mxu0 %v2012
    %v2031 = vpop.f32.mrf.mxu0
    %v2032 = vadd.f32 %v1643, %v2031
    %2033 = vdwg.mxu0
    %v2035 = vrot.slane %v2032, 5
    %v2037 = vadd.f32 %v1630, %v2035
    %v2038 = vxor.u32 %v2037, 2147483648
    %v2039 = vmul.f32 %v2038, 1.442695
    %v2040 = vpow.pop %v2039
    %v2041 = vadd.f32 %v2040, 1.0
    %v2042 = vrcp.pop %v2041
    %v2043 = vmul.f32 %v2041, %v2042
    %v2044 = vsub.f32 1.0, %v2043
    %v2045 = vmul.f32 %v2042, %v2044
    %v2046 = vadd.f32 %v2042, %v2045
    %vm2047 = vweird.f32 %v2041
    %vm2048 = vweird.f32 %v2042
    %vm2049 = vmor %vm2047, %vm2048
    %v2050 = vsel %vm2049, %v2042, %v2046
    %v2051 = vand.u32 2147483647, %v2041
    %vm2052 = vcmp.eq.f32.partialorder %v2051, 8.507059e+37
    %v2053 = vand.u32 %v2041, 2147483648
    %v2054 = vor.u32 1.1754944e-38, %v2053
    %v2055 = vsel %vm2052, %v2054, %v2050
    %v2056 = vmul.f32 1.0, %v2055
    %2057 = vrot.lane.b32.xlu0 %v2035, 64
    %v2058 = vpop.permute.xlu0 %2057
    %v2060 = vmul.f32 %v2056, %v2058
    %2062 = vrot.lane.b32.xlu0 %v2060, 64
    %v2063 = vpop.permute.xlu0 %2062
    %v2065 = vadd.f32 %v1630, %v2063
    %v2066 = vtanh.pop %v2065
    %v2067 = vsub.f32 1.0, %v2056
    %2069 = vrot.lane.b32.xlu0 %v2066, 96
    %v2070 = vpop.permute.xlu0 %2069
    %v2072 = vmul.f32 %v2067, %v2070
    %v2073 = vrot.slane %v1923, 7
    %v2075 = vmul.f32 %v2056, %v2073
    %v2076 = vadd.f32 %v2072, %v2075
    %2077 = vmatpush.msra.mxu0 0.0
    %2078 = vmatpush.msra.mxu0 0.0
    %2079 = vmatpush.msra.mxu0 0.0
    %2080 = vmatpush.msra.mxu0 0.0
    %2081 = vmatpush.msra.mxu0 0.0
    %2082 = vmatpush.msra.mxu0 0.0
    %2083 = vmatpush.msra.mxu0 0.0
    %2084 = vmatpush.msra.mxu0 0.0
    %2085 = vmatpush.msra.mxu0 0.0
    %2086 = vmatpush.msra.mxu0 0.0
    %2087 = vmatpush.msra.mxu0 0.0
    %2088 = vmatpush.msra.mxu0 0.0
    %2089 = vmatpush.msra.mxu0 %v1638
    %2090 = vmatpush.msra.mxu0 %v1637
    %2091 = vmatpush.msra.mxu0 %v1636
    %2092 = vmatpush.msra.mxu0 %v1635
    %2093 = vmatmul.f32.gmra.mxu0 %v2012
    %v2094 = vpop.f32.mrf.mxu0
    %v2095 = vadd.f32 %v1644, %v2094
    %2096 = vdwg.mxu0
    %2098 = vrot.lane.b32.xlu0 %v2007, 96
    %v2099 = vpop.permute.xlu0 %2098
    %v2100 = vsel %vm1385, %v2099, 0
    %2102 = vmatpush.msra.mxu0 0.0
    %2103 = vmatpush.msra.mxu0 0.0
    %2104 = vmatpush.msra.mxu0 0.0
    %2105 = vmatpush.msra.mxu0 0.0
    %2106 = vmatpush.msra.mxu0 0.0
    %2107 = vmatpush.msra.mxu0 0.0
    %2108 = vmatpush.msra.mxu0 0.0
    %2109 = vmatpush.msra.mxu0 0.0
    %2110 = vmatpush.msra.mxu0 0.0
    %2111 = vmatpush.msra.mxu0 0.0
    %2112 = vmatpush.msra.mxu0 0.0
    %2113 = vmatpush.msra.mxu0 0.0
    %2114 = vmatpush.msra.mxu0 %v1642
    %2115 = vmatpush.msra.mxu0 %v1641
    %2116 = vmatpush.msra.mxu0 %v1640
    %2117 = vmatpush.msra.mxu0 %v1639
    %2118 = vmatmul.f32.gmra.mxu0 %v2100
    %v2119 = vpop.f32.mrf.mxu0
    %v2120 = vadd.f32 %v1645, %v2119
    %2121 = vdwg.mxu0
    %v2122 = vadd.f32 %v2095, %v2120
    %v2123 = vxor.u32 %v2122, 2147483648
    %v2124 = vmul.f32 %v2123, 1.442695
    %v2125 = vpow.pop %v2124
    %v2126 = vadd.f32 %v2125, 1.0
    %v2127 = vrcp.pop %v2126
    %v2128 = vmul.f32 %v2126, %v2127
    %v2129 = vsub.f32 1.0, %v2128
    %v2130 = vmul.f32 %v2127, %v2129
    %v2131 = vadd.f32 %v2127, %v2130
    %vm2132 = vweird.f32 %v2126
    %vm2133 = vweird.f32 %v2127
    %vm2134 = vmor %vm2132, %vm2133
    %v2135 = vsel %vm2134, %v2127, %v2131
    %v2136 = vand.u32 2147483647, %v2126
    %vm2137 = vcmp.eq.f32.partialorder %v2136, 8.507059e+37
    %v2138 = vand.u32 %v2126, 2147483648
    %v2139 = vor.u32 1.1754944e-38, %v2138
    %v2140 = vsel %vm2137, %v2139, %v2135
    %v2141 = vmul.f32 1.0, %v2140
    %2143 = vrot.lane.b32.xlu0 %v2120, 64
    %v2144 = vpop.permute.xlu0 %2143
    %v2146 = vmul.f32 %v2141, %v2144
    %2148 = vrot.lane.b32.xlu0 %v2146, 64
    %v2149 = vpop.permute.xlu0 %2148
    %v2151 = vadd.f32 %v2095, %v2149
    %v2152 = vtanh.pop %v2151
    %v2153 = vsub.f32 1.0, %v2141
    %2155 = vrot.lane.b32.xlu0 %v2152, 96
    %v2156 = vpop.permute.xlu0 %2155
    %v2158 = vmul.f32 %v2153, %v2156
    %v2159 = vmul.f32 %v2141, %v2007
    %v2160 = vadd.f32 %v2158, %v2159
    %v2162 = vrot.slane %v2076, 3
    %2163 = vrot.lane.b32.xlu0 %v2162, 96
    %v2164 = vpop.permute.xlu0 %2163
    %v2165 = vsel %vm1385, %v2164, 0
    %2167 = vmatpush.msra.mxu0 0.0
    %2168 = vmatpush.msra.mxu0 0.0
    %2169 = vmatpush.msra.mxu0 0.0
    %2170 = vmatpush.msra.mxu0 0.0
    %2171 = vmatpush.msra.mxu0 0.0
    %2172 = vmatpush.msra.mxu0 0.0
    %2173 = vmatpush.msra.mxu0 0.0
    %2174 = vmatpush.msra.mxu0 0.0
    %2175 = vmatpush.msra.mxu0 0.0
    %2176 = vmatpush.msra.mxu0 0.0
    %2177 = vmatpush.msra.mxu0 0.0
    %2178 = vmatpush.msra.mxu0 0.0
    %2179 = vmatpush.msra.mxu0 %v1634
    %2180 = vmatpush.msra.mxu0 %v1633
    %2181 = vmatpush.msra.mxu0 %v1632
    %2182 = vmatpush.msra.mxu0 %v1631
    %2183 = vmatmul.f32.gmra.mxu0 %v2165
    %v2184 = vpop.f32.mrf.mxu0
    %v2185 = vadd.f32 %v1643, %v2184
    %2186 = vdwg.mxu0
    %v2188 = vrot.slane %v2185, 4
    %v2190 = vadd.f32 %v1630, %v2188
    %v2191 = vxor.u32 %v2190, 2147483648
    %v2192 = vmul.f32 %v2191, 1.442695
    %v2193 = vpow.pop %v2192
    %v2194 = vadd.f32 %v2193, 1.0
    %v2195 = vrcp.pop %v2194
    %v2196 = vmul.f32 %v2194, %v2195
    %v2197 = vsub.f32 1.0, %v2196
    %v2198 = vmul.f32 %v2195, %v2197
    %v2199 = vadd.f32 %v2195, %v2198
    %vm2200 = vweird.f32 %v2194
    %vm2201 = vweird.f32 %v2195
    %vm2202 = vmor %vm2200, %vm2201
    %v2203 = vsel %vm2202, %v2195, %v2199
    %v2204 = vand.u32 2147483647, %v2194
    %vm2205 = vcmp.eq.f32.partialorder %v2204, 8.507059e+37
    %v2206 = vand.u32 %v2194, 2147483648
    %v2207 = vor.u32 1.1754944e-38, %v2206
    %v2208 = vsel %vm2205, %v2207, %v2203
    %v2209 = vmul.f32 1.0, %v2208
    %2210 = vrot.lane.b32.xlu0 %v2188, 64
    %v2211 = vpop.permute.xlu0 %2210
    %v2213 = vmul.f32 %v2209, %v2211
    %2215 = vrot.lane.b32.xlu0 %v2213, 64
    %v2216 = vpop.permute.xlu0 %2215
    %v2218 = vadd.f32 %v1630, %v2216
    %v2219 = vtanh.pop %v2218
    %v2220 = vsub.f32 1.0, %v2209
    %2222 = vrot.lane.b32.xlu0 %v2219, 96
    %v2223 = vpop.permute.xlu0 %2222
    %v2225 = vmul.f32 %v2220, %v2223
    %v2226 = vrot.slane %v2076, 7
    %v2228 = vmul.f32 %v2209, %v2226
    %v2229 = vadd.f32 %v2225, %v2228
    %2230 = vmatpush.msra.mxu0 0.0
    %2231 = vmatpush.msra.mxu0 0.0
    %2232 = vmatpush.msra.mxu0 0.0
    %2233 = vmatpush.msra.mxu0 0.0
    %2234 = vmatpush.msra.mxu0 0.0
    %2235 = vmatpush.msra.mxu0 0.0
    %2236 = vmatpush.msra.mxu0 0.0
    %2237 = vmatpush.msra.mxu0 0.0
    %2238 = vmatpush.msra.mxu0 0.0
    %2239 = vmatpush.msra.mxu0 0.0
    %2240 = vmatpush.msra.mxu0 0.0
    %2241 = vmatpush.msra.mxu0 0.0
    %2242 = vmatpush.msra.mxu0 %v1638
    %2243 = vmatpush.msra.mxu0 %v1637
    %2244 = vmatpush.msra.mxu0 %v1636
    %2245 = vmatpush.msra.mxu0 %v1635
    %2246 = vmatmul.f32.gmra.mxu0 %v2165
    %v2247 = vpop.f32.mrf.mxu0
    %v2248 = vadd.f32 %v1644, %v2247
    %2249 = vdwg.mxu0
    %2251 = vrot.lane.b32.xlu0 %v2160, 96
    %v2252 = vpop.permute.xlu0 %2251
    %v2253 = vsel %vm1385, %v2252, 0
    %2255 = vmatpush.msra.mxu0 0.0
    %2256 = vmatpush.msra.mxu0 0.0
    %2257 = vmatpush.msra.mxu0 0.0
    %2258 = vmatpush.msra.mxu0 0.0
    %2259 = vmatpush.msra.mxu0 0.0
    %2260 = vmatpush.msra.mxu0 0.0
    %2261 = vmatpush.msra.mxu0 0.0
    %2262 = vmatpush.msra.mxu0 0.0
    %2263 = vmatpush.msra.mxu0 0.0
    %2264 = vmatpush.msra.mxu0 0.0
    %2265 = vmatpush.msra.mxu0 0.0
    %2266 = vmatpush.msra.mxu0 0.0
    %2267 = vmatpush.msra.mxu0 %v1642
    %2268 = vmatpush.msra.mxu0 %v1641
    %2269 = vmatpush.msra.mxu0 %v1640
    %2270 = vmatpush.msra.mxu0 %v1639
    %2271 = vmatmul.f32.gmra.mxu0 %v2253
    %v2272 = vpop.f32.mrf.mxu0
    %v2273 = vadd.f32 %v1645, %v2272
    %2274 = vdwg.mxu0
    %v2275 = vadd.f32 %v2248, %v2273
    %v2276 = vxor.u32 %v2275, 2147483648
    %v2277 = vmul.f32 %v2276, 1.442695
    %v2278 = vpow.pop %v2277
    %v2279 = vadd.f32 %v2278, 1.0
    %v2280 = vrcp.pop %v2279
    %v2281 = vmul.f32 %v2279, %v2280
    %v2282 = vsub.f32 1.0, %v2281
    %v2283 = vmul.f32 %v2280, %v2282
    %v2284 = vadd.f32 %v2280, %v2283
    %vm2285 = vweird.f32 %v2279
    %vm2286 = vweird.f32 %v2280
    %vm2287 = vmor %vm2285, %vm2286
    %v2288 = vsel %vm2287, %v2280, %v2284
    %v2289 = vand.u32 2147483647, %v2279
    %vm2290 = vcmp.eq.f32.partialorder %v2289, 8.507059e+37
    %v2291 = vand.u32 %v2279, 2147483648
    %v2292 = vor.u32 1.1754944e-38, %v2291
    %v2293 = vsel %vm2290, %v2292, %v2288
    %v2294 = vmul.f32 1.0, %v2293
    %2296 = vrot.lane.b32.xlu0 %v2273, 64
    %v2297 = vpop.permute.xlu0 %2296
    %v2299 = vmul.f32 %v2294, %v2297
    %2301 = vrot.lane.b32.xlu0 %v2299, 64
    %v2302 = vpop.permute.xlu0 %2301
    %v2304 = vadd.f32 %v2248, %v2302
    %v2305 = vtanh.pop %v2304
    %v2306 = vsub.f32 1.0, %v2294
    %2308 = vrot.lane.b32.xlu0 %v2305, 96
    %v2309 = vpop.permute.xlu0 %2308
    %v2311 = vmul.f32 %v2306, %v2309
    %v2312 = vmul.f32 %v2294, %v2160
    %v2313 = vadd.f32 %v2311, %v2312
    %v2315 = vrot.slane %v2229, 4
    %2316 = vrot.lane.b32.xlu0 %v2315, 96
    %v2317 = vpop.permute.xlu0 %2316
    %v2318 = vsel %vm1385, %v2317, 0
    %2320 = vmatpush.msra.mxu0 0.0
    %2321 = vmatpush.msra.mxu0 0.0
    %2322 = vmatpush.msra.mxu0 0.0
    %2323 = vmatpush.msra.mxu0 0.0
    %2324 = vmatpush.msra.mxu0 0.0
    %2325 = vmatpush.msra.mxu0 0.0
    %2326 = vmatpush.msra.mxu0 0.0
    %2327 = vmatpush.msra.mxu0 0.0
    %2328 = vmatpush.msra.mxu0 0.0
    %2329 = vmatpush.msra.mxu0 0.0
    %2330 = vmatpush.msra.mxu0 0.0
    %2331 = vmatpush.msra.mxu0 0.0
    %2332 = vmatpush.msra.mxu0 %v1634
    %2333 = vmatpush.msra.mxu0 %v1633
    %2334 = vmatpush.msra.mxu0 %v1632
    %2335 = vmatpush.msra.mxu0 %v1631
    %2336 = vmatmul.f32.gmra.mxu0 %v2318
    %v2337 = vpop.f32.mrf.mxu0
    %v2338 = vadd.f32 %v1643, %v2337
    %2339 = vdwg.mxu0
    %v2341 = vrot.slane %v2338, 3
    %v2343 = vadd.f32 %v1630, %v2341
    %v2344 = vxor.u32 %v2343, 2147483648
    %v2345 = vmul.f32 %v2344, 1.442695
    %v2346 = vpow.pop %v2345
    %v2347 = vadd.f32 %v2346, 1.0
    %v2348 = vrcp.pop %v2347
    %v2349 = vmul.f32 %v2347, %v2348
    %v2350 = vsub.f32 1.0, %v2349
    %v2351 = vmul.f32 %v2348, %v2350
    %v2352 = vadd.f32 %v2348, %v2351
    %vm2353 = vweird.f32 %v2347
    %vm2354 = vweird.f32 %v2348
    %vm2355 = vmor %vm2353, %vm2354
    %v2356 = vsel %vm2355, %v2348, %v2352
    %v2357 = vand.u32 2147483647, %v2347
    %vm2358 = vcmp.eq.f32.partialorder %v2357, 8.507059e+37
    %v2359 = vand.u32 %v2347, 2147483648
    %v2360 = vor.u32 1.1754944e-38, %v2359
    %v2361 = vsel %vm2358, %v2360, %v2356
    %v2362 = vmul.f32 1.0, %v2361
    %2363 = vrot.lane.b32.xlu0 %v2341, 64
    %v2364 = vpop.permute.xlu0 %2363
    %v2366 = vmul.f32 %v2362, %v2364
    %2368 = vrot.lane.b32.xlu0 %v2366, 64
    %v2369 = vpop.permute.xlu0 %2368
    %v2371 = vadd.f32 %v1630, %v2369
    %v2372 = vtanh.pop %v2371
    %v2373 = vsub.f32 1.0, %v2362
    %2375 = vrot.lane.b32.xlu0 %v2372, 96
    %v2376 = vpop.permute.xlu0 %2375
    %v2378 = vmul.f32 %v2373, %v2376
    %v2379 = vrot.slane %v2229, 7
    %v2381 = vmul.f32 %v2362, %v2379
    %v2382 = vadd.f32 %v2378, %v2381
    %2383 = vmatpush.msra.mxu0 0.0
    %2384 = vmatpush.msra.mxu0 0.0
    %2385 = vmatpush.msra.mxu0 0.0
    %2386 = vmatpush.msra.mxu0 0.0
    %2387 = vmatpush.msra.mxu0 0.0
    %2388 = vmatpush.msra.mxu0 0.0
    %2389 = vmatpush.msra.mxu0 0.0
    %2390 = vmatpush.msra.mxu0 0.0
    %2391 = vmatpush.msra.mxu0 0.0
    %2392 = vmatpush.msra.mxu0 0.0
    %2393 = vmatpush.msra.mxu0 0.0
    %2394 = vmatpush.msra.mxu0 0.0
    %2395 = vmatpush.msra.mxu0 %v1638
    %2396 = vmatpush.msra.mxu0 %v1637
    %2397 = vmatpush.msra.mxu0 %v1636
    %2398 = vmatpush.msra.mxu0 %v1635
    %2399 = vmatmul.f32.gmra.mxu0 %v2318
    %v2400 = vpop.f32.mrf.mxu0
    %v2401 = vadd.f32 %v1644, %v2400
    %2402 = vdwg.mxu0
    %2404 = vrot.lane.b32.xlu0 %v2313, 96
    %v2405 = vpop.permute.xlu0 %2404
    %v2406 = vsel %vm1385, %v2405, 0
    %2408 = vmatpush.msra.mxu0 0.0
    %2409 = vmatpush.msra.mxu0 0.0
    %2410 = vmatpush.msra.mxu0 0.0
    %2411 = vmatpush.msra.mxu0 0.0
    %2412 = vmatpush.msra.mxu0 0.0
    %2413 = vmatpush.msra.mxu0 0.0
    %2414 = vmatpush.msra.mxu0 0.0
    %2415 = vmatpush.msra.mxu0 0.0
    %2416 = vmatpush.msra.mxu0 0.0
    %2417 = vmatpush.msra.mxu0 0.0
    %2418 = vmatpush.msra.mxu0 0.0
    %2419 = vmatpush.msra.mxu0 0.0
    %2420 = vmatpush.msra.mxu0 %v1642
    %2421 = vmatpush.msra.mxu0 %v1641
    %2422 = vmatpush.msra.mxu0 %v1640
    %2423 = vmatpush.msra.mxu0 %v1639
    %2424 = vmatmul.f32.gmra.mxu0 %v2406
    %v2425 = vpop.f32.mrf.mxu0
    %v2426 = vadd.f32 %v1645, %v2425
    %2427 = vdwg.mxu0
    %v2428 = vadd.f32 %v2401, %v2426
    %v2429 = vxor.u32 %v2428, 2147483648
    %v2430 = vmul.f32 %v2429, 1.442695
    %v2431 = vpow.pop %v2430
    %v2432 = vadd.f32 %v2431, 1.0
    %v2433 = vrcp.pop %v2432
    %v2434 = vmul.f32 %v2432, %v2433
    %v2435 = vsub.f32 1.0, %v2434
    %v2436 = vmul.f32 %v2433, %v2435
    %v2437 = vadd.f32 %v2433, %v2436
    %vm2438 = vweird.f32 %v2432
    %vm2439 = vweird.f32 %v2433
    %vm2440 = vmor %vm2438, %vm2439
    %v2441 = vsel %vm2440, %v2433, %v2437
    %v2442 = vand.u32 2147483647, %v2432
    %vm2443 = vcmp.eq.f32.partialorder %v2442, 8.507059e+37
    %v2444 = vand.u32 %v2432, 2147483648
    %v2445 = vor.u32 1.1754944e-38, %v2444
    %v2446 = vsel %vm2443, %v2445, %v2441
    %v2447 = vmul.f32 1.0, %v2446
    %2449 = vrot.lane.b32.xlu0 %v2426, 64
    %v2450 = vpop.permute.xlu0 %2449
    %v2452 = vmul.f32 %v2447, %v2450
    %2454 = vrot.lane.b32.xlu0 %v2452, 64
    %v2455 = vpop.permute.xlu0 %2454
    %v2457 = vadd.f32 %v2401, %v2455
    %v2458 = vtanh.pop %v2457
    %v2459 = vsub.f32 1.0, %v2447
    %2461 = vrot.lane.b32.xlu0 %v2458, 96
    %v2462 = vpop.permute.xlu0 %2461
    %v2464 = vmul.f32 %v2459, %v2462
    %v2465 = vmul.f32 %v2447, %v2313
    %v2466 = vadd.f32 %v2464, %v2465
    %v2468 = vrot.slane %v2382, 5
    %2469 = vrot.lane.b32.xlu0 %v2468, 96
    %v2470 = vpop.permute.xlu0 %2469
    %v2471 = vsel %vm1385, %v2470, 0
    %2473 = vmatpush.msra.mxu0 0.0
    %2474 = vmatpush.msra.mxu0 0.0
    %2475 = vmatpush.msra.mxu0 0.0
    %2476 = vmatpush.msra.mxu0 0.0
    %2477 = vmatpush.msra.mxu0 0.0
    %2478 = vmatpush.msra.mxu0 0.0
    %2479 = vmatpush.msra.mxu0 0.0
    %2480 = vmatpush.msra.mxu0 0.0
    %2481 = vmatpush.msra.mxu0 0.0
    %2482 = vmatpush.msra.mxu0 0.0
    %2483 = vmatpush.msra.mxu0 0.0
    %2484 = vmatpush.msra.mxu0 0.0
    %2485 = vmatpush.msra.mxu0 %v1638
    %2486 = vmatpush.msra.mxu0 %v1637
    %2487 = vmatpush.msra.mxu0 %v1636
    %2488 = vmatpush.msra.mxu0 %v1635
    %2489 = vmatmul.f32.gmra.mxu0 %v2471
    %v2490 = vpop.f32.mrf.mxu0
    %v2491 = vadd.f32 %v1644, %v2490
    %2492 = vdwg.mxu0
    %2494 = vrot.lane.b32.xlu0 %v2466, 96
    %v2495 = vpop.permute.xlu0 %2494
    %v2496 = vsel %vm1385, %v2495, 0
    %2498 = vmatpush.msra.mxu0 0.0
    %2499 = vmatpush.msra.mxu0 0.0
    %2500 = vmatpush.msra.mxu0 0.0
    %2501 = vmatpush.msra.mxu0 0.0
    %2502 = vmatpush.msra.mxu0 0.0
    %2503 = vmatpush.msra.mxu0 0.0
    %2504 = vmatpush.msra.mxu0 0.0
    %2505 = vmatpush.msra.mxu0 0.0
    %2506 = vmatpush.msra.mxu0 0.0
    %2507 = vmatpush.msra.mxu0 0.0
    %2508 = vmatpush.msra.mxu0 0.0
    %2509 = vmatpush.msra.mxu0 0.0
    %2510 = vmatpush.msra.mxu0 %v1642
    %2511 = vmatpush.msra.mxu0 %v1641
    %2512 = vmatpush.msra.mxu0 %v1640
    %2513 = vmatpush.msra.mxu0 %v1639
    %2514 = vmatmul.f32.gmra.mxu0 %v2496
    %v2515 = vpop.f32.mrf.mxu0
    %v2516 = vadd.f32 %v1645, %v2515
    %2517 = vdwg.mxu0
    %v2518 = vadd.f32 %v2491, %v2516
    %v2519 = vxor.u32 %v2518, 2147483648
    %v2520 = vmul.f32 %v2519, 1.442695
    %v2521 = vpow.pop %v2520
    %v2522 = vadd.f32 %v2521, 1.0
    %v2523 = vrcp.pop %v2522
    %v2524 = vmul.f32 %v2522, %v2523
    %v2525 = vsub.f32 1.0, %v2524
    %v2526 = vmul.f32 %v2523, %v2525
    %v2527 = vadd.f32 %v2523, %v2526
    %vm2528 = vweird.f32 %v2522
    %vm2529 = vweird.f32 %v2523
    %vm2530 = vmor %vm2528, %vm2529
    %v2531 = vsel %vm2530, %v2523, %v2527
    %v2532 = vand.u32 2147483647, %v2522
    %vm2533 = vcmp.eq.f32.partialorder %v2532, 8.507059e+37
    %v2534 = vand.u32 %v2522, 2147483648
    %v2535 = vor.u32 1.1754944e-38, %v2534
    %v2536 = vsel %vm2533, %v2535, %v2531
    %v2537 = vmul.f32 1.0, %v2536
    %2539 = vrot.lane.b32.xlu0 %v2516, 64
    %v2540 = vpop.permute.xlu0 %2539
    %v2542 = vmul.f32 %v2537, %v2540
    %2544 = vrot.lane.b32.xlu0 %v2542, 64
    %v2545 = vpop.permute.xlu0 %2544
    %v2547 = vadd.f32 %v2491, %v2545
    %v2548 = vtanh.pop %v2547
    %v2549 = vsub.f32 1.0, %v2537
    %2551 = vrot.lane.b32.xlu0 %v2548, 96
    %v2552 = vpop.permute.xlu0 %2551
    %v2554 = vmul.f32 %v2549, %v2552
    %v2555 = vmul.f32 %v2537, %v2466
    %v2556 = vadd.f32 %v2554, %v2555
    %v2557 = vrot.slane %v2007, 7
    %v2559 = vrot.slane %v2160, 6
    %v2561 = vrot.slane %v2313, 5
    %v2563 = vrot.slane %v2466, 4
    %v2566 = vrot.slane %v2556, 3
    %vm2568 = vcmask 1040384
    %v2569 = vsel %vm2568, %v1854, %v2557
    %vm2570 = vcmask 1041408
    %v2571 = vsel %vm2570, %v2569, %v2559
    %vm2572 = vcmask 1042432
    %v2573 = vsel %vm2572, %v2571, %v2561
    %vm2574 = vcmask 1043456
    %v2575 = vsel %vm2574, %v2573, %v2563
    %vm2576 = vcmask 1044480
    %v2577 = vsel %vm2576, %v2575, %v2566
    %2579 = vrot.lane.b32.xlu0 %v2577, 96
    %v2580 = vpop.permute.xlu0 %2579
    %vm2582 = vcmask 259072
    %2583 = vst.msk [vmem:[#allocation7] sm:$0x3f] %vm2582, %v2580
    %v2585 = vrot.slane %v2556, 7
    %v2587 = vsel %vm2568, %v2468, %v2585
    %2589 = vrot.lane.b32.xlu0 %v2587, 96
    %v2590 = vpop.permute.xlu0 %2589
    %vm2592 = vcmask 254976
    %2593 = vst.msk [vmem:[#allocation6] sm:$0x3] %vm2592, %v2590
    %v2594 = vld [vmem:[%s6] sm:$0xff]
    %v2595 = vld [vmem:[%s6 + $0x8] sm:$0xff]
    %v2596 = vld [vmem:[%s6 + $0x10] sm:$0xff]
    %v2597 = vld [vmem:[%s6 + $0x18] sm:$0xff]
    %v2598 = vld [vmem:[%s7] sm:$0x1]
    %v2600 = vperm.slane %v2598, 0
    %v2602 = vsel %vm1385, %v2580, 0
    %2604 = vmatpush.msra.mxu0 0.0
    %2605 = vmatpush.msra.mxu0 0.0
    %2606 = vmatpush.msra.mxu0 0.0
    %2607 = vmatpush.msra.mxu0 0.0
    %2608 = vmatpush.msra.mxu0 0.0
    %2609 = vmatpush.msra.mxu0 0.0
    %2610 = vmatpush.msra.mxu0 0.0
    %2611 = vmatpush.msra.mxu0 0.0
    %2612 = vmatpush.msra.mxu0 0.0
    %2613 = vmatpush.msra.mxu0 0.0
    %2614 = vmatpush.msra.mxu0 0.0
    %2615 = vmatpush.msra.mxu0 0.0
    %2616 = vmatpush.msra.mxu0 %v2597
    %2617 = vmatpush.msra.mxu0 %v2596
    %2618 = vmatpush.msra.mxu0 %v2595
    %2619 = vmatpush.msra.mxu0 %v2594
    %2620 = vmatmul.f32.gmra.mxu0 %v2602
    %v2621 = vpop.f32.mrf.mxu0
    %v2622 = vadd.f32 %v2600, %v2621
    %2623 = vdwg.mxu0
    %v2624 = vtanh.pop %v2622
    %2629 = vrot.lane.b32.xlu0 %v2594, 96
    %v2630 = vpop.permute.xlu0 %2629
    %2631 = vrot.lane.b32.xlu0 %v2595, 96
    %v2632 = vpop.permute.xlu0 %2631
    %2633 = vrot.lane.b32.xlu0 %v2596, 96
    %v2634 = vpop.permute.xlu0 %2633
    %2635 = vrot.lane.b32.xlu0 %v2597, 96
    %v2636 = vpop.permute.xlu0 %2635
    %2641 = vrot.lane.b32.xlu0 %v2600, 96
    %v2642 = vpop.permute.xlu0 %2641
    %v2645 = vsel %vm1385, %v2624, 0
    %2647 = vmatpush.msra.mxu0 0.0
    %2648 = vmatpush.msra.mxu0 0.0
    %2649 = vmatpush.msra.mxu0 0.0
    %2650 = vmatpush.msra.mxu0 0.0
    %2651 = vmatpush.msra.mxu0 0.0
    %2652 = vmatpush.msra.mxu0 0.0
    %2653 = vmatpush.msra.mxu0 0.0
    %2654 = vmatpush.msra.mxu0 0.0
    %2655 = vmatpush.msra.mxu0 0.0
    %2656 = vmatpush.msra.mxu0 0.0
    %2657 = vmatpush.msra.mxu0 0.0
    %2658 = vmatpush.msra.mxu0 0.0
    %2659 = vmatpush.msra.mxu0 %v2636
    %2660 = vmatpush.msra.mxu0 %v2634
    %2661 = vmatpush.msra.mxu0 %v2632
    %2662 = vmatpush.msra.mxu0 %v2630
    %2663 = vmatmul.f32.gmra.mxu0 %v2645
    %v2664 = vpop.f32.mrf.mxu0
    %v2665 = vadd.f32 %v2642, %v2664
    %2666 = vdwg.mxu0
    %vm2667 = vcmask 5120
    %v2668 = vsel %vm2667, %v2665, -inf
    %v2669 = vrot.slane %v2668, 4
    %v2670 = vmax.f32 %v2668, %v2669
    %v2671 = vrot.slane %v2670, 2
    %v2672 = vmax.f32 %v2670, %v2671
    %v2673 = vrot.slane %v2672, 1
    %v2674 = vmax.f32 %v2672, %v2673
    %v2675 = vsub.f32 %v2665, %v2674
    %v2676 = vmul.f32 %v2675, 1.442695
    %v2677 = vpow.pop %v2676
    %v2678 = vsel %vm2667, %v2677, 0.0
    %v2679 = vrot.slane %v2678, 4
    %v2680 = vadd.f32 %v2678, %v2679
    %v2681 = vrot.slane %v2680, 2
    %v2682 = vadd.f32 %v2680, %v2681
    %v2683 = vrot.slane %v2682, 1
    %v2684 = vadd.f32 %v2682, %v2683
    %v2685 = vrcp.pop %v2684
    %v2686 = vmul.f32 %v2677, %v2685
    %2688 = vset.pattern.permute.xlu0 0
    %2689 = vperm.xlu0 %2688, %v2686
    %v2690 = vpop.permute.xlu0 %2689
    %v2692 = vmul.f32 %v2577, %v2690
    %vm2693 = vcmask 521472
    %v2694 = vsel %vm2693, %v2692, 0.0
    %v2695 = vrot.slane %v2694, 4
    %v2696 = vadd.f32 %v2694, %v2695
    %v2697 = vrot.slane %v2696, 2
    %v2698 = vadd.f32 %v2696, %v2697
    %v2699 = vrot.slane %v2698, 1
    %v2700 = vadd.f32 %v2698, %v2699
    %2702 = vrot.lane.b32.xlu0 %v2700, 96
    %v2703 = vpop.permute.xlu0 %2702
    %2704 = vrot.lane.b32.xlu0 %v2594, 95
    %v2705 = vpop.permute.xlu0 %2704
    %2706 = vrot.lane.b32.xlu0 %v2595, 95
    %v2707 = vpop.permute.xlu0 %2706
    %2708 = vrot.lane.b32.xlu0 %v2596, 95
    %v2709 = vpop.permute.xlu0 %2708
    %2710 = vrot.lane.b32.xlu0 %v2597, 95
    %v2711 = vpop.permute.xlu0 %2710
    %2716 = vrot.lane.b32.xlu0 %v2600, 95
    %v2717 = vpop.permute.xlu0 %2716
    %v2719 = vsel %vm1385, %v2703, 0
    %2721 = vmatpush.msra.mxu0 0.0
    %2722 = vmatpush.msra.mxu0 0.0
    %2723 = vmatpush.msra.mxu0 0.0
    %2724 = vmatpush.msra.mxu0 0.0
    %2725 = vmatpush.msra.mxu0 0.0
    %2726 = vmatpush.msra.mxu0 0.0
    %2727 = vmatpush.msra.mxu0 0.0
    %2728 = vmatpush.msra.mxu0 0.0
    %2729 = vmatpush.msra.mxu0 0.0
    %2730 = vmatpush.msra.mxu0 0.0
    %2731 = vmatpush.msra.mxu0 0.0
    %2732 = vmatpush.msra.mxu0 0.0
    %2733 = vmatpush.msra.mxu0 %v2711
    %2734 = vmatpush.msra.mxu0 %v2709
    %2735 = vmatpush.msra.mxu0 %v2707
    %2736 = vmatpush.msra.mxu0 %v2705
    %2737 = vmatmul.f32.gmra.mxu0 %v2719
    %v2738 = vpop.f32.mrf.mxu0
    %v2739 = vadd.f32 %v2717, %v2738
    %2740 = vdwg.mxu0
    %vm2741 = vcmask 8192
    %v2742 = vsel %vm2741, %v2739, -inf
    %2743 = vmax.xlane.f32.xlu0 %v2742
    %v2744 = vpop.xlane.xlu0 %2743
    %v2745 = vsub.f32 %v2739, %v2744
    %v2746 = vmul.f32 %v2745, 1.442695
    %v2747 = vpow.pop %v2746
    %v2748 = vsel %vm2741, %v2747, 0.0
    %2749 = vadd.xlane.f32.xlu0 %v2748
    %v2750 = vpop.xlane.xlu0 %2749
    %v2751 = vrcp.pop %v2750
    %v2752 = vmul.f32 %v2747, %v2751
    %2753 = vst.msk [vmem:[%s8] sm:$0x1] %vm2741, %v2752
    // Predicated region
    $region38: #{streaming_crnn_forward.1} parent=1 // pred_check
      _
    $region39: #{streaming_crnn_forward.1} parent=1 // pred_check_branch
      %2755 = sbr.rel (0) target = $region41
    $region40: #{streaming_crnn_forward.1} parent=1 // pred_region
      _
    $region41: #{streaming_crnn_forward.1} parent=1 // pred_fallthru
      _
    // Predicated region
    $region42: #{streaming_crnn_forward.1} parent=1 // pred_check
      _
    $region43: #{streaming_crnn_forward.1} parent=1 // pred_check_branch
      %2757 = sbr.rel (0) target = $region45
    $region44: #{streaming_crnn_forward.1} parent=1 // pred_region
      %2759 = vsyncadd [#allocation5], 0
      %s2761 = sshll.u32 [#allocation6], 4
      %s2762 = int_to_ptr.vmem [resolvable:$true] %s2761
      %s2763 = sshll.u32 %s9, 4
      %s2764 = int_to_ptr.hbm [resolvable:$true] %s2763
      %2766 = dma.vmem_to_hbm [thread:$0]  %s2762, 32, %s2764, [#allocation5]
    $region45: #{streaming_crnn_forward.1} parent=1 // pred_fallthru
      _
    // Predicated region
    $region46: #{streaming_crnn_forward.1} parent=1 // pred_check
      _
    $region47: #{streaming_crnn_forward.1} parent=1 // pred_check_branch
      %2768 = sbr.rel (0) target = $region49
    $region48: #{streaming_crnn_forward.1} parent=1 // pred_region
      %2770 = vsyncadd [#allocation8], 0
      %s2772 = sshll.u32 [#allocation7], 4
      %s2773 = int_to_ptr.vmem [resolvable:$true] %s2772
      %s2774 = sshll.u32 %s10, 4
      %s2775 = int_to_ptr.hbm [resolvable:$true] %s2774
      %2777 = dma.vmem_to_hbm [thread:$0]  %s2773, 128, %s2775, [#allocation8]
    $region49: #{streaming_crnn_forward.1} parent=1 // pred_fallthru
      _
    // Predicated region
    $region50: #{streaming_crnn_forward.1} parent=1 // pred_check
      _
    $region51: #{streaming_crnn_forward.1} parent=1 // pred_check_branch
      %2779 = sbr.rel (0) target = $region53
    $region52: #{streaming_crnn_forward.1} parent=1 // pred_region
      %2781 = vsyncadd [#allocation8], 0
      %s2783 = sshll.u32 [#allocation9], 4
      %s2784 = int_to_ptr.vmem [resolvable:$true] %s2783
      %s2785 = sshll.u32 %s11, 4
      %s2786 = int_to_ptr.hbm [resolvable:$true] %s2785
      %2788 = dma.vmem_to_hbm [thread:$0]  %s2784, 32, %s2786, [#allocation8]
    $region53: #{streaming_crnn_forward.1} parent=1 // pred_fallthru
      _
    // Predicated region
    $region54: #{streaming_crnn_forward.1} parent=1 // pred_check
      _
    $region55: #{streaming_crnn_forward.1} parent=1 // pred_check_branch
      %2790 = sbr.rel (0) target = $region57
    $region56: #{streaming_crnn_forward.1} parent=1 // pred_region
      _
    $region57: #{streaming_crnn_forward.1} parent=1 // pred_fallthru
      _
    // Predicated region
    $region58: #{streaming_crnn_forward.1} parent=1 // pred_check
      _
    $region59: #{streaming_crnn_forward.1} parent=1 // pred_check_branch
      %2792 = sbr.rel (0) target = $region61
    $region60: #{streaming_crnn_forward.1} parent=1 // pred_region
      %2794 = dma.done [#allocation5], 32
    $region61: #{streaming_crnn_forward.1} parent=1 // pred_fallthru
      _
    // Predicated region
    $region62: #{streaming_crnn_forward.1} parent=1 // pred_check
      _
    $region63: #{streaming_crnn_forward.1} parent=1 // pred_check_branch
      %2796 = sbr.rel (0) target = $region65
    $region64: #{streaming_crnn_forward.1} parent=1 // pred_region
      %2798 = dma.done [#allocation8], 128
    $region65: #{streaming_crnn_forward.1} parent=1 // pred_fallthru
      _
    // Predicated region
    $region66: #{streaming_crnn_forward.1} parent=1 // pred_check
      _
    $region67: #{streaming_crnn_forward.1} parent=1 // pred_check_branch
      %2800 = sbr.rel (0) target = $region69
    $region68: #{streaming_crnn_forward.1} parent=1 // pred_region
      %2802 = dma.done [#allocation8], 32
    $region69: #{streaming_crnn_forward.1} parent=1 // pred_fallthru
      _
    %2803 = vsyncpa [#allocation4], 1
    %2804 = vsyncpa [#allocation5], 1
    %2805 = vsyncpa [#allocation8], 1

</llo_original>
